<compile_context>
chip_gen: v6e
topology: v6e:2x2x1
jax: 0.10.0
libtpu: 0.0.40
codegen_flags: <defaults>
</compile_context>

<pallas_src>
import math
from functools import partial

import jax
import jax.numpy as jnp
from jax import lax
from jax.experimental import pallas as pl
from jax.experimental.pallas import tpu as pltpu


# ----------------------------- shared math -----------------------------------

def _layernorm(x, w, b, eps=1e-5):
    mu = jnp.mean(x, axis=-1, keepdims=True)
    var = jnp.mean(jnp.square(x - mu), axis=-1, keepdims=True)
    return (x - mu) * lax.rsqrt(var + eps) * w + b


# ----------------------------- fused kernel ----------------------------------

def fused_encoder_kernel(emb_ref, bias_ref, inw_ref, inb_ref,
                         aln_w_ref, aln_b_ref,
                         qw_ref, qb_ref, kw_ref, kb_ref, vw_ref, vb_ref,
                         ow_ref, ob_ref,
                         fln_w_ref, fln_b_ref,
                         w1_ref, b1_ref, w2_ref, b2_ref,
                         lnf_w_ref, lnf_b_ref,
                         o_ref, x_scr, *, n_head):
    layer = pl.program_id(1)
    last_layer = pl.num_programs(1) - 1
    S, D = x_scr.shape
    hd = D // n_head
    scaling = 1.0 / math.sqrt(hd)
    bf16 = jnp.bfloat16
    f32 = jnp.float32

    # ---- layer 0: fused input_fc; result becomes the VMEM-resident activation
    @pl.when(layer == 0)
    def _():
        x_scr[...] = (jnp.dot(emb_ref[0].astype(bf16), inw_ref[...].astype(bf16),
                              preferred_element_type=f32) + inb_ref[...])

    x = x_scr[...]                      # (S, D) f32, resident across layer steps
    bias = bias_ref[0]                  # (1, S) additive key-padding bias

    # ---------------- self-attention sublayer (pre-LN) ----------------
    xn = _layernorm(x, aln_w_ref[0], aln_b_ref[0])
    xn_b = xn.astype(bf16)

    attn = None
    for h in range(n_head):             # static unroll; head-major weights ->
        # full-depth (D) contractions, no lane-sliced activation views.
        q_h = (jnp.dot(xn_b, qw_ref[0, h].astype(bf16),
                       preferred_element_type=f32) + qb_ref[0, h]) * scaling
        k_h = jnp.dot(xn_b, kw_ref[0, h].astype(bf16),
                      preferred_element_type=f32) + kb_ref[0, h]
        v_h = jnp.dot(xn_b, vw_ref[0, h].astype(bf16),
                      preferred_element_type=f32) + vb_ref[0, h]

        s_h = lax.dot_general(q_h.astype(bf16), k_h.astype(bf16),
                              (((1,), (1,)), ((), ())),
                              preferred_element_type=f32)          # (S, S)
        s_h = s_h + bias                                           # hoisted mask bias
        m_h = jnp.max(s_h, axis=-1, keepdims=True)
        e_h = jnp.exp(s_h - m_h)
        p_h = e_h * pl.reciprocal(jnp.sum(e_h, axis=-1, keepdims=True),
                                  approx=True)
        ctx_h = jnp.dot(p_h.astype(bf16), v_h.astype(bf16),
                        preferred_element_type=f32)                # (S, hd)
        # fold the output projection per head and accumulate (== concat+Linear)
        contrib = jnp.dot(ctx_h.astype(bf16), ow_ref[0, h].astype(bf16),
                          preferred_element_type=f32)              # (S, D)
        attn = contrib if attn is None else attn + contrib

    x = x + attn + ob_ref[0]            # dropout == identity (eval mode)

    # ---------------- FFN sublayer (pre-LN) ----------------
    xn = _layernorm(x, fln_w_ref[0], fln_b_ref[0])
    hmid = jnp.maximum(jnp.dot(xn.astype(bf16), w1_ref[0].astype(bf16),
                               preferred_element_type=f32) + b1_ref[0], 0.0)
    x = x + jnp.dot(hmid.astype(bf16), w2_ref[0].astype(bf16),
                    preferred_element_type=f32) + b2_ref[0]
    x_scr[...] = x

    # ---- output block stays resident (same block index over the layer axis),
    #      final LayerNorm fused into the last step; one HBM flush per batch.
    @pl.when(layer == last_layer)
    def _():
        o_ref[0] = _layernorm(x, lnf_w_ref[...], lnf_b_ref[...]).astype(o_ref.dtype)

    @pl.when(layer < last_layer)
    def _():
        o_ref[0] = x.astype(o_ref.dtype)


# ----------------------------- wrapper ----------------------------------------

def fused_encoder_stack(x_emb, bias, params, *, n_head):
    B, S, E = x_emb.shape
    L, D, _ = params["q_w"].shape
    H = n_head
    hd = D // H

    # head-major weight layout (layout plumbing, done once outside the kernel)
    def split_heads_w(w):          # (L, D, H*hd) -> (L, H, D, hd)
        return w.reshape(L, D, H, hd).transpose(0, 2, 1, 3)

    def split_heads_b(b):          # (L, 1, H*hd) -> (L, H, 1, hd)
        return b.reshape(L, H, hd)[:, :, None, :]

    qw = split_heads_w(params["q_w"]); qb = split_heads_b(params["q_b"])
    kw = split_heads_w(params["k_w"]); kb = split_heads_b(params["k_b"])
    vw = split_heads_w(params["v_w"]); vb = split_heads_b(params["v_b"])
    ow = params["out_w"].reshape(L, H, hd, D)        # in-dim is [h*hd + d]

    def per_layer_spec(a):
        nd = a.ndim
        return pl.BlockSpec((1,) + a.shape[1:],
                            lambda b, l, _n=nd: (l,) + (0,) * (_n - 1))

    def full_spec(a):
        nd = a.ndim
        return pl.BlockSpec(a.shape, lambda b, l, _n=nd: (0,) * _n)

    full_arrays = (params["input_fc_w"], params["input_fc_b"])
    layer_arrays = (
        params["attn_ln_w"], params["attn_ln_b"],
        qw, qb, kw, kb, vw, vb, ow, params["out_b"],
        params["ffn_ln_w"], params["ffn_ln_b"],
        params["ffn_w1"], params["ffn_b1"],
        params["ffn_w2"], params["ffn_b2"],
    )
    final_arrays = (params["final_ln_w"], params["final_ln_b"])

    in_specs = ([pl.BlockSpec((1, S, E), lambda b, l: (b, 0, 0)),
                 pl.BlockSpec((1, 1, S), lambda b, l: (b, 0, 0))]
                + [full_spec(a) for a in full_arrays]
                + [per_layer_spec(a) for a in layer_arrays]
                + [full_spec(a) for a in final_arrays])

    return pl.pallas_call(
        partial(fused_encoder_kernel, n_head=n_head),
        out_shape=jax.ShapeDtypeStruct((B, S, D), jnp.float32),
        grid=(B, L),
        in_specs=in_specs,
        out_specs=pl.BlockSpec((1, S, D), lambda b, l: (b, 0, 0)),
        scratch_shapes=[pltpu.VMEM((S, D), jnp.float32)],
        compiler_params=pltpu.CompilerParams(
            dimension_semantics=("parallel", "arbitrary")),
    )(x_emb, bias, *full_arrays, *layer_arrays, *final_arrays)


def transformer_encoder_forward(params, src, src_lens, src_mask,
                                tlt, tlt_lens, tlt_mask, *, d_model, n_head):
    tokens = jnp.concatenate([tlt, src], axis=1)                 # (B, S)
    input_mask = jnp.concatenate([tlt_mask, src_mask], axis=1)   # (B, S)

    x = params["embed"][tokens] * math.sqrt(d_model)             # (B, S, E) glue gather
    # TODO(synk): pos_embed is None in this configuration; add it here if provided.

    # host-precomputed additive key-padding bias (0 = valid, -1e30 = padding)
    bias = jnp.where(input_mask > 0, 0.0, -1e30).astype(jnp.float32)[:, None, :]

    out = fused_encoder_stack(x, bias, params, n_head=n_head)    # (B, S, D)

    max_tlt_len = tlt.shape[1]
    return out[:, :max_tlt_len], out[:, max_tlt_len:]


# ----------------------------- reference (pure JAX, f32) ----------------------

def reference_forward(params, src, src_mask, tlt, tlt_mask, *, d_model, n_head):
    tokens = jnp.concatenate([tlt, src], axis=1)
    mask = jnp.concatenate([tlt_mask, src_mask], axis=1)
    x = params["embed"][tokens] * math.sqrt(d_model)
    x = x @ params["input_fc_w"] + params["input_fc_b"]
    B, S, D = x.shape
    H = n_head
    hd = D // H
    bias = jnp.where(mask > 0, 0.0, -1e30)[:, None, None, :]
    L = params["q_w"].shape[0]
    for l in range(L):
        resid = x
        xn = _layernorm(x, params["attn_ln_w"][l], params["attn_ln_b"][l])
        q = (xn @ params["q_w"][l] + params["q_b"][l]) * (1.0 / math.sqrt(hd))
        k = xn @ params["k_w"][l] + params["k_b"][l]
        v = xn @ params["v_w"][l] + params["v_b"][l]
        qh = q.reshape(B, S, H, hd).transpose(0, 2, 1, 3)
        kh = k.reshape(B, S, H, hd).transpose(0, 2, 1, 3)
        vh = v.reshape(B, S, H, hd).transpose(0, 2, 1, 3)
        sc = jnp.einsum("bhqd,bhkd->bhqk", qh, kh) + bias
        p = jax.nn.softmax(sc, axis=-1)
        ctx = jnp.einsum("bhqk,bhkd->bhqd", p, vh)
        attn = (ctx.transpose(0, 2, 1, 3).reshape(B, S, D)
                @ params["out_w"][l] + params["out_b"][l])
        x = resid + attn
        resid = x
        xn = _layernorm(x, params["ffn_ln_w"][l], params["ffn_ln_b"][l])
        hmid = jax.nn.relu(xn @ params["ffn_w1"][l] + params["ffn_b1"][l])
        x = resid + (hmid @ params["ffn_w2"][l] + params["ffn_b2"][l])
    x = _layernorm(x, params["final_ln_w"], params["final_ln_b"])
    max_tlt_len = tlt.shape[1]
    return x[:, :max_tlt_len], x[:, max_tlt_len:]


# ----------------------------- params ------------------------------------------

def init_params(key, vocab, emb_dim, d_model, dim_ff, num_layers):
    ks = jax.random.split(key, 12)
    L, D, E, F = num_layers, d_model, emb_dim, dim_ff

    def w(k, shape, scale=0.05):
        return jax.random.normal(k, shape, jnp.float32) * scale

    return {
        "embed": w(ks[0], (vocab, E), 0.1),
        "input_fc_w": w(ks[1], (E, D)),
        "input_fc_b": w(ks[2], (1, D), 0.01),
        "final_ln_w": jnp.ones((1, D), jnp.float32),
        "final_ln_b": jnp.zeros((1, D), jnp.float32),
        "attn_ln_w": jnp.ones((L, 1, D), jnp.float32),
        "attn_ln_b": jnp.zeros((L, 1, D), jnp.float32),
        "q_w": w(ks[3], (L, D, D)), "q_b": w(ks[4], (L, 1, D), 0.01),
        "k_w": w(ks[5], (L, D, D)), "k_b": w(ks[6], (L, 1, D), 0.01),
        "v_w": w(ks[7], (L, D, D)), "v_b": w(ks[8], (L, 1, D), 0.01),
        "out_w": w(ks[9], (L, D, D)), "out_b": jnp.zeros((L, 1, D), jnp.float32),
        "ffn_ln_w": jnp.ones((L, 1, D), jnp.float32),
        "ffn_ln_b": jnp.zeros((L, 1, D), jnp.float32),
        "ffn_w1": w(ks[10], (L, D, F)), "ffn_b1": jnp.zeros((L, 1, F), jnp.float32),
        "ffn_w2": w(ks[11], (L, F, D)), "ffn_b2": jnp.zeros((L, 1, D), jnp.float32),
    }


# ----------------------------- main --------------------------------------------

if __name__ == "__main__":
    B = 2
    vocab = 50
    emb_dim = 64
    d_model = 128      # lane-dense (multiple of 128) per perf review
    n_head = 4         # head_dim = 32
    dim_ff = 256
    num_layers = 2
    tlt_len = 3
    src_len = 5        # total seq = 8 (sublane-aligned)

    key = jax.random.PRNGKey(0)
    k_tlt, k_src, k_par = jax.random.split(key, 3)

    tlt = jax.random.randint(k_tlt, (B, tlt_len), 0, vocab, dtype=jnp.int32)
    src = jax.random.randint(k_src, (B, src_len), 0, vocab, dtype=jnp.int32)
    tlt_lens = jnp.array([3, 2], jnp.int32)
    src_lens = jnp.array([5, 4], jnp.int32)
    tlt_mask = (jnp.arange(tlt_len)[None, :] < tlt_lens[:, None]).astype(jnp.float32)
    src_mask = (jnp.arange(src_len)[None, :] < src_lens[:, None]).astype(jnp.float32)

    params = init_params(k_par, vocab, emb_dim, d_model, dim_ff, num_layers)

    fwd = jax.jit(partial(transformer_encoder_forward,
                          d_model=d_model, n_head=n_head))
    tlt_embed, src_embed = fwd(params, src, src_lens, src_mask,
                               tlt, tlt_lens, tlt_mask)
    jax.block_until_ready((tlt_embed, src_embed))

    assert tlt_embed.shape == (B, tlt_len, d_model)
    assert src_embed.shape == (B, src_len, d_model)
    assert bool(jnp.all(jnp.isfinite(tlt_embed)))
    assert bool(jnp.all(jnp.isfinite(src_embed)))

    # semantic sanity check vs. a pure-JAX f32 reference (bf16 MXU tolerance)
    ref_tlt, ref_src = reference_forward(params, src, src_mask, tlt, tlt_mask,
                                         d_model=d_model, n_head=n_head)
    err = max(float(jnp.max(jnp.abs(tlt_embed - ref_tlt))),
              float(jnp.max(jnp.abs(src_embed - ref_src))))
    assert err < 0.15, f"mismatch vs reference: {err}"

    print("KERNEL_OK")
</pallas_src>

<mosaic_0001>
module attributes {stable_mosaic.version = 11 : i64} {
  func.func @fused_encoder_kernel(%arg0: i32, %arg1: i32, %arg2: memref<1x8x64xf32, #tpu.memory_space<vmem>>, %arg3: memref<1x1x8xf32, #tpu.memory_space<vmem>>, %arg4: memref<64x128xf32, #tpu.memory_space<vmem>>, %arg5: memref<1x128xf32, #tpu.memory_space<vmem>>, %arg6: memref<1x1x128xf32, #tpu.memory_space<vmem>>, %arg7: memref<1x1x128xf32, #tpu.memory_space<vmem>>, %arg8: memref<1x4x128x32xf32, #tpu.memory_space<vmem>>, %arg9: memref<1x4x1x32xf32, #tpu.memory_space<vmem>>, %arg10: memref<1x4x128x32xf32, #tpu.memory_space<vmem>>, %arg11: memref<1x4x1x32xf32, #tpu.memory_space<vmem>>, %arg12: memref<1x4x128x32xf32, #tpu.memory_space<vmem>>, %arg13: memref<1x4x1x32xf32, #tpu.memory_space<vmem>>, %arg14: memref<1x4x32x128xf32, #tpu.memory_space<vmem>>, %arg15: memref<1x1x128xf32, #tpu.memory_space<vmem>>, %arg16: memref<1x1x128xf32, #tpu.memory_space<vmem>>, %arg17: memref<1x1x128xf32, #tpu.memory_space<vmem>>, %arg18: memref<1x128x256xf32, #tpu.memory_space<vmem>>, %arg19: memref<1x1x256xf32, #tpu.memory_space<vmem>>, %arg20: memref<1x256x128xf32, #tpu.memory_space<vmem>>, %arg21: memref<1x1x128xf32, #tpu.memory_space<vmem>>, %arg22: memref<1x128xf32, #tpu.memory_space<vmem>>, %arg23: memref<1x128xf32, #tpu.memory_space<vmem>>, %arg24: memref<1x8x128xf32, #tpu.memory_space<vmem>>, %arg25: memref<8x128xf32, #tpu.memory_space<vmem>>) attributes {dimension_semantics = [#tpu.dimension_semantics<parallel>, #tpu.dimension_semantics<arbitrary>], iteration_bounds = array<i64: 2, 2>, scalar_prefetch = 0 : i64, scratch_operands = 1 : i64, tpu.core_type = #tpu.core_type<tc>, window_params = [{transform_indices = @transform_0, window_bounds = array<i64: 1, 8, 64>}, {transform_indices = @transform_1, window_bounds = array<i64: 1, 1, 8>}, {pipeline_mode = #tpu.pipeline_mode<synchronous>, transform_indices = @transform_2, window_bounds = array<i64: 64, 128>}, {pipeline_mode = #tpu.pipeline_mode<synchronous>, transform_indices = @transform_3, window_bounds = array<i64: 1, 128>}, {transform_indices = @transform_4, window_bounds = array<i64: 1, 1, 128>}, {transform_indices = @transform_5, window_bounds = array<i64: 1, 1, 128>}, {transform_indices = @transform_6, window_bounds = array<i64: 1, 4, 128, 32>}, {transform_indices = @transform_7, window_bounds = array<i64: 1, 4, 1, 32>}, {transform_indices = @transform_8, window_bounds = array<i64: 1, 4, 128, 32>}, {transform_indices = @transform_9, window_bounds = array<i64: 1, 4, 1, 32>}, {transform_indices = @transform_10, window_bounds = array<i64: 1, 4, 128, 32>}, {transform_indices = @transform_11, window_bounds = array<i64: 1, 4, 1, 32>}, {transform_indices = @transform_12, window_bounds = array<i64: 1, 4, 32, 128>}, {transform_indices = @transform_13, window_bounds = array<i64: 1, 1, 128>}, {transform_indices = @transform_14, window_bounds = array<i64: 1, 1, 128>}, {transform_indices = @transform_15, window_bounds = array<i64: 1, 1, 128>}, {transform_indices = @transform_16, window_bounds = array<i64: 1, 128, 256>}, {transform_indices = @transform_17, window_bounds = array<i64: 1, 1, 256>}, {transform_indices = @transform_18, window_bounds = array<i64: 1, 256, 128>}, {transform_indices = @transform_19, window_bounds = array<i64: 1, 1, 128>}, {pipeline_mode = #tpu.pipeline_mode<synchronous>, transform_indices = @transform_20, window_bounds = array<i64: 1, 128>}, {pipeline_mode = #tpu.pipeline_mode<synchronous>, transform_indices = @transform_21, window_bounds = array<i64: 1, 128>}, {transform_indices = @transform_22, window_bounds = array<i64: 1, 8, 128>}]} {
    %c0_i32 = arith.constant 0 : i32
    %0 = arith.cmpi eq, %arg1, %c0_i32 : i32
    %1 = arith.extui %0 : i1 to i32
    %c0_i32_0 = arith.constant 0 : i32
    %2 = arith.cmpi ne, %1, %c0_i32_0 : i32
    scf.if %2 {
      %c0_194 = arith.constant 0 : index
      %c0_195 = arith.constant 0 : index
      %c0_196 = arith.constant 0 : index
      %291 = vector.load %arg2[%c0_194, %c0_195, %c0_196] : memref<1x8x64xf32, #tpu.memory_space<vmem>>, vector<1x8x64xf32>
      %292 = vector.shape_cast %291 : vector<1x8x64xf32> to vector<8x64xf32>
      %293 = arith.truncf %292 : vector<8x64xf32> to vector<8x64xbf16>
      %c0_197 = arith.constant 0 : index
      %c0_198 = arith.constant 0 : index
      %294 = vector.load %arg4[%c0_197, %c0_198] : memref<64x128xf32, #tpu.memory_space<vmem>>, vector<64x128xf32>
      %295 = arith.truncf %294 : vector<64x128xf32> to vector<64x128xbf16>
      %cst_199 = arith.constant dense<0.000000e+00> : vector<8x128xf32>
      %296 = tpu.matmul %293, %295, %cst_199 {dimension_numbers = #tpu.dot_dimension_numbers<[1], [0], [0], [1], [0, 0, 1, 1], [], []>} : vector<8x64xbf16>, vector<64x128xbf16>, vector<8x128xf32> -> vector<8x128xf32>
      %c0_200 = arith.constant 0 : index
      %c0_201 = arith.constant 0 : index
      %297 = vector.load %arg5[%c0_200, %c0_201] : memref<1x128xf32, #tpu.memory_space<vmem>>, vector<1x128xf32>
      %298 = vector.broadcast %297 : vector<1x128xf32> to vector<8x128xf32>
      %299 = arith.addf %296, %298 : vector<8x128xf32>
      %c0_202 = arith.constant 0 : index
      %c0_203 = arith.constant 0 : index
      %300 = vector.load %arg25[%c0_202, %c0_203] : memref<8x128xf32, #tpu.memory_space<vmem>>, vector<8x128xf32>
      tpu.vector_store %arg25[%c0_202, %c0_203], %299 {strides = array<i32>} : memref<8x128xf32, #tpu.memory_space<vmem>>, vector<8x128xf32>,
    } else {
    }
    %c0 = arith.constant 0 : index
    %c0_1 = arith.constant 0 : index
    %3 = vector.load %arg25[%c0, %c0_1] : memref<8x128xf32, #tpu.memory_space<vmem>>, vector<8x128xf32>
    %c0_2 = arith.constant 0 : index
    %c0_3 = arith.constant 0 : index
    %c0_4 = arith.constant 0 : index
    %4 = vector.load %arg3[%c0_2, %c0_3, %c0_4] : memref<1x1x8xf32, #tpu.memory_space<vmem>>, vector<1x1x8xf32>
    %5 = vector.shape_cast %4 : vector<1x1x8xf32> to vector<1x8xf32>
    %c0_5 = arith.constant 0 : index
    %c0_6 = arith.constant 0 : index
    %c0_7 = arith.constant 0 : index
    %6 = vector.load %arg6[%c0_5, %c0_6, %c0_7] : memref<1x1x128xf32, #tpu.memory_space<vmem>>, vector<1x1x128xf32>
    %7 = vector.shape_cast %6 : vector<1x1x128xf32> to vector<1x128xf32>
    %c0_8 = arith.constant 0 : index
    %c0_9 = arith.constant 0 : index
    %c0_10 = arith.constant 0 : index
    %8 = vector.load %arg7[%c0_8, %c0_9, %c0_10] : memref<1x1x128xf32, #tpu.memory_space<vmem>>, vector<1x1x128xf32>
    %9 = vector.shape_cast %8 : vector<1x1x128xf32> to vector<1x128xf32>
    %cst = arith.constant dense<0.000000e+00> : vector<8xf32>
    %10 = vector.multi_reduction <add>, %3, %cst [1] : vector<8x128xf32> to vector<8xf32>
    %11 = vector.shape_cast %10 : vector<8xf32> to vector<8x1xf32>
    %cst_11 = arith.constant 1.280000e+02 : f32
    %12 = vector.broadcast %cst_11 : f32 to vector<8x1xf32>
    %13 = arith.divf %11, %12 : vector<8x1xf32>
    %14 = vector.broadcast %13 : vector<8x1xf32> to vector<8x128xf32>
    %15 = arith.subf %3, %14 : vector<8x128xf32>
    %16 = arith.mulf %15, %15 : vector<8x128xf32>
    %cst_12 = arith.constant dense<0.000000e+00> : vector<8xf32>
    %17 = vector.multi_reduction <add>, %16, %cst_12 [1] : vector<8x128xf32> to vector<8xf32>
    %18 = vector.shape_cast %17 : vector<8xf32> to vector<8x1xf32>
    %cst_13 = arith.constant 1.280000e+02 : f32
    %19 = vector.broadcast %cst_13 : f32 to vector<8x1xf32>
    %20 = arith.divf %18, %19 : vector<8x1xf32>
    %21 = vector.broadcast %13 : vector<8x1xf32> to vector<8x128xf32>
    %22 = arith.subf %3, %21 : vector<8x128xf32>
    %cst_14 = arith.constant 9.99999974E-6 : f32
    %23 = vector.broadcast %cst_14 : f32 to vector<8x1xf32>
    %24 = arith.addf %20, %23 : vector<8x1xf32>
    %25 = math.rsqrt %24 : vector<8x1xf32>
    %26 = vector.broadcast %25 : vector<8x1xf32> to vector<8x128xf32>
    %27 = arith.mulf %22, %26 : vector<8x128xf32>
    %28 = vector.broadcast %7 : vector<1x128xf32> to vector<8x128xf32>
    %29 = arith.mulf %27, %28 : vector<8x128xf32>
    %30 = vector.broadcast %9 : vector<1x128xf32> to vector<8x128xf32>
    %31 = arith.addf %29, %30 : vector<8x128xf32>
    %32 = arith.truncf %31 : vector<8x128xf32> to vector<8x128xbf16>
    %c0_15 = arith.constant 0 : index
    %c0_16 = arith.constant 0 : index
    %c0_17 = arith.constant 0 : index
    %c0_18 = arith.constant 0 : index
    %33 = vector.load %arg8[%c0_15, %c0_16, %c0_17, %c0_18] : memref<1x4x128x32xf32, #tpu.memory_space<vmem>>, vector<1x1x128x32xf32>
    %34 = vector.shape_cast %33 : vector<1x1x128x32xf32> to vector<128x32xf32>
    %35 = arith.truncf %34 : vector<128x32xf32> to vector<128x32xbf16>
    %cst_19 = arith.constant dense<0.000000e+00> : vector<8x32xf32>
    %36 = tpu.matmul %32, %35, %cst_19 {dimension_numbers = #tpu.dot_dimension_numbers<[1], [0], [0], [1], [0, 0, 1, 1], [], []>} : vector<8x128xbf16>, vector<128x32xbf16>, vector<8x32xf32> -> vector<8x32xf32>
    %c0_20 = arith.constant 0 : index
    %c0_21 = arith.constant 0 : index
    %c0_22 = arith.constant 0 : index
    %c0_23 = arith.constant 0 : index
    %37 = vector.load %arg9[%c0_20, %c0_21, %c0_22, %c0_23] : memref<1x4x1x32xf32, #tpu.memory_space<vmem>>, vector<1x1x1x32xf32>
    %38 = vector.shape_cast %37 : vector<1x1x1x32xf32> to vector<1x32xf32>
    %39 = vector.broadcast %38 : vector<1x32xf32> to vector<8x32xf32>
    %40 = arith.addf %36, %39 : vector<8x32xf32>
    %cst_24 = arith.constant 0.176776692 : f32
    %41 = vector.broadcast %cst_24 : f32 to vector<8x32xf32>
    %42 = arith.mulf %40, %41 : vector<8x32xf32>
    %c0_25 = arith.constant 0 : index
    %c0_26 = arith.constant 0 : index
    %c0_27 = arith.constant 0 : index
    %c0_28 = arith.constant 0 : index
    %43 = vector.load %arg10[%c0_25, %c0_26, %c0_27, %c0_28] : memref<1x4x128x32xf32, #tpu.memory_space<vmem>>, vector<1x1x128x32xf32>
    %44 = vector.shape_cast %43 : vector<1x1x128x32xf32> to vector<128x32xf32>
    %45 = arith.truncf %44 : vector<128x32xf32> to vector<128x32xbf16>
    %cst_29 = arith.constant dense<0.000000e+00> : vector<8x32xf32>
    %46 = tpu.matmul %32, %45, %cst_29 {dimension_numbers = #tpu.dot_dimension_numbers<[1], [0], [0], [1], [0, 0, 1, 1], [], []>} : vector<8x128xbf16>, vector<128x32xbf16>, vector<8x32xf32> -> vector<8x32xf32>
    %c0_30 = arith.constant 0 : index
    %c0_31 = arith.constant 0 : index
    %c0_32 = arith.constant 0 : index
    %c0_33 = arith.constant 0 : index
    %47 = vector.load %arg11[%c0_30, %c0_31, %c0_32, %c0_33] : memref<1x4x1x32xf32, #tpu.memory_space<vmem>>, vector<1x1x1x32xf32>
    %48 = vector.shape_cast %47 : vector<1x1x1x32xf32> to vector<1x32xf32>
    %49 = vector.broadcast %48 : vector<1x32xf32> to vector<8x32xf32>
    %50 = arith.addf %46, %49 : vector<8x32xf32>
    %c0_34 = arith.constant 0 : index
    %c0_35 = arith.constant 0 : index
    %c0_36 = arith.constant 0 : index
    %c0_37 = arith.constant 0 : index
    %51 = vector.load %arg12[%c0_34, %c0_35, %c0_36, %c0_37] : memref<1x4x128x32xf32, #tpu.memory_space<vmem>>, vector<1x1x128x32xf32>
    %52 = vector.shape_cast %51 : vector<1x1x128x32xf32> to vector<128x32xf32>
    %53 = arith.truncf %52 : vector<128x32xf32> to vector<128x32xbf16>
    %cst_38 = arith.constant dense<0.000000e+00> : vector<8x32xf32>
    %54 = tpu.matmul %32, %53, %cst_38 {dimension_numbers = #tpu.dot_dimension_numbers<[1], [0], [0], [1], [0, 0, 1, 1], [], []>} : vector<8x128xbf16>, vector<128x32xbf16>, vector<8x32xf32> -> vector<8x32xf32>
    %c0_39 = arith.constant 0 : index
    %c0_40 = arith.constant 0 : index
    %c0_41 = arith.constant 0 : index
    %c0_42 = arith.constant 0 : index
    %55 = vector.load %arg13[%c0_39, %c0_40, %c0_41, %c0_42] : memref<1x4x1x32xf32, #tpu.memory_space<vmem>>, vector<1x1x1x32xf32>
    %56 = vector.shape_cast %55 : vector<1x1x1x32xf32> to vector<1x32xf32>
    %57 = vector.broadcast %56 : vector<1x32xf32> to vector<8x32xf32>
    %58 = arith.addf %54, %57 : vector<8x32xf32>
    %59 = arith.truncf %42 : vector<8x32xf32> to vector<8x32xbf16>
    %60 = arith.truncf %50 : vector<8x32xf32> to vector<8x32xbf16>
    %cst_43 = arith.constant dense<0.000000e+00> : vector<8x8xf32>
    %61 = tpu.matmul %59, %60, %cst_43 {dimension_numbers = #tpu.dot_dimension_numbers<[1], [1], [0], [0], [0, 0, 1, 0], [], []>} : vector<8x32xbf16>, vector<8x32xbf16>, vector<8x8xf32> -> vector<8x8xf32>
    %62 = vector.broadcast %5 : vector<1x8xf32> to vector<8x8xf32>
    %63 = arith.addf %61, %62 : vector<8x8xf32>
    %cst_44 = arith.constant dense<0xFF800000> : vector<8xf32>
    %64 = vector.multi_reduction <maximumf>, %63, %cst_44 [1] : vector<8x8xf32> to vector<8xf32>
    %65 = vector.shape_cast %64 : vector<8xf32> to vector<8x1xf32>
    %66 = vector.broadcast %65 : vector<8x1xf32> to vector<8x8xf32>
    %67 = arith.subf %63, %66 : vector<8x8xf32>
    %68 = math.exp %67 : vector<8x8xf32>
    %cst_45 = arith.constant dense<0.000000e+00> : vector<8xf32>
    %69 = vector.multi_reduction <add>, %68, %cst_45 [1] : vector<8x8xf32> to vector<8xf32>
    %70 = vector.shape_cast %69 : vector<8xf32> to vector<8x1xf32>
    %71 = tpu.reciprocal %70 {approx = true} : vector<8x1xf32> -> vector<8x1xf32>
    %72 = vector.broadcast %71 : vector<8x1xf32> to vector<8x8xf32>
    %73 = arith.mulf %68, %72 : vector<8x8xf32>
    %74 = arith.truncf %73 : vector<8x8xf32> to vector<8x8xbf16>
    %75 = arith.truncf %58 : vector<8x32xf32> to vector<8x32xbf16>
    %cst_46 = arith.constant dense<0.000000e+00> : vector<8x32xf32>
    %76 = tpu.matmul %74, %75, %cst_46 {dimension_numbers = #tpu.dot_dimension_numbers<[1], [0], [0], [1], [0, 0, 1, 1], [], []>} : vector<8x8xbf16>, vector<8x32xbf16>, vector<8x32xf32> -> vector<8x32xf32>
    %77 = arith.truncf %76 : vector<8x32xf32> to vector<8x32xbf16>
    %c0_47 = arith.constant 0 : index
    %c0_48 = arith.constant 0 : index
    %c0_49 = arith.constant 0 : index
    %c0_50 = arith.constant 0 : index
    %78 = vector.load %arg14[%c0_47, %c0_48, %c0_49, %c0_50] : memref<1x4x32x128xf32, #tpu.memory_space<vmem>>, vector<1x1x32x128xf32>
    %79 = vector.shape_cast %78 : vector<1x1x32x128xf32> to vector<32x128xf32>
    %80 = arith.truncf %79 : vector<32x128xf32> to vector<32x128xbf16>
    %cst_51 = arith.constant dense<0.000000e+00> : vector<8x128xf32>
    %81 = tpu.matmul %77, %80, %cst_51 {dimension_numbers = #tpu.dot_dimension_numbers<[1], [0], [0], [1], [0, 0, 1, 1], [], []>} : vector<8x32xbf16>, vector<32x128xbf16>, vector<8x128xf32> -> vector<8x128xf32>
    %c0_52 = arith.constant 0 : index
    %c1 = arith.constant 1 : index
    %c0_53 = arith.constant 0 : index
    %c0_54 = arith.constant 0 : index
    %82 = vector.load %arg8[%c0_52, %c1, %c0_53, %c0_54] : memref<1x4x128x32xf32, #tpu.memory_space<vmem>>, vector<1x1x128x32xf32>
    %83 = vector.shape_cast %82 : vector<1x1x128x32xf32> to vector<128x32xf32>
    %84 = arith.truncf %83 : vector<128x32xf32> to vector<128x32xbf16>
    %cst_55 = arith.constant dense<0.000000e+00> : vector<8x32xf32>
    %85 = tpu.matmul %32, %84, %cst_55 {dimension_numbers = #tpu.dot_dimension_numbers<[1], [0], [0], [1], [0, 0, 1, 1], [], []>} : vector<8x128xbf16>, vector<128x32xbf16>, vector<8x32xf32> -> vector<8x32xf32>
    %c0_56 = arith.constant 0 : index
    %c1_57 = arith.constant 1 : index
    %c0_58 = arith.constant 0 : index
    %c0_59 = arith.constant 0 : index
    %86 = vector.load %arg9[%c0_56, %c1_57, %c0_58, %c0_59] : memref<1x4x1x32xf32, #tpu.memory_space<vmem>>, vector<1x1x1x32xf32>
    %87 = vector.shape_cast %86 : vector<1x1x1x32xf32> to vector<1x32xf32>
    %88 = vector.broadcast %87 : vector<1x32xf32> to vector<8x32xf32>
    %89 = arith.addf %85, %88 : vector<8x32xf32>
    %cst_60 = arith.constant 0.176776692 : f32
    %90 = vector.broadcast %cst_60 : f32 to vector<8x32xf32>
    %91 = arith.mulf %89, %90 : vector<8x32xf32>
    %c0_61 = arith.constant 0 : index
    %c1_62 = arith.constant 1 : index
    %c0_63 = arith.constant 0 : index
    %c0_64 = arith.constant 0 : index
    %92 = vector.load %arg10[%c0_61, %c1_62, %c0_63, %c0_64] : memref<1x4x128x32xf32, #tpu.memory_space<vmem>>, vector<1x1x128x32xf32>
    %93 = vector.shape_cast %92 : vector<1x1x128x32xf32> to vector<128x32xf32>
    %94 = arith.truncf %93 : vector<128x32xf32> to vector<128x32xbf16>
    %cst_65 = arith.constant dense<0.000000e+00> : vector<8x32xf32>
    %95 = tpu.matmul %32, %94, %cst_65 {dimension_numbers = #tpu.dot_dimension_numbers<[1], [0], [0], [1], [0, 0, 1, 1], [], []>} : vector<8x128xbf16>, vector<128x32xbf16>, vector<8x32xf32> -> vector<8x32xf32>
    %c0_66 = arith.constant 0 : index
    %c1_67 = arith.constant 1 : index
    %c0_68 = arith.constant 0 : index
    %c0_69 = arith.constant 0 : index
    %96 = vector.load %arg11[%c0_66, %c1_67, %c0_68, %c0_69] : memref<1x4x1x32xf32, #tpu.memory_space<vmem>>, vector<1x1x1x32xf32>
    %97 = vector.shape_cast %96 : vector<1x1x1x32xf32> to vector<1x32xf32>
    %98 = vector.broadcast %97 : vector<1x32xf32> to vector<8x32xf32>
    %99 = arith.addf %95, %98 : vector<8x32xf32>
    %c0_70 = arith.constant 0 : index
    %c1_71 = arith.constant 1 : index
    %c0_72 = arith.constant 0 : index
    %c0_73 = arith.constant 0 : index
    %100 = vector.load %arg12[%c0_70, %c1_71, %c0_72, %c0_73] : memref<1x4x128x32xf32, #tpu.memory_space<vmem>>, vector<1x1x128x32xf32>
    %101 = vector.shape_cast %100 : vector<1x1x128x32xf32> to vector<128x32xf32>
    %102 = arith.truncf %101 : vector<128x32xf32> to vector<128x32xbf16>
    %cst_74 = arith.constant dense<0.000000e+00> : vector<8x32xf32>
    %103 = tpu.matmul %32, %102, %cst_74 {dimension_numbers = #tpu.dot_dimension_numbers<[1], [0], [0], [1], [0, 0, 1, 1], [], []>} : vector<8x128xbf16>, vector<128x32xbf16>, vector<8x32xf32> -> vector<8x32xf32>
    %c0_75 = arith.constant 0 : index
    %c1_76 = arith.constant 1 : index
    %c0_77 = arith.constant 0 : index
    %c0_78 = arith.constant 0 : index
    %104 = vector.load %arg13[%c0_75, %c1_76, %c0_77, %c0_78] : memref<1x4x1x32xf32, #tpu.memory_space<vmem>>, vector<1x1x1x32xf32>
    %105 = vector.shape_cast %104 : vector<1x1x1x32xf32> to vector<1x32xf32>
    %106 = vector.broadcast %105 : vector<1x32xf32> to vector<8x32xf32>
    %107 = arith.addf %103, %106 : vector<8x32xf32>
    %108 = arith.truncf %91 : vector<8x32xf32> to vector<8x32xbf16>
    %109 = arith.truncf %99 : vector<8x32xf32> to vector<8x32xbf16>
    %cst_79 = arith.constant dense<0.000000e+00> : vector<8x8xf32>
    %110 = tpu.matmul %108, %109, %cst_79 {dimension_numbers = #tpu.dot_dimension_numbers<[1], [1], [0], [0], [0, 0, 1, 0], [], []>} : vector<8x32xbf16>, vector<8x32xbf16>, vector<8x8xf32> -> vector<8x8xf32>
    %111 = vector.broadcast %5 : vector<1x8xf32> to vector<8x8xf32>
    %112 = arith.addf %110, %111 : vector<8x8xf32>
    %cst_80 = arith.constant dense<0xFF800000> : vector<8xf32>
    %113 = vector.multi_reduction <maximumf>, %112, %cst_80 [1] : vector<8x8xf32> to vector<8xf32>
    %114 = vector.shape_cast %113 : vector<8xf32> to vector<8x1xf32>
    %115 = vector.broadcast %114 : vector<8x1xf32> to vector<8x8xf32>
    %116 = arith.subf %112, %115 : vector<8x8xf32>
    %117 = math.exp %116 : vector<8x8xf32>
    %cst_81 = arith.constant dense<0.000000e+00> : vector<8xf32>
    %118 = vector.multi_reduction <add>, %117, %cst_81 [1] : vector<8x8xf32> to vector<8xf32>
    %119 = vector.shape_cast %118 : vector<8xf32> to vector<8x1xf32>
    %120 = tpu.reciprocal %119 {approx = true} : vector<8x1xf32> -> vector<8x1xf32>
    %121 = vector.broadcast %120 : vector<8x1xf32> to vector<8x8xf32>
    %122 = arith.mulf %117, %121 : vector<8x8xf32>
    %123 = arith.truncf %122 : vector<8x8xf32> to vector<8x8xbf16>
    %124 = arith.truncf %107 : vector<8x32xf32> to vector<8x32xbf16>
    %cst_82 = arith.constant dense<0.000000e+00> : vector<8x32xf32>
    %125 = tpu.matmul %123, %124, %cst_82 {dimension_numbers = #tpu.dot_dimension_numbers<[1], [0], [0], [1], [0, 0, 1, 1], [], []>} : vector<8x8xbf16>, vector<8x32xbf16>, vector<8x32xf32> -> vector<8x32xf32>
    %126 = arith.truncf %125 : vector<8x32xf32> to vector<8x32xbf16>
    %c0_83 = arith.constant 0 : index
    %c1_84 = arith.constant 1 : index
    %c0_85 = arith.constant 0 : index
    %c0_86 = arith.constant 0 : index
    %127 = vector.load %arg14[%c0_83, %c1_84, %c0_85, %c0_86] : memref<1x4x32x128xf32, #tpu.memory_space<vmem>>, vector<1x1x32x128xf32>
    %128 = vector.shape_cast %127 : vector<1x1x32x128xf32> to vector<32x128xf32>
    %129 = arith.truncf %128 : vector<32x128xf32> to vector<32x128xbf16>
    %cst_87 = arith.constant dense<0.000000e+00> : vector<8x128xf32>
    %130 = tpu.matmul %126, %129, %cst_87 {dimension_numbers = #tpu.dot_dimension_numbers<[1], [0], [0], [1], [0, 0, 1, 1], [], []>} : vector<8x32xbf16>, vector<32x128xbf16>, vector<8x128xf32> -> vector<8x128xf32>
    %131 = arith.addf %81, %130 : vector<8x128xf32>
    %c0_88 = arith.constant 0 : index
    %c2 = arith.constant 2 : index
    %c0_89 = arith.constant 0 : index
    %c0_90 = arith.constant 0 : index
    %132 = vector.load %arg8[%c0_88, %c2, %c0_89, %c0_90] : memref<1x4x128x32xf32, #tpu.memory_space<vmem>>, vector<1x1x128x32xf32>
    %133 = vector.shape_cast %132 : vector<1x1x128x32xf32> to vector<128x32xf32>
    %134 = arith.truncf %133 : vector<128x32xf32> to vector<128x32xbf16>
    %cst_91 = arith.constant dense<0.000000e+00> : vector<8x32xf32>
    %135 = tpu.matmul %32, %134, %cst_91 {dimension_numbers = #tpu.dot_dimension_numbers<[1], [0], [0], [1], [0, 0, 1, 1], [], []>} : vector<8x128xbf16>, vector<128x32xbf16>, vector<8x32xf32> -> vector<8x32xf32>
    %c0_92 = arith.constant 0 : index
    %c2_93 = arith.constant 2 : index
    %c0_94 = arith.constant 0 : index
    %c0_95 = arith.constant 0 : index
    %136 = vector.load %arg9[%c0_92, %c2_93, %c0_94, %c0_95] : memref<1x4x1x32xf32, #tpu.memory_space<vmem>>, vector<1x1x1x32xf32>
    %137 = vector.shape_cast %136 : vector<1x1x1x32xf32> to vector<1x32xf32>
    %138 = vector.broadcast %137 : vector<1x32xf32> to vector<8x32xf32>
    %139 = arith.addf %135, %138 : vector<8x32xf32>
    %cst_96 = arith.constant 0.176776692 : f32
    %140 = vector.broadcast %cst_96 : f32 to vector<8x32xf32>
    %141 = arith.mulf %139, %140 : vector<8x32xf32>
    %c0_97 = arith.constant 0 : index
    %c2_98 = arith.constant 2 : index
    %c0_99 = arith.constant 0 : index
    %c0_100 = arith.constant 0 : index
    %142 = vector.load %arg10[%c0_97, %c2_98, %c0_99, %c0_100] : memref<1x4x128x32xf32, #tpu.memory_space<vmem>>, vector<1x1x128x32xf32>
    %143 = vector.shape_cast %142 : vector<1x1x128x32xf32> to vector<128x32xf32>
    %144 = arith.truncf %143 : vector<128x32xf32> to vector<128x32xbf16>
    %cst_101 = arith.constant dense<0.000000e+00> : vector<8x32xf32>
    %145 = tpu.matmul %32, %144, %cst_101 {dimension_numbers = #tpu.dot_dimension_numbers<[1], [0], [0], [1], [0, 0, 1, 1], [], []>} : vector<8x128xbf16>, vector<128x32xbf16>, vector<8x32xf32> -> vector<8x32xf32>
    %c0_102 = arith.constant 0 : index
    %c2_103 = arith.constant 2 : index
    %c0_104 = arith.constant 0 : index
    %c0_105 = arith.constant 0 : index
    %146 = vector.load %arg11[%c0_102, %c2_103, %c0_104, %c0_105] : memref<1x4x1x32xf32, #tpu.memory_space<vmem>>, vector<1x1x1x32xf32>
    %147 = vector.shape_cast %146 : vector<1x1x1x32xf32> to vector<1x32xf32>
    %148 = vector.broadcast %147 : vector<1x32xf32> to vector<8x32xf32>
    %149 = arith.addf %145, %148 : vector<8x32xf32>
    %c0_106 = arith.constant 0 : index
    %c2_107 = arith.constant 2 : index
    %c0_108 = arith.constant 0 : index
    %c0_109 = arith.constant 0 : index
    %150 = vector.load %arg12[%c0_106, %c2_107, %c0_108, %c0_109] : memref<1x4x128x32xf32, #tpu.memory_space<vmem>>, vector<1x1x128x32xf32>
    %151 = vector.shape_cast %150 : vector<1x1x128x32xf32> to vector<128x32xf32>
    %152 = arith.truncf %151 : vector<128x32xf32> to vector<128x32xbf16>
    %cst_110 = arith.constant dense<0.000000e+00> : vector<8x32xf32>
    %153 = tpu.matmul %32, %152, %cst_110 {dimension_numbers = #tpu.dot_dimension_numbers<[1], [0], [0], [1], [0, 0, 1, 1], [], []>} : vector<8x128xbf16>, vector<128x32xbf16>, vector<8x32xf32> -> vector<8x32xf32>
    %c0_111 = arith.constant 0 : index
    %c2_112 = arith.constant 2 : index
    %c0_113 = arith.constant 0 : index
    %c0_114 = arith.constant 0 : index
    %154 = vector.load %arg13[%c0_111, %c2_112, %c0_113, %c0_114] : memref<1x4x1x32xf32, #tpu.memory_space<vmem>>, vector<1x1x1x32xf32>
    %155 = vector.shape_cast %154 : vector<1x1x1x32xf32> to vector<1x32xf32>
    %156 = vector.broadcast %155 : vector<1x32xf32> to vector<8x32xf32>
    %157 = arith.addf %153, %156 : vector<8x32xf32>
    %158 = arith.truncf %141 : vector<8x32xf32> to vector<8x32xbf16>
    %159 = arith.truncf %149 : vector<8x32xf32> to vector<8x32xbf16>
    %cst_115 = arith.constant dense<0.000000e+00> : vector<8x8xf32>
    %160 = tpu.matmul %158, %159, %cst_115 {dimension_numbers = #tpu.dot_dimension_numbers<[1], [1], [0], [0], [0, 0, 1, 0], [], []>} : vector<8x32xbf16>, vector<8x32xbf16>, vector<8x8xf32> -> vector<8x8xf32>
    %161 = vector.broadcast %5 : vector<1x8xf32> to vector<8x8xf32>
    %162 = arith.addf %160, %161 : vector<8x8xf32>
    %cst_116 = arith.constant dense<0xFF800000> : vector<8xf32>
    %163 = vector.multi_reduction <maximumf>, %162, %cst_116 [1] : vector<8x8xf32> to vector<8xf32>
    %164 = vector.shape_cast %163 : vector<8xf32> to vector<8x1xf32>
    %165 = vector.broadcast %164 : vector<8x1xf32> to vector<8x8xf32>
    %166 = arith.subf %162, %165 : vector<8x8xf32>
    %167 = math.exp %166 : vector<8x8xf32>
    %cst_117 = arith.constant dense<0.000000e+00> : vector<8xf32>
    %168 = vector.multi_reduction <add>, %167, %cst_117 [1] : vector<8x8xf32> to vector<8xf32>
    %169 = vector.shape_cast %168 : vector<8xf32> to vector<8x1xf32>
    %170 = tpu.reciprocal %169 {approx = true} : vector<8x1xf32> -> vector<8x1xf32>
    %171 = vector.broadcast %170 : vector<8x1xf32> to vector<8x8xf32>
    %172 = arith.mulf %167, %171 : vector<8x8xf32>
    %173 = arith.truncf %172 : vector<8x8xf32> to vector<8x8xbf16>
    %174 = arith.truncf %157 : vector<8x32xf32> to vector<8x32xbf16>
    %cst_118 = arith.constant dense<0.000000e+00> : vector<8x32xf32>
    %175 = tpu.matmul %173, %174, %cst_118 {dimension_numbers = #tpu.dot_dimension_numbers<[1], [0], [0], [1], [0, 0, 1, 1], [], []>} : vector<8x8xbf16>, vector<8x32xbf16>, vector<8x32xf32> -> vector<8x32xf32>
    %176 = arith.truncf %175 : vector<8x32xf32> to vector<8x32xbf16>
    %c0_119 = arith.constant 0 : index
    %c2_120 = arith.constant 2 : index
    %c0_121 = arith.constant 0 : index
    %c0_122 = arith.constant 0 : index
    %177 = vector.load %arg14[%c0_119, %c2_120, %c0_121, %c0_122] : memref<1x4x32x128xf32, #tpu.memory_space<vmem>>, vector<1x1x32x128xf32>
    %178 = vector.shape_cast %177 : vector<1x1x32x128xf32> to vector<32x128xf32>
    %179 = arith.truncf %178 : vector<32x128xf32> to vector<32x128xbf16>
    %cst_123 = arith.constant dense<0.000000e+00> : vector<8x128xf32>
    %180 = tpu.matmul %176, %179, %cst_123 {dimension_numbers = #tpu.dot_dimension_numbers<[1], [0], [0], [1], [0, 0, 1, 1], [], []>} : vector<8x32xbf16>, vector<32x128xbf16>, vector<8x128xf32> -> vector<8x128xf32>
    %181 = arith.addf %131, %180 : vector<8x128xf32>
    %c0_124 = arith.constant 0 : index
    %c3 = arith.constant 3 : index
    %c0_125 = arith.constant 0 : index
    %c0_126 = arith.constant 0 : index
    %182 = vector.load %arg8[%c0_124, %c3, %c0_125, %c0_126] : memref<1x4x128x32xf32, #tpu.memory_space<vmem>>, vector<1x1x128x32xf32>
    %183 = vector.shape_cast %182 : vector<1x1x128x32xf32> to vector<128x32xf32>
    %184 = arith.truncf %183 : vector<128x32xf32> to vector<128x32xbf16>
    %cst_127 = arith.constant dense<0.000000e+00> : vector<8x32xf32>
    %185 = tpu.matmul %32, %184, %cst_127 {dimension_numbers = #tpu.dot_dimension_numbers<[1], [0], [0], [1], [0, 0, 1, 1], [], []>} : vector<8x128xbf16>, vector<128x32xbf16>, vector<8x32xf32> -> vector<8x32xf32>
    %c0_128 = arith.constant 0 : index
    %c3_129 = arith.constant 3 : index
    %c0_130 = arith.constant 0 : index
    %c0_131 = arith.constant 0 : index
    %186 = vector.load %arg9[%c0_128, %c3_129, %c0_130, %c0_131] : memref<1x4x1x32xf32, #tpu.memory_space<vmem>>, vector<1x1x1x32xf32>
    %187 = vector.shape_cast %186 : vector<1x1x1x32xf32> to vector<1x32xf32>
    %188 = vector.broadcast %187 : vector<1x32xf32> to vector<8x32xf32>
    %189 = arith.addf %185, %188 : vector<8x32xf32>
    %cst_132 = arith.constant 0.176776692 : f32
    %190 = vector.broadcast %cst_132 : f32 to vector<8x32xf32>
    %191 = arith.mulf %189, %190 : vector<8x32xf32>
    %c0_133 = arith.constant 0 : index
    %c3_134 = arith.constant 3 : index
    %c0_135 = arith.constant 0 : index
    %c0_136 = arith.constant 0 : index
    %192 = vector.load %arg10[%c0_133, %c3_134, %c0_135, %c0_136] : memref<1x4x128x32xf32, #tpu.memory_space<vmem>>, vector<1x1x128x32xf32>
    %193 = vector.shape_cast %192 : vector<1x1x128x32xf32> to vector<128x32xf32>
    %194 = arith.truncf %193 : vector<128x32xf32> to vector<128x32xbf16>
    %cst_137 = arith.constant dense<0.000000e+00> : vector<8x32xf32>
    %195 = tpu.matmul %32, %194, %cst_137 {dimension_numbers = #tpu.dot_dimension_numbers<[1], [0], [0], [1], [0, 0, 1, 1], [], []>} : vector<8x128xbf16>, vector<128x32xbf16>, vector<8x32xf32> -> vector<8x32xf32>
    %c0_138 = arith.constant 0 : index
    %c3_139 = arith.constant 3 : index
    %c0_140 = arith.constant 0 : index
    %c0_141 = arith.constant 0 : index
    %196 = vector.load %arg11[%c0_138, %c3_139, %c0_140, %c0_141] : memref<1x4x1x32xf32, #tpu.memory_space<vmem>>, vector<1x1x1x32xf32>
    %197 = vector.shape_cast %196 : vector<1x1x1x32xf32> to vector<1x32xf32>
    %198 = vector.broadcast %197 : vector<1x32xf32> to vector<8x32xf32>
    %199 = arith.addf %195, %198 : vector<8x32xf32>
    %c0_142 = arith.constant 0 : index
    %c3_143 = arith.constant 3 : index
    %c0_144 = arith.constant 0 : index
    %c0_145 = arith.constant 0 : index
    %200 = vector.load %arg12[%c0_142, %c3_143, %c0_144, %c0_145] : memref<1x4x128x32xf32, #tpu.memory_space<vmem>>, vector<1x1x128x32xf32>
    %201 = vector.shape_cast %200 : vector<1x1x128x32xf32> to vector<128x32xf32>
    %202 = arith.truncf %201 : vector<128x32xf32> to vector<128x32xbf16>
    %cst_146 = arith.constant dense<0.000000e+00> : vector<8x32xf32>
    %203 = tpu.matmul %32, %202, %cst_146 {dimension_numbers = #tpu.dot_dimension_numbers<[1], [0], [0], [1], [0, 0, 1, 1], [], []>} : vector<8x128xbf16>, vector<128x32xbf16>, vector<8x32xf32> -> vector<8x32xf32>
    %c0_147 = arith.constant 0 : index
    %c3_148 = arith.constant 3 : index
    %c0_149 = arith.constant 0 : index
    %c0_150 = arith.constant 0 : index
    %204 = vector.load %arg13[%c0_147, %c3_148, %c0_149, %c0_150] : memref<1x4x1x32xf32, #tpu.memory_space<vmem>>, vector<1x1x1x32xf32>
    %205 = vector.shape_cast %204 : vector<1x1x1x32xf32> to vector<1x32xf32>
    %206 = vector.broadcast %205 : vector<1x32xf32> to vector<8x32xf32>
    %207 = arith.addf %203, %206 : vector<8x32xf32>
    %208 = arith.truncf %191 : vector<8x32xf32> to vector<8x32xbf16>
    %209 = arith.truncf %199 : vector<8x32xf32> to vector<8x32xbf16>
    %cst_151 = arith.constant dense<0.000000e+00> : vector<8x8xf32>
    %210 = tpu.matmul %208, %209, %cst_151 {dimension_numbers = #tpu.dot_dimension_numbers<[1], [1], [0], [0], [0, 0, 1, 0], [], []>} : vector<8x32xbf16>, vector<8x32xbf16>, vector<8x8xf32> -> vector<8x8xf32>
    %211 = vector.broadcast %5 : vector<1x8xf32> to vector<8x8xf32>
    %212 = arith.addf %210, %211 : vector<8x8xf32>
    %cst_152 = arith.constant dense<0xFF800000> : vector<8xf32>
    %213 = vector.multi_reduction <maximumf>, %212, %cst_152 [1] : vector<8x8xf32> to vector<8xf32>
    %214 = vector.shape_cast %213 : vector<8xf32> to vector<8x1xf32>
    %215 = vector.broadcast %214 : vector<8x1xf32> to vector<8x8xf32>
    %216 = arith.subf %212, %215 : vector<8x8xf32>
    %217 = math.exp %216 : vector<8x8xf32>
    %cst_153 = arith.constant dense<0.000000e+00> : vector<8xf32>
    %218 = vector.multi_reduction <add>, %217, %cst_153 [1] : vector<8x8xf32> to vector<8xf32>
    %219 = vector.shape_cast %218 : vector<8xf32> to vector<8x1xf32>
    %220 = tpu.reciprocal %219 {approx = true} : vector<8x1xf32> -> vector<8x1xf32>
    %221 = vector.broadcast %220 : vector<8x1xf32> to vector<8x8xf32>
    %222 = arith.mulf %217, %221 : vector<8x8xf32>
    %223 = arith.truncf %222 : vector<8x8xf32> to vector<8x8xbf16>
    %224 = arith.truncf %207 : vector<8x32xf32> to vector<8x32xbf16>
    %cst_154 = arith.constant dense<0.000000e+00> : vector<8x32xf32>
    %225 = tpu.matmul %223, %224, %cst_154 {dimension_numbers = #tpu.dot_dimension_numbers<[1], [0], [0], [1], [0, 0, 1, 1], [], []>} : vector<8x8xbf16>, vector<8x32xbf16>, vector<8x32xf32> -> vector<8x32xf32>
    %226 = arith.truncf %225 : vector<8x32xf32> to vector<8x32xbf16>
    %c0_155 = arith.constant 0 : index
    %c3_156 = arith.constant 3 : index
    %c0_157 = arith.constant 0 : index
    %c0_158 = arith.constant 0 : index
    %227 = vector.load %arg14[%c0_155, %c3_156, %c0_157, %c0_158] : memref<1x4x32x128xf32, #tpu.memory_space<vmem>>, vector<1x1x32x128xf32>
    %228 = vector.shape_cast %227 : vector<1x1x32x128xf32> to vector<32x128xf32>
    %229 = arith.truncf %228 : vector<32x128xf32> to vector<32x128xbf16>
    %cst_159 = arith.constant dense<0.000000e+00> : vector<8x128xf32>
    %230 = tpu.matmul %226, %229, %cst_159 {dimension_numbers = #tpu.dot_dimension_numbers<[1], [0], [0], [1], [0, 0, 1, 1], [], []>} : vector<8x32xbf16>, vector<32x128xbf16>, vector<8x128xf32> -> vector<8x128xf32>
    %231 = arith.addf %181, %230 : vector<8x128xf32>
    %232 = arith.addf %3, %231 : vector<8x128xf32>
    %c0_160 = arith.constant 0 : index
    %c0_161 = arith.constant 0 : index
    %c0_162 = arith.constant 0 : index
    %233 = vector.load %arg15[%c0_160, %c0_161, %c0_162] : memref<1x1x128xf32, #tpu.memory_space<vmem>>, vector<1x1x128xf32>
    %234 = vector.shape_cast %233 : vector<1x1x128xf32> to vector<1x128xf32>
    %235 = vector.broadcast %234 : vector<1x128xf32> to vector<8x128xf32>
    %236 = arith.addf %232, %235 : vector<8x128xf32>
    %c0_163 = arith.constant 0 : index
    %c0_164 = arith.constant 0 : index
    %c0_165 = arith.constant 0 : index
    %237 = vector.load %arg16[%c0_163, %c0_164, %c0_165] : memref<1x1x128xf32, #tpu.memory_space<vmem>>, vector<1x1x128xf32>
    %238 = vector.shape_cast %237 : vector<1x1x128xf32> to vector<1x128xf32>
    %c0_166 = arith.constant 0 : index
    %c0_167 = arith.constant 0 : index
    %c0_168 = arith.constant 0 : index
    %239 = vector.load %arg17[%c0_166, %c0_167, %c0_168] : memref<1x1x128xf32, #tpu.memory_space<vmem>>, vector<1x1x128xf32>
    %240 = vector.shape_cast %239 : vector<1x1x128xf32> to vector<1x128xf32>
    %cst_169 = arith.constant dense<0.000000e+00> : vector<8xf32>
    %241 = vector.multi_reduction <add>, %236, %cst_169 [1] : vector<8x128xf32> to vector<8xf32>
    %242 = vector.shape_cast %241 : vector<8xf32> to vector<8x1xf32>
    %cst_170 = arith.constant 1.280000e+02 : f32
    %243 = vector.broadcast %cst_170 : f32 to vector<8x1xf32>
    %244 = arith.divf %242, %243 : vector<8x1xf32>
    %245 = vector.broadcast %244 : vector<8x1xf32> to vector<8x128xf32>
    %246 = arith.subf %236, %245 : vector<8x128xf32>
    %247 = arith.mulf %246, %246 : vector<8x128xf32>
    %cst_171 = arith.constant dense<0.000000e+00> : vector<8xf32>
    %248 = vector.multi_reduction <add>, %247, %cst_171 [1] : vector<8x128xf32> to vector<8xf32>
    %249 = vector.shape_cast %248 : vector<8xf32> to vector<8x1xf32>
    %cst_172 = arith.constant 1.280000e+02 : f32
    %250 = vector.broadcast %cst_172 : f32 to vector<8x1xf32>
    %251 = arith.divf %249, %250 : vector<8x1xf32>
    %252 = vector.broadcast %244 : vector<8x1xf32> to vector<8x128xf32>
    %253 = arith.subf %236, %252 : vector<8x128xf32>
    %cst_173 = arith.constant 9.99999974E-6 : f32
    %254 = vector.broadcast %cst_173 : f32 to vector<8x1xf32>
    %255 = arith.addf %251, %254 : vector<8x1xf32>
    %256 = math.rsqrt %255 : vector<8x1xf32>
    %257 = vector.broadcast %256 : vector<8x1xf32> to vector<8x128xf32>
    %258 = arith.mulf %253, %257 : vector<8x128xf32>
    %259 = vector.broadcast %238 : vector<1x128xf32> to vector<8x128xf32>
    %260 = arith.mulf %258, %259 : vector<8x128xf32>
    %261 = vector.broadcast %240 : vector<1x128xf32> to vector<8x128xf32>
    %262 = arith.addf %260, %261 : vector<8x128xf32>
    %263 = arith.truncf %262 : vector<8x128xf32> to vector<8x128xbf16>
    %c0_174 = arith.constant 0 : index
    %c0_175 = arith.constant 0 : index
    %c0_176 = arith.constant 0 : index
    %264 = vector.load %arg18[%c0_174, %c0_175, %c0_176] : memref<1x128x256xf32, #tpu.memory_space<vmem>>, vector<1x128x256xf32>
    %265 = vector.shape_cast %264 : vector<1x128x256xf32> to vector<128x256xf32>
    %266 = arith.truncf %265 : vector<128x256xf32> to vector<128x256xbf16>
    %cst_177 = arith.constant dense<0.000000e+00> : vector<8x256xf32>
    %267 = tpu.matmul %263, %266, %cst_177 {dimension_numbers = #tpu.dot_dimension_numbers<[1], [0], [0], [1], [0, 0, 1, 1], [], []>} : vector<8x128xbf16>, vector<128x256xbf16>, vector<8x256xf32> -> vector<8x256xf32>
    %c0_178 = arith.constant 0 : index
    %c0_179 = arith.constant 0 : index
    %c0_180 = arith.constant 0 : index
    %268 = vector.load %arg19[%c0_178, %c0_179, %c0_180] : memref<1x1x256xf32, #tpu.memory_space<vmem>>, vector<1x1x256xf32>
    %269 = vector.shape_cast %268 : vector<1x1x256xf32> to vector<1x256xf32>
    %270 = vector.broadcast %269 : vector<1x256xf32> to vector<8x256xf32>
    %271 = arith.addf %267, %270 : vector<8x256xf32>
    %cst_181 = arith.constant 0.000000e+00 : f32
    %272 = vector.broadcast %cst_181 : f32 to vector<8x256xf32>
    %273 = arith.maximumf %271, %272 : vector<8x256xf32>
    %274 = arith.truncf %273 : vector<8x256xf32> to vector<8x256xbf16>
    %c0_182 = arith.constant 0 : index
    %c0_183 = arith.constant 0 : index
    %c0_184 = arith.constant 0 : index
    %275 = vector.load %arg20[%c0_182, %c0_183, %c0_184] : memref<1x256x128xf32, #tpu.memory_space<vmem>>, vector<1x256x128xf32>
    %276 = vector.shape_cast %275 : vector<1x256x128xf32> to vector<256x128xf32>
    %277 = arith.truncf %276 : vector<256x128xf32> to vector<256x128xbf16>
    %cst_185 = arith.constant dense<0.000000e+00> : vector<8x128xf32>
    %278 = tpu.matmul %274, %277, %cst_185 {dimension_numbers = #tpu.dot_dimension_numbers<[1], [0], [0], [1], [0, 0, 1, 1], [], []>} : vector<8x256xbf16>, vector<256x128xbf16>, vector<8x128xf32> -> vector<8x128xf32>
    %279 = arith.addf %236, %278 : vector<8x128xf32>
    %c0_186 = arith.constant 0 : index
    %c0_187 = arith.constant 0 : index
    %c0_188 = arith.constant 0 : index
    %280 = vector.load %arg21[%c0_186, %c0_187, %c0_188] : memref<1x1x128xf32, #tpu.memory_space<vmem>>, vector<1x1x128xf32>
    %281 = vector.shape_cast %280 : vector<1x1x128xf32> to vector<1x128xf32>
    %282 = vector.broadcast %281 : vector<1x128xf32> to vector<8x128xf32>
    %283 = arith.addf %279, %282 : vector<8x128xf32>
    %c0_189 = arith.constant 0 : index
    %c0_190 = arith.constant 0 : index
    %284 = vector.load %arg25[%c0_189, %c0_190] : memref<8x128xf32, #tpu.memory_space<vmem>>, vector<8x128xf32>
    tpu.vector_store %arg25[%c0_189, %c0_190], %283 {strides = array<i32>} : memref<8x128xf32, #tpu.memory_space<vmem>>, vector<8x128xf32>,
    %c1_i32 = arith.constant 1 : i32
    %285 = arith.cmpi eq, %arg1, %c1_i32 : i32
    %286 = arith.extui %285 : i1 to i32
    %c0_i32_191 = arith.constant 0 : i32
    %287 = arith.cmpi ne, %286, %c0_i32_191 : i32
    scf.if %287 {
      %c0_194 = arith.constant 0 : index
      %c0_195 = arith.constant 0 : index
      %291 = vector.load %arg22[%c0_194, %c0_195] : memref<1x128xf32, #tpu.memory_space<vmem>>, vector<1x128xf32>
      %c0_196 = arith.constant 0 : index
      %c0_197 = arith.constant 0 : index
      %292 = vector.load %arg23[%c0_196, %c0_197] : memref<1x128xf32, #tpu.memory_space<vmem>>, vector<1x128xf32>
      %cst_198 = arith.constant dense<0.000000e+00> : vector<8xf32>
      %293 = vector.multi_reduction <add>, %283, %cst_198 [1] : vector<8x128xf32> to vector<8xf32>
      %294 = vector.shape_cast %293 : vector<8xf32> to vector<8x1xf32>
      %cst_199 = arith.constant 1.280000e+02 : f32
      %295 = vector.broadcast %cst_199 : f32 to vector<8x1xf32>
      %296 = arith.divf %294, %295 : vector<8x1xf32>
      %297 = vector.broadcast %296 : vector<8x1xf32> to vector<8x128xf32>
      %298 = arith.subf %283, %297 : vector<8x128xf32>
      %299 = arith.mulf %298, %298 : vector<8x128xf32>
      %cst_200 = arith.constant dense<0.000000e+00> : vector<8xf32>
      %300 = vector.multi_reduction <add>, %299, %cst_200 [1] : vector<8x128xf32> to vector<8xf32>
      %301 = vector.shape_cast %300 : vector<8xf32> to vector<8x1xf32>
      %cst_201 = arith.constant 1.280000e+02 : f32
      %302 = vector.broadcast %cst_201 : f32 to vector<8x1xf32>
      %303 = arith.divf %301, %302 : vector<8x1xf32>
      %304 = vector.broadcast %296 : vector<8x1xf32> to vector<8x128xf32>
      %305 = arith.subf %283, %304 : vector<8x128xf32>
      %cst_202 = arith.constant 9.99999974E-6 : f32
      %306 = vector.broadcast %cst_202 : f32 to vector<8x1xf32>
      %307 = arith.addf %303, %306 : vector<8x1xf32>
      %308 = math.rsqrt %307 : vector<8x1xf32>
      %309 = vector.broadcast %308 : vector<8x1xf32> to vector<8x128xf32>
      %310 = arith.mulf %305, %309 : vector<8x128xf32>
      %311 = vector.broadcast %291 : vector<1x128xf32> to vector<8x128xf32>
      %312 = arith.mulf %310, %311 : vector<8x128xf32>
      %313 = vector.broadcast %292 : vector<1x128xf32> to vector<8x128xf32>
      %314 = arith.addf %312, %313 : vector<8x128xf32>
      %c0_203 = arith.constant 0 : index
      %c0_204 = arith.constant 0 : index
      %c0_205 = arith.constant 0 : index
      %315 = vector.load %arg24[%c0_203, %c0_204, %c0_205] : memref<1x8x128xf32, #tpu.memory_space<vmem>>, vector<1x8x128xf32>
      %316 = vector.shape_cast %315 : vector<1x8x128xf32> to vector<8x128xf32>
      %317 = vector.shape_cast %314 : vector<8x128xf32> to vector<1x8x128xf32>
      tpu.vector_store %arg24[%c0_203, %c0_204, %c0_205], %317 {strides = array<i32>} : memref<1x8x128xf32, #tpu.memory_space<vmem>>, vector<1x8x128xf32>,
    } else {
    }
    %c1_i32_192 = arith.constant 1 : i32
    %288 = arith.cmpi slt, %arg1, %c1_i32_192 : i32
    %289 = arith.extui %288 : i1 to i32
    %c0_i32_193 = arith.constant 0 : i32
    %290 = arith.cmpi ne, %289, %c0_i32_193 : i32
    scf.if %290 {
      %c0_194 = arith.constant 0 : index
      %c0_195 = arith.constant 0 : index
      %c0_196 = arith.constant 0 : index
      %291 = vector.load %arg24[%c0_194, %c0_195, %c0_196] : memref<1x8x128xf32, #tpu.memory_space<vmem>>, vector<1x8x128xf32>
      %292 = vector.shape_cast %291 : vector<1x8x128xf32> to vector<8x128xf32>
      %293 = vector.shape_cast %283 : vector<8x128xf32> to vector<1x8x128xf32>
      tpu.vector_store %arg24[%c0_194, %c0_195, %c0_196], %293 {strides = array<i32>} : memref<1x8x128xf32, #tpu.memory_space<vmem>>, vector<1x8x128xf32>,
    } else {
    }
    return
  }
  func.func @transform_0(%arg0: i32, %arg1: i32) -> (i32, i32, i32) {
    %c0_i32 = arith.constant 0 : i32
    %c0_i32_0 = arith.constant 0 : i32
    %c0_i32_1 = arith.constant 0 : i32
    return %arg0, %c0_i32, %c0_i32_0 : i32, i32, i32
  }
  func.func @transform_1(%arg0: i32, %arg1: i32) -> (i32, i32, i32) {
    %c0_i32 = arith.constant 0 : i32
    %c0_i32_0 = arith.constant 0 : i32
    %c0_i32_1 = arith.constant 0 : i32
    return %arg0, %c0_i32, %c0_i32_0 : i32, i32, i32
  }
  func.func @transform_2(%arg0: i32, %arg1: i32) -> (i32, i32) {
    %c0_i32 = arith.constant 0 : i32
    %c0_i32_0 = arith.constant 0 : i32
    %c0_i32_1 = arith.constant 0 : i32
    return %c0_i32, %c0_i32_0 : i32, i32
  }
  func.func @transform_3(%arg0: i32, %arg1: i32) -> (i32, i32) {
    %c0_i32 = arith.constant 0 : i32
    %c0_i32_0 = arith.constant 0 : i32
    %c0_i32_1 = arith.constant 0 : i32
    return %c0_i32, %c0_i32_0 : i32, i32
  }
  func.func @transform_4(%arg0: i32, %arg1: i32) -> (i32, i32, i32) {
    %c0_i32 = arith.constant 0 : i32
    %c0_i32_0 = arith.constant 0 : i32
    %c0_i32_1 = arith.constant 0 : i32
    return %arg1, %c0_i32, %c0_i32_0 : i32, i32, i32
  }
  func.func @transform_5(%arg0: i32, %arg1: i32) -> (i32, i32, i32) {
    %c0_i32 = arith.constant 0 : i32
    %c0_i32_0 = arith.constant 0 : i32
    %c0_i32_1 = arith.constant 0 : i32
    return %arg1, %c0_i32, %c0_i32_0 : i32, i32, i32
  }
  func.func @transform_6(%arg0: i32, %arg1: i32) -> (i32, i32, i32, i32) {
    %c0_i32 = arith.constant 0 : i32
    %c0_i32_0 = arith.constant 0 : i32
    %c0_i32_1 = arith.constant 0 : i32
    %c0_i32_2 = arith.constant 0 : i32
    return %arg1, %c0_i32, %c0_i32_0, %c0_i32_1 : i32, i32, i32, i32
  }
  func.func @transform_7(%arg0: i32, %arg1: i32) -> (i32, i32, i32, i32) {
    %c0_i32 = arith.constant 0 : i32
    %c0_i32_0 = arith.constant 0 : i32
    %c0_i32_1 = arith.constant 0 : i32
    %c0_i32_2 = arith.constant 0 : i32
    return %arg1, %c0_i32, %c0_i32_0, %c0_i32_1 : i32, i32, i32, i32
  }
  func.func @transform_8(%arg0: i32, %arg1: i32) -> (i32, i32, i32, i32) {
    %c0_i32 = arith.constant 0 : i32
    %c0_i32_0 = arith.constant 0 : i32
    %c0_i32_1 = arith.constant 0 : i32
    %c0_i32_2 = arith.constant 0 : i32
    return %arg1, %c0_i32, %c0_i32_0, %c0_i32_1 : i32, i32, i32, i32
  }
  func.func @transform_9(%arg0: i32, %arg1: i32) -> (i32, i32, i32, i32) {
    %c0_i32 = arith.constant 0 : i32
    %c0_i32_0 = arith.constant 0 : i32
    %c0_i32_1 = arith.constant 0 : i32
    %c0_i32_2 = arith.constant 0 : i32
    return %arg1, %c0_i32, %c0_i32_0, %c0_i32_1 : i32, i32, i32, i32
  }
  func.func @transform_10(%arg0: i32, %arg1: i32) -> (i32, i32, i32, i32) {
    %c0_i32 = arith.constant 0 : i32
    %c0_i32_0 = arith.constant 0 : i32
    %c0_i32_1 = arith.constant 0 : i32
    %c0_i32_2 = arith.constant 0 : i32
    return %arg1, %c0_i32, %c0_i32_0, %c0_i32_1 : i32, i32, i32, i32
  }
  func.func @transform_11(%arg0: i32, %arg1: i32) -> (i32, i32, i32, i32) {
    %c0_i32 = arith.constant 0 : i32
    %c0_i32_0 = arith.constant 0 : i32
    %c0_i32_1 = arith.constant 0 : i32
    %c0_i32_2 = arith.constant 0 : i32
    return %arg1, %c0_i32, %c0_i32_0, %c0_i32_1 : i32, i32, i32, i32
  }
  func.func @transform_12(%arg0: i32, %arg1: i32) -> (i32, i32, i32, i32) {
    %c0_i32 = arith.constant 0 : i32
    %c0_i32_0 = arith.constant 0 : i32
    %c0_i32_1 = arith.constant 0 : i32
    %c0_i32_2 = arith.constant 0 : i32
    return %arg1, %c0_i32, %c0_i32_0, %c0_i32_1 : i32, i32, i32, i32
  }
  func.func @transform_13(%arg0: i32, %arg1: i32) -> (i32, i32, i32) {
    %c0_i32 = arith.constant 0 : i32
    %c0_i32_0 = arith.constant 0 : i32
    %c0_i32_1 = arith.constant 0 : i32
    return %arg1, %c0_i32, %c0_i32_0 : i32, i32, i32
  }
  func.func @transform_14(%arg0: i32, %arg1: i32) -> (i32, i32, i32) {
    %c0_i32 = arith.constant 0 : i32
    %c0_i32_0 = arith.constant 0 : i32
    %c0_i32_1 = arith.constant 0 : i32
    return %arg1, %c0_i32, %c0_i32_0 : i32, i32, i32
  }
  func.func @transform_15(%arg0: i32, %arg1: i32) -> (i32, i32, i32) {
    %c0_i32 = arith.constant 0 : i32
    %c0_i32_0 = arith.constant 0 : i32
    %c0_i32_1 = arith.constant 0 : i32
    return %arg1, %c0_i32, %c0_i32_0 : i32, i32, i32
  }
  func.func @transform_16(%arg0: i32, %arg1: i32) -> (i32, i32, i32) {
    %c0_i32 = arith.constant 0 : i32
    %c0_i32_0 = arith.constant 0 : i32
    %c0_i32_1 = arith.constant 0 : i32
    return %arg1, %c0_i32, %c0_i32_0 : i32, i32, i32
  }
  func.func @transform_17(%arg0: i32, %arg1: i32) -> (i32, i32, i32) {
    %c0_i32 = arith.constant 0 : i32
    %c0_i32_0 = arith.constant 0 : i32
    %c0_i32_1 = arith.constant 0 : i32
    return %arg1, %c0_i32, %c0_i32_0 : i32, i32, i32
  }
  func.func @transform_18(%arg0: i32, %arg1: i32) -> (i32, i32, i32) {
    %c0_i32 = arith.constant 0 : i32
    %c0_i32_0 = arith.constant 0 : i32
    %c0_i32_1 = arith.constant 0 : i32
    return %arg1, %c0_i32, %c0_i32_0 : i32, i32, i32
  }
  func.func @transform_19(%arg0: i32, %arg1: i32) -> (i32, i32, i32) {
    %c0_i32 = arith.constant 0 : i32
    %c0_i32_0 = arith.constant 0 : i32
    %c0_i32_1 = arith.constant 0 : i32
    return %arg1, %c0_i32, %c0_i32_0 : i32, i32, i32
  }
  func.func @transform_20(%arg0: i32, %arg1: i32) -> (i32, i32) {
    %c0_i32 = arith.constant 0 : i32
    %c0_i32_0 = arith.constant 0 : i32
    %c0_i32_1 = arith.constant 0 : i32
    return %c0_i32, %c0_i32_0 : i32, i32
  }
  func.func @transform_21(%arg0: i32, %arg1: i32) -> (i32, i32) {
    %c0_i32 = arith.constant 0 : i32
    %c0_i32_0 = arith.constant 0 : i32
    %c0_i32_1 = arith.constant 0 : i32
    return %c0_i32, %c0_i32_0 : i32, i32
  }
  func.func @transform_22(%arg0: i32, %arg1: i32) -> (i32, i32, i32) {
    %c0_i32 = arith.constant 0 : i32
    %c0_i32_0 = arith.constant 0 : i32
    %c0_i32_1 = arith.constant 0 : i32
    return %arg0, %c0_i32, %c0_i32_0 : i32, i32, i32
  }
}

</mosaic_0001>

<llo_original>
// kernel: transformer_encoder_forward.1
$region0: #{transformer_encoder_forward.1}
  #allocation0 [shape = 'u32[]', space=smem, size = 0x4, offset = 0x4, fixed_abs, tag = 'smem constant byte address 0x4 - core index']
  #allocation1 [shape = 'u32[144,128]{1,0:T(1,128)}', space=vmem, size = 0x12000, scoped, tag = 'internal scratch']
  #allocation2 [shape = 'f32[8,128]{1,0:T(8,128)}', space=vmem, size = 0x1000, scoped, tag = 'scratch operand']
  %s0 = inlined_call_operand.vmem [shape: f32[2,8,64], index: 0, kind: input, shape index: {}]
  %s1 = inlined_call_operand.vmem [shape: f32[2,1,8], index: 1, kind: input, shape index: {}]
  %s2 = inlined_call_operand.vmem [shape: f32[64,128], index: 2, kind: input, shape index: {}]
  %s3 = inlined_call_operand.vmem [shape: f32[1,128], index: 3, kind: input, shape index: {}]
  %s4 = inlined_call_operand.vmem [shape: f32[2,1,128], index: 4, kind: input, shape index: {}]
  %s5 = inlined_call_operand.vmem [shape: f32[2,1,128], index: 5, kind: input, shape index: {}]
  %s6 = inlined_call_operand.vmem [shape: f32[2,4,128,32], index: 6, kind: input, shape index: {}]
  %s7 = inlined_call_operand.vmem [shape: f32[2,4,1,32], index: 7, kind: input, shape index: {}]
  %s8 = inlined_call_operand.vmem [shape: f32[2,4,128,32], index: 8, kind: input, shape index: {}]
  %s9 = inlined_call_operand.vmem [shape: f32[2,4,1,32], index: 9, kind: input, shape index: {}]
  %s10 = inlined_call_operand.vmem [shape: f32[2,4,128,32], index: 10, kind: input, shape index: {}]
  %s11 = inlined_call_operand.vmem [shape: f32[2,4,1,32], index: 11, kind: input, shape index: {}]
  %s12 = inlined_call_operand.vmem [shape: f32[2,4,32,128], index: 12, kind: input, shape index: {}]
  %s13 = inlined_call_operand.vmem [shape: f32[2,1,128], index: 13, kind: input, shape index: {}]
  %s14 = inlined_call_operand.vmem [shape: f32[2,1,128], index: 14, kind: input, shape index: {}]
  %s15 = inlined_call_operand.vmem [shape: f32[2,1,128], index: 15, kind: input, shape index: {}]
  %s16 = inlined_call_operand.vmem [shape: f32[2,128,256], index: 16, kind: input, shape index: {}]
  %s17 = inlined_call_operand.vmem [shape: f32[2,1,256], index: 17, kind: input, shape index: {}]
  %s18 = inlined_call_operand.vmem [shape: f32[2,256,128], index: 18, kind: input, shape index: {}]
  %s19 = inlined_call_operand.vmem [shape: f32[2,1,128], index: 19, kind: input, shape index: {}]
  %s20 = inlined_call_operand.vmem [shape: f32[1,128], index: 20, kind: input, shape index: {}]
  %s21 = inlined_call_operand.vmem [shape: f32[1,128], index: 21, kind: input, shape index: {}]
  %s22 = inlined_call_operand.vmem [shape: f32[2,8,128], index: 22, kind: output, shape index: {}]
  %s23 = sld [smem:[#allocation0]]
  $region133: #{transformer_encoder_forward.1} parent=0
    _
  %s25 = ssub.s32 1, %s23
  %s26 = scalar_select 0, %s25, %s23
  loop: start=0, step=1, limit=6
  $region2: #{transformer_encoder_forward.1} parent=0 // loop_pre_header
    _
  $region3: #{transformer_encoder_forward.1} parent=0 // loop_header
    %s28 = sphi 0, %s32
    %p29 = scmp.ge.s32.totalorder %s28, 6
    %s35 = sphi 0, %s47
    %s36 = sphi 0, %s43
    %s37 = sphi 0, %s35
    %s38 = sphi 0, %s36
    %s39 = sphi 0, %s37
    %s40 = sphi 0, %s38
    %s50 = sphi 0, %s52
    %s53 = sphi 0, %s50
    %s54 = sphi 0, %s53
    %s70 = sphi 0, %s54
    %s76 = sphi 0, %s78
    %s79 = sphi 0, %s76
    %s80 = sphi 0, %s79
    %s96 = sphi 0, %s80
    %s100 = sphi 0, %s100
    %s102 = sphi 0, %s100
    %s103 = sphi 0, %s102
    %s117 = sphi 0, %s103
    %s121 = sphi 0, %s121
    %s123 = sphi 0, %s121
    %s124 = sphi 0, %s123
    %s138 = sphi 0, %s124
    %s144 = sphi 0, %s146
    %s147 = sphi 0, %s144
    %s148 = sphi 0, %s147
    %s164 = sphi 0, %s148
    %s170 = sphi 0, %s172
    %s173 = sphi 0, %s170
    %s174 = sphi 0, %s173
    %s190 = sphi 0, %s174
    %s196 = sphi 0, %s198
    %s199 = sphi 0, %s196
    %s200 = sphi 0, %s199
    %s216 = sphi 0, %s200
    %s222 = sphi 0, %s224
    %s225 = sphi 0, %s222
    %s226 = sphi 0, %s225
    %s242 = sphi 0, %s226
    %s248 = sphi 0, %s250
    %s251 = sphi 0, %s248
    %s252 = sphi 0, %s251
    %s268 = sphi 0, %s252
    %s274 = sphi 0, %s276
    %s277 = sphi 0, %s274
    %s278 = sphi 0, %s277
    %s294 = sphi 0, %s278
    %s300 = sphi 0, %s302
    %s303 = sphi 0, %s300
    %s304 = sphi 0, %s303
    %s320 = sphi 0, %s304
    %s326 = sphi 0, %s328
    %s329 = sphi 0, %s326
    %s330 = sphi 0, %s329
    %s346 = sphi 0, %s330
    %s352 = sphi 0, %s354
    %s355 = sphi 0, %s352
    %s356 = sphi 0, %s355
    %s372 = sphi 0, %s356
    %s378 = sphi 0, %s380
    %s381 = sphi 0, %s378
    %s382 = sphi 0, %s381
    %s398 = sphi 0, %s382
    %s404 = sphi 0, %s406
    %s407 = sphi 0, %s404
    %s408 = sphi 0, %s407
    %s424 = sphi 0, %s408
    %s430 = sphi 0, %s432
    %s433 = sphi 0, %s430
    %s434 = sphi 0, %s433
    %s450 = sphi 0, %s434
    %s456 = sphi 0, %s458
    %s459 = sphi 0, %s456
    %s460 = sphi 0, %s459
    %s476 = sphi 0, %s460
    %s482 = sphi 0, %s484
    %s485 = sphi 0, %s482
    %s486 = sphi 0, %s485
    %s502 = sphi 0, %s486
    %s508 = sphi 0, %s510
    %s511 = sphi 0, %s508
    %s512 = sphi 0, %s511
    %s528 = sphi 0, %s512
    %s534 = sphi 0, %s536
    %s537 = sphi 0, %s534
    %s538 = sphi 0, %s537
    %s554 = sphi 0, %s538
    %s558 = sphi 0, %s558
    %s560 = sphi 0, %s558
    %s561 = sphi 0, %s560
    %s575 = sphi 0, %s561
    %s579 = sphi 0, %s579
    %s581 = sphi 0, %s579
    %s582 = sphi 0, %s581
    %s596 = sphi 0, %s582
    %s602 = sphi 0, %s604
    %s605 = sphi 0, %s602
    %s606 = sphi 0, %s605
    %s622 = sphi 0, %s606
  $region4: #{transformer_encoder_forward.1} parent=0 // loop_header_branch
    %31 = sbr.rel (%p29) target = $region8
  $region5: #{transformer_encoder_forward.1} parent=0 // loop_body
    %s33 = ssub.s32 %s28, 1
    %s34 = ssub.s32 %s28, 2
    %s41 = sadd.s32 1, %s36
    %p42 = scmp.ge.s32.totalorder %s41, 2
    %s43 = scalar_select %p42, 0, %s41
    %s44 = sadd.s32 1, %s35
    %s45 = scalar_select %p42, %s44, %s35
    %p46 = scmp.ge.s32.totalorder %s45, 2
    %s47 = scalar_select %p46, 0, %s45
    %s48 = ssub.s32 %s35, %s47
    %p49 = scmp.eq.s32.totalorder %s48, 0
    %s51 = sadd.s32 %s50, 1
    %s52 = scalar_select %p49, %s50, %s51
    %p55 = pneg %p49
    %p56 = scmp.eq.s32.totalorder %s28, 3
    %p57 = por %p55, %p56
    %p58 = scmp.ne.s32.totalorder %s50, %s53
    %p59 = scmp.eq.s32.totalorder %s28, 0
    %p60 = por %p58, %p59
    %p61 = scmp.ne.s32.totalorder %s50, %s53
    %p62 = scmp.eq.s32.totalorder %s33, 3
    %p63 = por %p61, %p62
    %p64 = scmp.ne.s32.totalorder %s53, %s54
    %p65 = scmp.eq.s32.totalorder %s33, 0
    %p66 = por %p64, %p65
    %p67 = scmp.ne.s32.totalorder %s53, %s54
    %p68 = scmp.eq.s32.totalorder %s34, 3
    %p69 = por %p67, %p68
    %p71 = scmp.ne.s32.totalorder %s54, %s70
    %p72 = scmp.eq.s32.totalorder %s34, 0
    %p73 = por %p71, %p72
    %s74 = ssub.s32 %s35, %s47
    %p75 = scmp.eq.s32.totalorder %s74, 0
    %s77 = sadd.s32 %s76, 1
    %s78 = scalar_select %p75, %s76, %s77
    %p81 = pneg %p75
    %p82 = scmp.eq.s32.totalorder %s28, 3
    %p83 = por %p81, %p82
    %p84 = scmp.ne.s32.totalorder %s76, %s79
    %p85 = scmp.eq.s32.totalorder %s28, 0
    %p86 = por %p84, %p85
    %p87 = scmp.ne.s32.totalorder %s76, %s79
    %p88 = scmp.eq.s32.totalorder %s33, 3
    %p89 = por %p87, %p88
    %p90 = scmp.ne.s32.totalorder %s79, %s80
    %p91 = scmp.eq.s32.totalorder %s33, 0
    %p92 = por %p90, %p91
    %p93 = scmp.ne.s32.totalorder %s79, %s80
    %p94 = scmp.eq.s32.totalorder %s34, 3
    %p95 = por %p93, %p94
    %p97 = scmp.ne.s32.totalorder %s80, %s96
    %p98 = scmp.eq.s32.totalorder %s34, 0
    %p99 = por %p97, %p98
    %s101 = sadd.s32 %s100, 1
    %p104 = scmp.eq.s32.totalorder %s28, 3
    %p105 = scmp.ne.s32.totalorder %s100, %s102
    %p106 = scmp.eq.s32.totalorder %s28, 0
    %p107 = por %p105, %p106
    %p108 = scmp.ne.s32.totalorder %s100, %s102
    %p109 = scmp.eq.s32.totalorder %s33, 3
    %p110 = por %p108, %p109
    %p111 = scmp.ne.s32.totalorder %s102, %s103
    %p112 = scmp.eq.s32.totalorder %s33, 0
    %p113 = por %p111, %p112
    %p114 = scmp.ne.s32.totalorder %s102, %s103
    %p115 = scmp.eq.s32.totalorder %s34, 3
    %p116 = por %p114, %p115
    %p118 = scmp.ne.s32.totalorder %s103, %s117
    %p119 = scmp.eq.s32.totalorder %s34, 0
    %p120 = por %p118, %p119
    %s122 = sadd.s32 %s121, 1
    %p125 = scmp.eq.s32.totalorder %s28, 3
    %p126 = scmp.ne.s32.totalorder %s121, %s123
    %p127 = scmp.eq.s32.totalorder %s28, 0
    %p128 = por %p126, %p127
    %p129 = scmp.ne.s32.totalorder %s121, %s123
    %p130 = scmp.eq.s32.totalorder %s33, 3
    %p131 = por %p129, %p130
    %p132 = scmp.ne.s32.totalorder %s123, %s124
    %p133 = scmp.eq.s32.totalorder %s33, 0
    %p134 = por %p132, %p133
    %p135 = scmp.ne.s32.totalorder %s123, %s124
    %p136 = scmp.eq.s32.totalorder %s34, 3
    %p137 = por %p135, %p136
    %p139 = scmp.ne.s32.totalorder %s124, %s138
    %p140 = scmp.eq.s32.totalorder %s34, 0
    %p141 = por %p139, %p140
    %s142 = ssub.s32 %s36, %s43
    %p143 = scmp.eq.s32.totalorder %s142, 0
    %s145 = sadd.s32 %s144, 1
    %s146 = scalar_select %p143, %s144, %s145
    %p149 = pneg %p143
    %p150 = scmp.eq.s32.totalorder %s28, 3
    %p151 = por %p149, %p150
    %p152 = scmp.ne.s32.totalorder %s144, %s147
    %p153 = scmp.eq.s32.totalorder %s28, 0
    %p154 = por %p152, %p153
    %p155 = scmp.ne.s32.totalorder %s144, %s147
    %p156 = scmp.eq.s32.totalorder %s33, 3
    %p157 = por %p155, %p156
    %p158 = scmp.ne.s32.totalorder %s147, %s148
    %p159 = scmp.eq.s32.totalorder %s33, 0
    %p160 = por %p158, %p159
    %p161 = scmp.ne.s32.totalorder %s147, %s148
    %p162 = scmp.eq.s32.totalorder %s34, 3
    %p163 = por %p161, %p162
    %p165 = scmp.ne.s32.totalorder %s148, %s164
    %p166 = scmp.eq.s32.totalorder %s34, 0
    %p167 = por %p165, %p166
    %s168 = ssub.s32 %s36, %s43
    %p169 = scmp.eq.s32.totalorder %s168, 0
    %s171 = sadd.s32 %s170, 1
    %s172 = scalar_select %p169, %s170, %s171
    %p175 = pneg %p169
    %p176 = scmp.eq.s32.totalorder %s28, 3
    %p177 = por %p175, %p176
    %p178 = scmp.ne.s32.totalorder %s170, %s173
    %p179 = scmp.eq.s32.totalorder %s28, 0
    %p180 = por %p178, %p179
    %p181 = scmp.ne.s32.totalorder %s170, %s173
    %p182 = scmp.eq.s32.totalorder %s33, 3
    %p183 = por %p181, %p182
    %p184 = scmp.ne.s32.totalorder %s173, %s174
    %p185 = scmp.eq.s32.totalorder %s33, 0
    %p186 = por %p184, %p185
    %p187 = scmp.ne.s32.totalorder %s173, %s174
    %p188 = scmp.eq.s32.totalorder %s34, 3
    %p189 = por %p187, %p188
    %p191 = scmp.ne.s32.totalorder %s174, %s190
    %p192 = scmp.eq.s32.totalorder %s34, 0
    %p193 = por %p191, %p192
    %s194 = ssub.s32 %s36, %s43
    %p195 = scmp.eq.s32.totalorder %s194, 0
    %s197 = sadd.s32 %s196, 1
    %s198 = scalar_select %p195, %s196, %s197
    %p201 = pneg %p195
    %p202 = scmp.eq.s32.totalorder %s28, 3
    %p203 = por %p201, %p202
    %p204 = scmp.ne.s32.totalorder %s196, %s199
    %p205 = scmp.eq.s32.totalorder %s28, 0
    %p206 = por %p204, %p205
    %p207 = scmp.ne.s32.totalorder %s196, %s199
    %p208 = scmp.eq.s32.totalorder %s33, 3
    %p209 = por %p207, %p208
    %p210 = scmp.ne.s32.totalorder %s199, %s200
    %p211 = scmp.eq.s32.totalorder %s33, 0
    %p212 = por %p210, %p211
    %p213 = scmp.ne.s32.totalorder %s199, %s200
    %p214 = scmp.eq.s32.totalorder %s34, 3
    %p215 = por %p213, %p214
    %p217 = scmp.ne.s32.totalorder %s200, %s216
    %p218 = scmp.eq.s32.totalorder %s34, 0
    %p219 = por %p217, %p218
    %s220 = ssub.s32 %s36, %s43
    %p221 = scmp.eq.s32.totalorder %s220, 0
    %s223 = sadd.s32 %s222, 1
    %s224 = scalar_select %p221, %s222, %s223
    %p227 = pneg %p221
    %p228 = scmp.eq.s32.totalorder %s28, 3
    %p229 = por %p227, %p228
    %p230 = scmp.ne.s32.totalorder %s222, %s225
    %p231 = scmp.eq.s32.totalorder %s28, 0
    %p232 = por %p230, %p231
    %p233 = scmp.ne.s32.totalorder %s222, %s225
    %p234 = scmp.eq.s32.totalorder %s33, 3
    %p235 = por %p233, %p234
    %p236 = scmp.ne.s32.totalorder %s225, %s226
    %p237 = scmp.eq.s32.totalorder %s33, 0
    %p238 = por %p236, %p237
    %p239 = scmp.ne.s32.totalorder %s225, %s226
    %p240 = scmp.eq.s32.totalorder %s34, 3
    %p241 = por %p239, %p240
    %p243 = scmp.ne.s32.totalorder %s226, %s242
    %p244 = scmp.eq.s32.totalorder %s34, 0
    %p245 = por %p243, %p244
    %s246 = ssub.s32 %s36, %s43
    %p247 = scmp.eq.s32.totalorder %s246, 0
    %s249 = sadd.s32 %s248, 1
    %s250 = scalar_select %p247, %s248, %s249
    %p253 = pneg %p247
    %p254 = scmp.eq.s32.totalorder %s28, 3
    %p255 = por %p253, %p254
    %p256 = scmp.ne.s32.totalorder %s248, %s251
    %p257 = scmp.eq.s32.totalorder %s28, 0
    %p258 = por %p256, %p257
    %p259 = scmp.ne.s32.totalorder %s248, %s251
    %p260 = scmp.eq.s32.totalorder %s33, 3
    %p261 = por %p259, %p260
    %p262 = scmp.ne.s32.totalorder %s251, %s252
    %p263 = scmp.eq.s32.totalorder %s33, 0
    %p264 = por %p262, %p263
    %p265 = scmp.ne.s32.totalorder %s251, %s252
    %p266 = scmp.eq.s32.totalorder %s34, 3
    %p267 = por %p265, %p266
    %p269 = scmp.ne.s32.totalorder %s252, %s268
    %p270 = scmp.eq.s32.totalorder %s34, 0
    %p271 = por %p269, %p270
    %s272 = ssub.s32 %s36, %s43
    %p273 = scmp.eq.s32.totalorder %s272, 0
    %s275 = sadd.s32 %s274, 1
    %s276 = scalar_select %p273, %s274, %s275
    %p279 = pneg %p273
    %p280 = scmp.eq.s32.totalorder %s28, 3
    %p281 = por %p279, %p280
    %p282 = scmp.ne.s32.totalorder %s274, %s277
    %p283 = scmp.eq.s32.totalorder %s28, 0
    %p284 = por %p282, %p283
    %p285 = scmp.ne.s32.totalorder %s274, %s277
    %p286 = scmp.eq.s32.totalorder %s33, 3
    %p287 = por %p285, %p286
    %p288 = scmp.ne.s32.totalorder %s277, %s278
    %p289 = scmp.eq.s32.totalorder %s33, 0
    %p290 = por %p288, %p289
    %p291 = scmp.ne.s32.totalorder %s277, %s278
    %p292 = scmp.eq.s32.totalorder %s34, 3
    %p293 = por %p291, %p292
    %p295 = scmp.ne.s32.totalorder %s278, %s294
    %p296 = scmp.eq.s32.totalorder %s34, 0
    %p297 = por %p295, %p296
    %s298 = ssub.s32 %s36, %s43
    %p299 = scmp.eq.s32.totalorder %s298, 0
    %s301 = sadd.s32 %s300, 1
    %s302 = scalar_select %p299, %s300, %s301
    %p305 = pneg %p299
    %p306 = scmp.eq.s32.totalorder %s28, 3
    %p307 = por %p305, %p306
    %p308 = scmp.ne.s32.totalorder %s300, %s303
    %p309 = scmp.eq.s32.totalorder %s28, 0
    %p310 = por %p308, %p309
    %p311 = scmp.ne.s32.totalorder %s300, %s303
    %p312 = scmp.eq.s32.totalorder %s33, 3
    %p313 = por %p311, %p312
    %p314 = scmp.ne.s32.totalorder %s303, %s304
    %p315 = scmp.eq.s32.totalorder %s33, 0
    %p316 = por %p314, %p315
    %p317 = scmp.ne.s32.totalorder %s303, %s304
    %p318 = scmp.eq.s32.totalorder %s34, 3
    %p319 = por %p317, %p318
    %p321 = scmp.ne.s32.totalorder %s304, %s320
    %p322 = scmp.eq.s32.totalorder %s34, 0
    %p323 = por %p321, %p322
    %s324 = ssub.s32 %s36, %s43
    %p325 = scmp.eq.s32.totalorder %s324, 0
    %s327 = sadd.s32 %s326, 1
    %s328 = scalar_select %p325, %s326, %s327
    %p331 = pneg %p325
    %p332 = scmp.eq.s32.totalorder %s28, 3
    %p333 = por %p331, %p332
    %p334 = scmp.ne.s32.totalorder %s326, %s329
    %p335 = scmp.eq.s32.totalorder %s28, 0
    %p336 = por %p334, %p335
    %p337 = scmp.ne.s32.totalorder %s326, %s329
    %p338 = scmp.eq.s32.totalorder %s33, 3
    %p339 = por %p337, %p338
    %p340 = scmp.ne.s32.totalorder %s329, %s330
    %p341 = scmp.eq.s32.totalorder %s33, 0
    %p342 = por %p340, %p341
    %p343 = scmp.ne.s32.totalorder %s329, %s330
    %p344 = scmp.eq.s32.totalorder %s34, 3
    %p345 = por %p343, %p344
    %p347 = scmp.ne.s32.totalorder %s330, %s346
    %p348 = scmp.eq.s32.totalorder %s34, 0
    %p349 = por %p347, %p348
    %s350 = ssub.s32 %s36, %s43
    %p351 = scmp.eq.s32.totalorder %s350, 0
    %s353 = sadd.s32 %s352, 1
    %s354 = scalar_select %p351, %s352, %s353
    %p357 = pneg %p351
    %p358 = scmp.eq.s32.totalorder %s28, 3
    %p359 = por %p357, %p358
    %p360 = scmp.ne.s32.totalorder %s352, %s355
    %p361 = scmp.eq.s32.totalorder %s28, 0
    %p362 = por %p360, %p361
    %p363 = scmp.ne.s32.totalorder %s352, %s355
    %p364 = scmp.eq.s32.totalorder %s33, 3
    %p365 = por %p363, %p364
    %p366 = scmp.ne.s32.totalorder %s355, %s356
    %p367 = scmp.eq.s32.totalorder %s33, 0
    %p368 = por %p366, %p367
    %p369 = scmp.ne.s32.totalorder %s355, %s356
    %p370 = scmp.eq.s32.totalorder %s34, 3
    %p371 = por %p369, %p370
    %p373 = scmp.ne.s32.totalorder %s356, %s372
    %p374 = scmp.eq.s32.totalorder %s34, 0
    %p375 = por %p373, %p374
    %s376 = ssub.s32 %s36, %s43
    %p377 = scmp.eq.s32.totalorder %s376, 0
    %s379 = sadd.s32 %s378, 1
    %s380 = scalar_select %p377, %s378, %s379
    %p383 = pneg %p377
    %p384 = scmp.eq.s32.totalorder %s28, 3
    %p385 = por %p383, %p384
    %p386 = scmp.ne.s32.totalorder %s378, %s381
    %p387 = scmp.eq.s32.totalorder %s28, 0
    %p388 = por %p386, %p387
    %p389 = scmp.ne.s32.totalorder %s378, %s381
    %p390 = scmp.eq.s32.totalorder %s33, 3
    %p391 = por %p389, %p390
    %p392 = scmp.ne.s32.totalorder %s381, %s382
    %p393 = scmp.eq.s32.totalorder %s33, 0
    %p394 = por %p392, %p393
    %p395 = scmp.ne.s32.totalorder %s381, %s382
    %p396 = scmp.eq.s32.totalorder %s34, 3
    %p397 = por %p395, %p396
    %p399 = scmp.ne.s32.totalorder %s382, %s398
    %p400 = scmp.eq.s32.totalorder %s34, 0
    %p401 = por %p399, %p400
    %s402 = ssub.s32 %s36, %s43
    %p403 = scmp.eq.s32.totalorder %s402, 0
    %s405 = sadd.s32 %s404, 1
    %s406 = scalar_select %p403, %s404, %s405
    %p409 = pneg %p403
    %p410 = scmp.eq.s32.totalorder %s28, 3
    %p411 = por %p409, %p410
    %p412 = scmp.ne.s32.totalorder %s404, %s407
    %p413 = scmp.eq.s32.totalorder %s28, 0
    %p414 = por %p412, %p413
    %p415 = scmp.ne.s32.totalorder %s404, %s407
    %p416 = scmp.eq.s32.totalorder %s33, 3
    %p417 = por %p415, %p416
    %p418 = scmp.ne.s32.totalorder %s407, %s408
    %p419 = scmp.eq.s32.totalorder %s33, 0
    %p420 = por %p418, %p419
    %p421 = scmp.ne.s32.totalorder %s407, %s408
    %p422 = scmp.eq.s32.totalorder %s34, 3
    %p423 = por %p421, %p422
    %p425 = scmp.ne.s32.totalorder %s408, %s424
    %p426 = scmp.eq.s32.totalorder %s34, 0
    %p427 = por %p425, %p426
    %s428 = ssub.s32 %s36, %s43
    %p429 = scmp.eq.s32.totalorder %s428, 0
    %s431 = sadd.s32 %s430, 1
    %s432 = scalar_select %p429, %s430, %s431
    %p435 = pneg %p429
    %p436 = scmp.eq.s32.totalorder %s28, 3
    %p437 = por %p435, %p436
    %p438 = scmp.ne.s32.totalorder %s430, %s433
    %p439 = scmp.eq.s32.totalorder %s28, 0
    %p440 = por %p438, %p439
    %p441 = scmp.ne.s32.totalorder %s430, %s433
    %p442 = scmp.eq.s32.totalorder %s33, 3
    %p443 = por %p441, %p442
    %p444 = scmp.ne.s32.totalorder %s433, %s434
    %p445 = scmp.eq.s32.totalorder %s33, 0
    %p446 = por %p444, %p445
    %p447 = scmp.ne.s32.totalorder %s433, %s434
    %p448 = scmp.eq.s32.totalorder %s34, 3
    %p449 = por %p447, %p448
    %p451 = scmp.ne.s32.totalorder %s434, %s450
    %p452 = scmp.eq.s32.totalorder %s34, 0
    %p453 = por %p451, %p452
    %s454 = ssub.s32 %s36, %s43
    %p455 = scmp.eq.s32.totalorder %s454, 0
    %s457 = sadd.s32 %s456, 1
    %s458 = scalar_select %p455, %s456, %s457
    %p461 = pneg %p455
    %p462 = scmp.eq.s32.totalorder %s28, 3
    %p463 = por %p461, %p462
    %p464 = scmp.ne.s32.totalorder %s456, %s459
    %p465 = scmp.eq.s32.totalorder %s28, 0
    %p466 = por %p464, %p465
    %p467 = scmp.ne.s32.totalorder %s456, %s459
    %p468 = scmp.eq.s32.totalorder %s33, 3
    %p469 = por %p467, %p468
    %p470 = scmp.ne.s32.totalorder %s459, %s460
    %p471 = scmp.eq.s32.totalorder %s33, 0
    %p472 = por %p470, %p471
    %p473 = scmp.ne.s32.totalorder %s459, %s460
    %p474 = scmp.eq.s32.totalorder %s34, 3
    %p475 = por %p473, %p474
    %p477 = scmp.ne.s32.totalorder %s460, %s476
    %p478 = scmp.eq.s32.totalorder %s34, 0
    %p479 = por %p477, %p478
    %s480 = ssub.s32 %s36, %s43
    %p481 = scmp.eq.s32.totalorder %s480, 0
    %s483 = sadd.s32 %s482, 1
    %s484 = scalar_select %p481, %s482, %s483
    %p487 = pneg %p481
    %p488 = scmp.eq.s32.totalorder %s28, 3
    %p489 = por %p487, %p488
    %p490 = scmp.ne.s32.totalorder %s482, %s485
    %p491 = scmp.eq.s32.totalorder %s28, 0
    %p492 = por %p490, %p491
    %p493 = scmp.ne.s32.totalorder %s482, %s485
    %p494 = scmp.eq.s32.totalorder %s33, 3
    %p495 = por %p493, %p494
    %p496 = scmp.ne.s32.totalorder %s485, %s486
    %p497 = scmp.eq.s32.totalorder %s33, 0
    %p498 = por %p496, %p497
    %p499 = scmp.ne.s32.totalorder %s485, %s486
    %p500 = scmp.eq.s32.totalorder %s34, 3
    %p501 = por %p499, %p500
    %p503 = scmp.ne.s32.totalorder %s486, %s502
    %p504 = scmp.eq.s32.totalorder %s34, 0
    %p505 = por %p503, %p504
    %s506 = ssub.s32 %s36, %s43
    %p507 = scmp.eq.s32.totalorder %s506, 0
    %s509 = sadd.s32 %s508, 1
    %s510 = scalar_select %p507, %s508, %s509
    %p513 = pneg %p507
    %p514 = scmp.eq.s32.totalorder %s28, 3
    %p515 = por %p513, %p514
    %p516 = scmp.ne.s32.totalorder %s508, %s511
    %p517 = scmp.eq.s32.totalorder %s28, 0
    %p518 = por %p516, %p517
    %p519 = scmp.ne.s32.totalorder %s508, %s511
    %p520 = scmp.eq.s32.totalorder %s33, 3
    %p521 = por %p519, %p520
    %p522 = scmp.ne.s32.totalorder %s511, %s512
    %p523 = scmp.eq.s32.totalorder %s33, 0
    %p524 = por %p522, %p523
    %p525 = scmp.ne.s32.totalorder %s511, %s512
    %p526 = scmp.eq.s32.totalorder %s34, 3
    %p527 = por %p525, %p526
    %p529 = scmp.ne.s32.totalorder %s512, %s528
    %p530 = scmp.eq.s32.totalorder %s34, 0
    %p531 = por %p529, %p530
    %s532 = ssub.s32 %s36, %s43
    %p533 = scmp.eq.s32.totalorder %s532, 0
    %s535 = sadd.s32 %s534, 1
    %s536 = scalar_select %p533, %s534, %s535
    %p539 = pneg %p533
    %p540 = scmp.eq.s32.totalorder %s28, 3
    %p541 = por %p539, %p540
    %p542 = scmp.ne.s32.totalorder %s534, %s537
    %p543 = scmp.eq.s32.totalorder %s28, 0
    %p544 = por %p542, %p543
    %p545 = scmp.ne.s32.totalorder %s534, %s537
    %p546 = scmp.eq.s32.totalorder %s33, 3
    %p547 = por %p545, %p546
    %p548 = scmp.ne.s32.totalorder %s537, %s538
    %p549 = scmp.eq.s32.totalorder %s33, 0
    %p550 = por %p548, %p549
    %p551 = scmp.ne.s32.totalorder %s537, %s538
    %p552 = scmp.eq.s32.totalorder %s34, 3
    %p553 = por %p551, %p552
    %p555 = scmp.ne.s32.totalorder %s538, %s554
    %p556 = scmp.eq.s32.totalorder %s34, 0
    %p557 = por %p555, %p556
    %s559 = sadd.s32 %s558, 1
    %p562 = scmp.eq.s32.totalorder %s28, 3
    %p563 = scmp.ne.s32.totalorder %s558, %s560
    %p564 = scmp.eq.s32.totalorder %s28, 0
    %p565 = por %p563, %p564
    %p566 = scmp.ne.s32.totalorder %s558, %s560
    %p567 = scmp.eq.s32.totalorder %s33, 3
    %p568 = por %p566, %p567
    %p569 = scmp.ne.s32.totalorder %s560, %s561
    %p570 = scmp.eq.s32.totalorder %s33, 0
    %p571 = por %p569, %p570
    %p572 = scmp.ne.s32.totalorder %s560, %s561
    %p573 = scmp.eq.s32.totalorder %s34, 3
    %p574 = por %p572, %p573
    %p576 = scmp.ne.s32.totalorder %s561, %s575
    %p577 = scmp.eq.s32.totalorder %s34, 0
    %p578 = por %p576, %p577
    %s580 = sadd.s32 %s579, 1
    %p583 = scmp.eq.s32.totalorder %s28, 3
    %p584 = scmp.ne.s32.totalorder %s579, %s581
    %p585 = scmp.eq.s32.totalorder %s28, 0
    %p586 = por %p584, %p585
    %p587 = scmp.ne.s32.totalorder %s579, %s581
    %p588 = scmp.eq.s32.totalorder %s33, 3
    %p589 = por %p587, %p588
    %p590 = scmp.ne.s32.totalorder %s581, %s582
    %p591 = scmp.eq.s32.totalorder %s33, 0
    %p592 = por %p590, %p591
    %p593 = scmp.ne.s32.totalorder %s581, %s582
    %p594 = scmp.eq.s32.totalorder %s34, 3
    %p595 = por %p593, %p594
    %p597 = scmp.ne.s32.totalorder %s582, %s596
    %p598 = scmp.eq.s32.totalorder %s34, 0
    %p599 = por %p597, %p598
    %s600 = ssub.s32 %s35, %s47
    %p601 = scmp.eq.s32.totalorder %s600, 0
    %s603 = sadd.s32 %s602, 1
    %s604 = scalar_select %p601, %s602, %s603
    %p607 = pneg %p601
    %p608 = scmp.eq.s32.totalorder %s28, 3
    %p609 = por %p607, %p608
    %p610 = scmp.ne.s32.totalorder %s602, %s605
    %p611 = scmp.eq.s32.totalorder %s28, 0
    %p612 = por %p610, %p611
    %p613 = scmp.ne.s32.totalorder %s602, %s605
    %p614 = scmp.eq.s32.totalorder %s33, 3
    %p615 = por %p613, %p614
    %p616 = scmp.ne.s32.totalorder %s605, %s606
    %p617 = scmp.eq.s32.totalorder %s33, 0
    %p618 = por %p616, %p617
    %p619 = scmp.ne.s32.totalorder %s605, %s606
    %p620 = scmp.eq.s32.totalorder %s34, 3
    %p621 = por %p619, %p620
    %p623 = scmp.ne.s32.totalorder %s606, %s622
    %p624 = scmp.eq.s32.totalorder %s34, 0
    %p625 = por %p623, %p624
    %p626 = scmp.le.s32.totalorder 1, %s28
    %p627 = scmp.lt.s32.totalorder %s28, 5
    %p628 = pnand %p626, %p627
    %p629 = pneg %p628
    // Predicated region
    $region9: #{transformer_encoder_forward.1} parent=5 // pred_check
      _
    $region10: #{transformer_encoder_forward.1} parent=5 // pred_check_branch
      %631 = sbr.rel (%p628) target = $region12
    $region11: #{transformer_encoder_forward.1} parent=5 // pred_region
      %s632 = ssub.s32 %s28, 1
      // Predicated region
      $region13: #{transformer_encoder_forward.1} parent=11 // pred_check
        %p633 = pneg %p113
      $region14: #{transformer_encoder_forward.1} parent=11 // pred_check_branch
        %635 = sbr.rel (%p633) target = $region16
      $region15: #{transformer_encoder_forward.1} parent=11 // pred_region
        _
      $region16: #{transformer_encoder_forward.1} parent=11 // pred_fallthru
        _
      // Predicated region
      $region17: #{transformer_encoder_forward.1} parent=11 // pred_check
        %p636 = pneg %p134
      $region18: #{transformer_encoder_forward.1} parent=11 // pred_check_branch
        %638 = sbr.rel (%p636) target = $region20
      $region19: #{transformer_encoder_forward.1} parent=11 // pred_region
        _
      $region20: #{transformer_encoder_forward.1} parent=11 // pred_fallthru
        _
      // Predicated region
      $region21: #{transformer_encoder_forward.1} parent=11 // pred_check
        %p639 = pneg %p571
      $region22: #{transformer_encoder_forward.1} parent=11 // pred_check_branch
        %641 = sbr.rel (%p639) target = $region24
      $region23: #{transformer_encoder_forward.1} parent=11 // pred_region
        _
      $region24: #{transformer_encoder_forward.1} parent=11 // pred_fallthru
        _
      // Predicated region
      $region25: #{transformer_encoder_forward.1} parent=11 // pred_check
        %p642 = pneg %p592
      $region26: #{transformer_encoder_forward.1} parent=11 // pred_check_branch
        %644 = sbr.rel (%p642) target = $region28
      $region27: #{transformer_encoder_forward.1} parent=11 // pred_region
        _
      $region28: #{transformer_encoder_forward.1} parent=11 // pred_fallthru
        _
    $region12: #{transformer_encoder_forward.1} parent=5 // pred_fallthru
      _
    %p645 = scmp.lt.s32.totalorder %s28, 4
    // Predicated region
    $region29: #{transformer_encoder_forward.1} parent=5 // pred_check
      %p646 = pneg %p645
    $region30: #{transformer_encoder_forward.1} parent=5 // pred_check_branch
      %648 = sbr.rel (%p646) target = $region32
    $region31: #{transformer_encoder_forward.1} parent=5 // pred_region
      // Predicated region
      $region33: #{transformer_encoder_forward.1} parent=31 // pred_check
        %p649 = pneg %p60
      $region34: #{transformer_encoder_forward.1} parent=31 // pred_check_branch
        %651 = sbr.rel (%p649) target = $region36
      $region35: #{transformer_encoder_forward.1} parent=31 // pred_region
        %p652 = scmp.lt.s32.totalorder %s35, 1
        %s653 = scalar_select %p652, %s35, 1
        %s654 = smul.addr %s653, 8
        %s655 = scalar_lea.vmem %s0, %s654
      $region36: #{transformer_encoder_forward.1} parent=31 // pred_fallthru
        _
      // Predicated region
      $region37: #{transformer_encoder_forward.1} parent=31 // pred_check
        %p656 = pneg %p86
      $region38: #{transformer_encoder_forward.1} parent=31 // pred_check_branch
        %658 = sbr.rel (%p656) target = $region40
      $region39: #{transformer_encoder_forward.1} parent=31 // pred_region
        %p659 = scmp.lt.s32.totalorder %s35, 1
        %s660 = scalar_select %p659, %s35, 1
        %s661 = scalar_lea.vmem %s1, %s660
      $region40: #{transformer_encoder_forward.1} parent=31 // pred_fallthru
        _
      // Predicated region
      $region41: #{transformer_encoder_forward.1} parent=31 // pred_check
        %p662 = pneg %p154
      $region42: #{transformer_encoder_forward.1} parent=31 // pred_check_branch
        %664 = sbr.rel (%p662) target = $region44
      $region43: #{transformer_encoder_forward.1} parent=31 // pred_region
        %p665 = scmp.lt.s32.totalorder %s36, 1
        %s666 = scalar_select %p665, %s36, 1
        %s667 = scalar_lea.vmem %s4, %s666
      $region44: #{transformer_encoder_forward.1} parent=31 // pred_fallthru
        _
      // Predicated region
      $region45: #{transformer_encoder_forward.1} parent=31 // pred_check
        %p668 = pneg %p180
      $region46: #{transformer_encoder_forward.1} parent=31 // pred_check_branch
        %670 = sbr.rel (%p668) target = $region48
      $region47: #{transformer_encoder_forward.1} parent=31 // pred_region
        %p671 = scmp.lt.s32.totalorder %s36, 1
        %s672 = scalar_select %p671, %s36, 1
        %s673 = scalar_lea.vmem %s5, %s672
      $region48: #{transformer_encoder_forward.1} parent=31 // pred_fallthru
        _
      // Predicated region
      $region49: #{transformer_encoder_forward.1} parent=31 // pred_check
        %p674 = pneg %p206
      $region50: #{transformer_encoder_forward.1} parent=31 // pred_check_branch
        %676 = sbr.rel (%p674) target = $region52
      $region51: #{transformer_encoder_forward.1} parent=31 // pred_region
        %p677 = scmp.lt.s32.totalorder %s36, 1
        %s678 = scalar_select %p677, %s36, 1
        %s679 = smul.addr %s678, 64
        %s680 = smul.addr %s679, 8
        %s681 = scalar_lea.vmem %s6, %s680
      $region52: #{transformer_encoder_forward.1} parent=31 // pred_fallthru
        _
      // Predicated region
      $region53: #{transformer_encoder_forward.1} parent=31 // pred_check
        %p682 = pneg %p232
      $region54: #{transformer_encoder_forward.1} parent=31 // pred_check_branch
        %684 = sbr.rel (%p682) target = $region56
      $region55: #{transformer_encoder_forward.1} parent=31 // pred_region
        %p685 = scmp.lt.s32.totalorder %s36, 1
        %s686 = scalar_select %p685, %s36, 1
        %s687 = smul.addr %s686, 4
        %s688 = scalar_lea.vmem %s7, %s687
      $region56: #{transformer_encoder_forward.1} parent=31 // pred_fallthru
        _
      // Predicated region
      $region57: #{transformer_encoder_forward.1} parent=31 // pred_check
        %p689 = pneg %p258
      $region58: #{transformer_encoder_forward.1} parent=31 // pred_check_branch
        %691 = sbr.rel (%p689) target = $region60
      $region59: #{transformer_encoder_forward.1} parent=31 // pred_region
        %p692 = scmp.lt.s32.totalorder %s36, 1
        %s693 = scalar_select %p692, %s36, 1
        %s694 = smul.addr %s693, 64
        %s695 = smul.addr %s694, 8
        %s696 = scalar_lea.vmem %s8, %s695
      $region60: #{transformer_encoder_forward.1} parent=31 // pred_fallthru
        _
      // Predicated region
      $region61: #{transformer_encoder_forward.1} parent=31 // pred_check
        %p697 = pneg %p284
      $region62: #{transformer_encoder_forward.1} parent=31 // pred_check_branch
        %699 = sbr.rel (%p697) target = $region64
      $region63: #{transformer_encoder_forward.1} parent=31 // pred_region
        %p700 = scmp.lt.s32.totalorder %s36, 1
        %s701 = scalar_select %p700, %s36, 1
        %s702 = smul.addr %s701, 4
        %s703 = scalar_lea.vmem %s9, %s702
      $region64: #{transformer_encoder_forward.1} parent=31 // pred_fallthru
        _
      // Predicated region
      $region65: #{transformer_encoder_forward.1} parent=31 // pred_check
        %p704 = pneg %p310
      $region66: #{transformer_encoder_forward.1} parent=31 // pred_check_branch
        %706 = sbr.rel (%p704) target = $region68
      $region67: #{transformer_encoder_forward.1} parent=31 // pred_region
        %p707 = scmp.lt.s32.totalorder %s36, 1
        %s708 = scalar_select %p707, %s36, 1
        %s709 = smul.addr %s708, 64
        %s710 = smul.addr %s709, 8
        %s711 = scalar_lea.vmem %s10, %s710
      $region68: #{transformer_encoder_forward.1} parent=31 // pred_fallthru
        _
      // Predicated region
      $region69: #{transformer_encoder_forward.1} parent=31 // pred_check
        %p712 = pneg %p336
      $region70: #{transformer_encoder_forward.1} parent=31 // pred_check_branch
        %714 = sbr.rel (%p712) target = $region72
      $region71: #{transformer_encoder_forward.1} parent=31 // pred_region
        %p715 = scmp.lt.s32.totalorder %s36, 1
        %s716 = scalar_select %p715, %s36, 1
        %s717 = smul.addr %s716, 4
        %s718 = scalar_lea.vmem %s11, %s717
      $region72: #{transformer_encoder_forward.1} parent=31 // pred_fallthru
        _
      // Predicated region
      $region73: #{transformer_encoder_forward.1} parent=31 // pred_check
        %p719 = pneg %p362
      $region74: #{transformer_encoder_forward.1} parent=31 // pred_check_branch
        %721 = sbr.rel (%p719) target = $region76
      $region75: #{transformer_encoder_forward.1} parent=31 // pred_region
        %p722 = scmp.lt.s32.totalorder %s36, 1
        %s723 = scalar_select %p722, %s36, 1
        %s724 = smul.addr %s723, 16
        %s725 = smul.addr %s724, 8
        %s726 = scalar_lea.vmem %s12, %s725
      $region76: #{transformer_encoder_forward.1} parent=31 // pred_fallthru
        _
      // Predicated region
      $region77: #{transformer_encoder_forward.1} parent=31 // pred_check
        %p727 = pneg %p388
      $region78: #{transformer_encoder_forward.1} parent=31 // pred_check_branch
        %729 = sbr.rel (%p727) target = $region80
      $region79: #{transformer_encoder_forward.1} parent=31 // pred_region
        %p730 = scmp.lt.s32.totalorder %s36, 1
        %s731 = scalar_select %p730, %s36, 1
        %s732 = scalar_lea.vmem %s13, %s731
      $region80: #{transformer_encoder_forward.1} parent=31 // pred_fallthru
        _
      // Predicated region
      $region81: #{transformer_encoder_forward.1} parent=31 // pred_check
        %p733 = pneg %p414
      $region82: #{transformer_encoder_forward.1} parent=31 // pred_check_branch
        %735 = sbr.rel (%p733) target = $region84
      $region83: #{transformer_encoder_forward.1} parent=31 // pred_region
        %p736 = scmp.lt.s32.totalorder %s36, 1
        %s737 = scalar_select %p736, %s36, 1
        %s738 = scalar_lea.vmem %s14, %s737
      $region84: #{transformer_encoder_forward.1} parent=31 // pred_fallthru
        _
      // Predicated region
      $region85: #{transformer_encoder_forward.1} parent=31 // pred_check
        %p739 = pneg %p440
      $region86: #{transformer_encoder_forward.1} parent=31 // pred_check_branch
        %741 = sbr.rel (%p739) target = $region88
      $region87: #{transformer_encoder_forward.1} parent=31 // pred_region
        %p742 = scmp.lt.s32.totalorder %s36, 1
        %s743 = scalar_select %p742, %s36, 1
        %s744 = scalar_lea.vmem %s15, %s743
      $region88: #{transformer_encoder_forward.1} parent=31 // pred_fallthru
        _
      // Predicated region
      $region89: #{transformer_encoder_forward.1} parent=31 // pred_check
        %p745 = pneg %p466
      $region90: #{transformer_encoder_forward.1} parent=31 // pred_check_branch
        %747 = sbr.rel (%p745) target = $region92
      $region91: #{transformer_encoder_forward.1} parent=31 // pred_region
        %p748 = scmp.lt.s32.totalorder %s36, 1
        %s749 = scalar_select %p748, %s36, 1
        %s750 = smul.addr %s749, 32
        %s751 = smul.addr %s750, 8
        %s752 = scalar_lea.vmem %s16, %s751
      $region92: #{transformer_encoder_forward.1} parent=31 // pred_fallthru
        _
      // Predicated region
      $region93: #{transformer_encoder_forward.1} parent=31 // pred_check
        %p753 = pneg %p492
      $region94: #{transformer_encoder_forward.1} parent=31 // pred_check_branch
        %755 = sbr.rel (%p753) target = $region96
      $region95: #{transformer_encoder_forward.1} parent=31 // pred_region
        %p756 = scmp.lt.s32.totalorder %s36, 1
        %s757 = scalar_select %p756, %s36, 1
        %s758 = smul.addr %s757, 2
        %s759 = scalar_lea.vmem %s17, %s758
      $region96: #{transformer_encoder_forward.1} parent=31 // pred_fallthru
        _
      // Predicated region
      $region97: #{transformer_encoder_forward.1} parent=31 // pred_check
        %p760 = pneg %p518
      $region98: #{transformer_encoder_forward.1} parent=31 // pred_check_branch
        %762 = sbr.rel (%p760) target = $region100
      $region99: #{transformer_encoder_forward.1} parent=31 // pred_region
        %p763 = scmp.lt.s32.totalorder %s36, 1
        %s764 = scalar_select %p763, %s36, 1
        %s765 = smul.addr %s764, 32
        %s766 = smul.addr %s765, 8
        %s767 = scalar_lea.vmem %s18, %s766
      $region100: #{transformer_encoder_forward.1} parent=31 // pred_fallthru
        _
      // Predicated region
      $region101: #{transformer_encoder_forward.1} parent=31 // pred_check
        %p768 = pneg %p544
      $region102: #{transformer_encoder_forward.1} parent=31 // pred_check_branch
        %770 = sbr.rel (%p768) target = $region104
      $region103: #{transformer_encoder_forward.1} parent=31 // pred_region
        %p771 = scmp.lt.s32.totalorder %s36, 1
        %s772 = scalar_select %p771, %s36, 1
        %s773 = scalar_lea.vmem %s19, %s772
      $region104: #{transformer_encoder_forward.1} parent=31 // pred_fallthru
        _
    $region32: #{transformer_encoder_forward.1} parent=5 // pred_fallthru
      _
    %p774 = scmp.le.s32.totalorder 1, %s28
    %p775 = scmp.lt.s32.totalorder %s28, 5
    %p776 = pnand %p774, %p775
    %p777 = pneg %p776
    // Predicated region
    $region105: #{transformer_encoder_forward.1} parent=5 // pred_check
      _
    $region106: #{transformer_encoder_forward.1} parent=5 // pred_check_branch
      %779 = sbr.rel (%p776) target = $region108
    $region107: #{transformer_encoder_forward.1} parent=5 // pred_region
      %s780 = ssub.s32 %s28, 1
      %p781 = scmp.lt.s32.totalorder %s37, 1
      %s782 = scalar_select %p781, %s37, 1
      %s783 = smul.addr %s782, 8
      %s784 = scalar_lea.vmem %s0, %s783
      %p785 = pneg %p66
      %p786 = pneg %p63
      %p787 = scmp.lt.s32.totalorder %s37, 1
      %s788 = scalar_select %p787, %s37, 1
      %s789 = scalar_lea.vmem %s1, %s788
      %p790 = pneg %p92
      %p791 = pneg %p89
      %p792 = pneg %p113
      %p793 = pneg %p110
      %p794 = pneg %p134
      %p795 = pneg %p131
      %p796 = scmp.lt.s32.totalorder %s38, 1
      %s797 = scalar_select %p796, %s38, 1
      %s798 = scalar_lea.vmem %s4, %s797
      %p799 = pneg %p160
      %p800 = pneg %p157
      %p801 = scmp.lt.s32.totalorder %s38, 1
      %s802 = scalar_select %p801, %s38, 1
      %s803 = scalar_lea.vmem %s5, %s802
      %p804 = pneg %p186
      %p805 = pneg %p183
      %p806 = scmp.lt.s32.totalorder %s38, 1
      %s807 = scalar_select %p806, %s38, 1
      %s808 = smul.addr %s807, 64
      %s809 = smul.addr %s808, 8
      %s810 = scalar_lea.vmem %s6, %s809
      %p811 = pneg %p212
      %p812 = pneg %p209
      %p813 = scmp.lt.s32.totalorder %s38, 1
      %s814 = scalar_select %p813, %s38, 1
      %s815 = smul.addr %s814, 4
      %s816 = scalar_lea.vmem %s7, %s815
      %p817 = pneg %p238
      %p818 = pneg %p235
      %p819 = scmp.lt.s32.totalorder %s38, 1
      %s820 = scalar_select %p819, %s38, 1
      %s821 = smul.addr %s820, 64
      %s822 = smul.addr %s821, 8
      %s823 = scalar_lea.vmem %s8, %s822
      %p824 = pneg %p264
      %p825 = pneg %p261
      %p826 = scmp.lt.s32.totalorder %s38, 1
      %s827 = scalar_select %p826, %s38, 1
      %s828 = smul.addr %s827, 4
      %s829 = scalar_lea.vmem %s9, %s828
      %p830 = pneg %p290
      %p831 = pneg %p287
      %p832 = scmp.lt.s32.totalorder %s38, 1
      %s833 = scalar_select %p832, %s38, 1
      %s834 = smul.addr %s833, 64
      %s835 = smul.addr %s834, 8
      %s836 = scalar_lea.vmem %s10, %s835
      %p837 = pneg %p316
      %p838 = pneg %p313
      %p839 = scmp.lt.s32.totalorder %s38, 1
      %s840 = scalar_select %p839, %s38, 1
      %s841 = smul.addr %s840, 4
      %s842 = scalar_lea.vmem %s11, %s841
      %p843 = pneg %p342
      %p844 = pneg %p339
      %p845 = scmp.lt.s32.totalorder %s38, 1
      %s846 = scalar_select %p845, %s38, 1
      %s847 = smul.addr %s846, 16
      %s848 = smul.addr %s847, 8
      %s849 = scalar_lea.vmem %s12, %s848
      %p850 = pneg %p368
      %p851 = pneg %p365
      %p852 = scmp.lt.s32.totalorder %s38, 1
      %s853 = scalar_select %p852, %s38, 1
      %s854 = scalar_lea.vmem %s13, %s853
      %p855 = pneg %p394
      %p856 = pneg %p391
      %p857 = scmp.lt.s32.totalorder %s38, 1
      %s858 = scalar_select %p857, %s38, 1
      %s859 = scalar_lea.vmem %s14, %s858
      %p860 = pneg %p420
      %p861 = pneg %p417
      %p862 = scmp.lt.s32.totalorder %s38, 1
      %s863 = scalar_select %p862, %s38, 1
      %s864 = scalar_lea.vmem %s15, %s863
      %p865 = pneg %p446
      %p866 = pneg %p443
      %p867 = scmp.lt.s32.totalorder %s38, 1
      %s868 = scalar_select %p867, %s38, 1
      %s869 = smul.addr %s868, 32
      %s870 = smul.addr %s869, 8
      %s871 = scalar_lea.vmem %s16, %s870
      %p872 = pneg %p472
      %p873 = pneg %p469
      %p874 = scmp.lt.s32.totalorder %s38, 1
      %s875 = scalar_select %p874, %s38, 1
      %s876 = smul.addr %s875, 2
      %s877 = scalar_lea.vmem %s17, %s876
      %p878 = pneg %p498
      %p879 = pneg %p495
      %p880 = scmp.lt.s32.totalorder %s38, 1
      %s881 = scalar_select %p880, %s38, 1
      %s882 = smul.addr %s881, 32
      %s883 = smul.addr %s882, 8
      %s884 = scalar_lea.vmem %s18, %s883
      %p885 = pneg %p524
      %p886 = pneg %p521
      %p887 = scmp.lt.s32.totalorder %s38, 1
      %s888 = scalar_select %p887, %s38, 1
      %s889 = scalar_lea.vmem %s19, %s888
      %p890 = pneg %p550
      %p891 = pneg %p547
      %p892 = pneg %p571
      %p893 = pneg %p568
      %p894 = pneg %p592
      %p895 = pneg %p589
      %p896 = pneg %p618
      %p897 = pneg %p615
      %p898 = scmp.lt.s32.totalorder %s37, 1
      %s899 = scalar_select %p898, %s37, 1
      %s900 = smul.addr %s899, 8
      %s901 = scalar_lea.vmem %s22, %s900
      %p902 = scmp.lt.s32.totalorder %s37, 1
      %s903 = scalar_select %p902, %s37, 1
      %s904 = smul.addr %s903, 8
      %s905 = scalar_lea.vmem %s0, %s904
      %p906 = scmp.lt.s32.totalorder %s37, 1
      %s907 = scalar_select %p906, %s37, 1
      %s908 = scalar_lea.vmem %s1, %s907
      %p909 = scmp.lt.s32.totalorder %s38, 1
      %s910 = scalar_select %p909, %s38, 1
      %s911 = scalar_lea.vmem %s4, %s910
      %p912 = scmp.lt.s32.totalorder %s38, 1
      %s913 = scalar_select %p912, %s38, 1
      %s914 = scalar_lea.vmem %s5, %s913
      %p915 = scmp.lt.s32.totalorder %s38, 1
      %s916 = scalar_select %p915, %s38, 1
      %s917 = smul.addr %s916, 64
      %s918 = smul.addr %s917, 8
      %s919 = scalar_lea.vmem %s6, %s918
      %p920 = scmp.lt.s32.totalorder %s38, 1
      %s921 = scalar_select %p920, %s38, 1
      %s922 = smul.addr %s921, 4
      %s923 = scalar_lea.vmem %s7, %s922
      %p924 = scmp.lt.s32.totalorder %s38, 1
      %s925 = scalar_select %p924, %s38, 1
      %s926 = smul.addr %s925, 64
      %s927 = smul.addr %s926, 8
      %s928 = scalar_lea.vmem %s8, %s927
      %p929 = scmp.lt.s32.totalorder %s38, 1
      %s930 = scalar_select %p929, %s38, 1
      %s931 = smul.addr %s930, 4
      %s932 = scalar_lea.vmem %s9, %s931
      %p933 = scmp.lt.s32.totalorder %s38, 1
      %s934 = scalar_select %p933, %s38, 1
      %s935 = smul.addr %s934, 64
      %s936 = smul.addr %s935, 8
      %s937 = scalar_lea.vmem %s10, %s936
      %p938 = scmp.lt.s32.totalorder %s38, 1
      %s939 = scalar_select %p938, %s38, 1
      %s940 = smul.addr %s939, 4
      %s941 = scalar_lea.vmem %s11, %s940
      %p942 = scmp.lt.s32.totalorder %s38, 1
      %s943 = scalar_select %p942, %s38, 1
      %s944 = smul.addr %s943, 16
      %s945 = smul.addr %s944, 8
      %s946 = scalar_lea.vmem %s12, %s945
      %p947 = scmp.lt.s32.totalorder %s38, 1
      %s948 = scalar_select %p947, %s38, 1
      %s949 = scalar_lea.vmem %s13, %s948
      %p950 = scmp.lt.s32.totalorder %s38, 1
      %s951 = scalar_select %p950, %s38, 1
      %s952 = scalar_lea.vmem %s14, %s951
      %p953 = scmp.lt.s32.totalorder %s38, 1
      %s954 = scalar_select %p953, %s38, 1
      %s955 = scalar_lea.vmem %s15, %s954
      %p956 = scmp.lt.s32.totalorder %s38, 1
      %s957 = scalar_select %p956, %s38, 1
      %s958 = smul.addr %s957, 32
      %s959 = smul.addr %s958, 8
      %s960 = scalar_lea.vmem %s16, %s959
      %p961 = scmp.lt.s32.totalorder %s38, 1
      %s962 = scalar_select %p961, %s38, 1
      %s963 = smul.addr %s962, 2
      %s964 = scalar_lea.vmem %s17, %s963
      %p965 = scmp.lt.s32.totalorder %s38, 1
      %s966 = scalar_select %p965, %s38, 1
      %s967 = smul.addr %s966, 32
      %s968 = smul.addr %s967, 8
      %s969 = scalar_lea.vmem %s18, %s968
      %p970 = scmp.lt.s32.totalorder %s38, 1
      %s971 = scalar_select %p970, %s38, 1
      %s972 = scalar_lea.vmem %s19, %s971
      %p973 = scmp.lt.s32.totalorder %s37, 1
      %s974 = scalar_select %p973, %s37, 1
      %s975 = smul.addr %s974, 8
      %s976 = scalar_lea.vmem %s22, %s975
      %p978 = scmp.eq.s32.totalorder %s38, 0
      // Predicated region
      $region109: #{transformer_encoder_forward.1} parent=107 // pred_check
        %p979 = pneg %p978
      $region110: #{transformer_encoder_forward.1} parent=107 // pred_check_branch
        %981 = sbr.rel (%p979) target = $region112
      $region111: #{transformer_encoder_forward.1} parent=107 // pred_region
        %v982 = vld [vmem:[%s905] sm:$0xff]
        %v983 = vpack.c.bf16 %v982, %v982
        %v984 = vld [vmem:[%s2] sm:$0xff]
        %v985 = vld [vmem:[%s2 + $0x8] sm:$0xff]
        %v986 = vld [vmem:[%s2 + $0x10] sm:$0xff]
        %v987 = vld [vmem:[%s2 + $0x18] sm:$0xff]
        %v988 = vld [vmem:[%s2 + $0x20] sm:$0xff]
        %v989 = vld [vmem:[%s2 + $0x28] sm:$0xff]
        %v990 = vld [vmem:[%s2 + $0x30] sm:$0xff]
        %v991 = vld [vmem:[%s2 + $0x38] sm:$0xff]
        %v992 = vpack.c.bf16 %v985, %v984
        %v993 = vpack.c.bf16 %v987, %v986
        %v994 = vpack.c.bf16 %v989, %v988
        %v995 = vpack.c.bf16 %v991, %v990
        %v996 = vld [vmem:[%s3] sm:$0x1]
        %v998 = vlaneseq
        %v999 = vshrl.u32 %v998, 7
        %v1000 = vsub.s32 0, %v999
        %v1001 = vrot.slane %v996, %v1000
        %vm1003 = vcmask 523264
        %v1005 = vsel %vm1003, %v983, 0
        %1007 = vmatprep.subr.bf16.mxu0 0
        %1008 = vmatpush1.bf16.msra.mxu0 0
        %1009 = vmatprep.subr.bf16.mxu0 0
        %1010 = vmatpush1.bf16.msra.mxu0 0
        %1011 = vmatprep.subr.bf16.mxu0 0
        %1012 = vmatpush1.bf16.msra.mxu0 0
        %1013 = vmatprep.subr.bf16.mxu0 0
        %1014 = vmatpush1.bf16.msra.mxu0 0
        %1015 = vmatprep.subr.bf16.mxu0 0
        %1016 = vmatpush1.bf16.msra.mxu0 %v995
        %1017 = vmatprep.subr.bf16.mxu0 0
        %1018 = vmatpush1.bf16.msra.mxu0 %v994
        %1019 = vmatprep.subr.bf16.mxu0 0
        %1020 = vmatpush1.bf16.msra.mxu0 %v993
        %1021 = vmatprep.subr.bf16.mxu0 0
        %1022 = vmatpush1.bf16.msra.mxu0 %v992
        %1023 = vmatprep.subr.bf16.mxu0 0
        %1024 = vmatpush2.bf16.msra.mxu0 0
        %1025 = vmatprep.subr.bf16.mxu0 0
        %1026 = vmatpush2.bf16.msra.mxu0 0
        %1027 = vmatprep.subr.bf16.mxu0 0
        %1028 = vmatpush2.bf16.msra.mxu0 0
        %1029 = vmatprep.subr.bf16.mxu0 0
        %1030 = vmatpush2.bf16.msra.mxu0 0
        %1031 = vmatprep.subr.bf16.mxu0 0
        %1032 = vmatpush2.bf16.msra.mxu0 0
        %1033 = vmatprep.subr.bf16.mxu0 0
        %1034 = vmatpush2.bf16.msra.mxu0 0
        %1035 = vmatprep.subr.bf16.mxu0 0
        %1036 = vmatpush2.bf16.msra.mxu0 0
        %1037 = vmatprep.subr.bf16.mxu0 0
        %1038 = vmatpush2.bf16.msra.mxu0 0
        %1039 = vmatprep.mubr.bf16.mxu0 0
        %1040 = vmatmul.mubr.bf16.gmra.mxu0 %v1005
        %v1041 = vpop.f32.mrf.mxu0
        %v1042 = vadd.f32 %v1001, %v1041
        %v1043 = vpop.f32.mrf.mxu0
        %v1044 = vpop.f32.mrf.mxu0
        %v1045 = vpop.f32.mrf.mxu0
        %1046 = vdwg.mxu0
        %1047 = vst [vmem:[#allocation2] sm:$0xff] %v1042
      $region112: #{transformer_encoder_forward.1} parent=107 // pred_fallthru
        _
      %v1048 = vld [vmem:[#allocation2] sm:$0xff]
      %v1049 = vld [vmem:[%s908] sm:$0x1]
      %v1050 = vld [vmem:[%s911] sm:$0x1]
      %v1051 = vld [vmem:[%s914] sm:$0x1]
      %1052 = vadd.xlane.f32.xlu0 %v1048
      %v1053 = vpop.xlane.xlu0 %1052
      %v1054 = vrcp.pop 128.0
      %v1055 = vmul.f32 %v1053, %v1054
      %v1056 = vsub.f32 %v1048, %v1055
      %v1057 = vmul.f32 %v1056, %v1056
      %1058 = vadd.xlane.f32.xlu0 %v1057
      %v1059 = vpop.xlane.xlu0 %1058
      %v1060 = vmul.f32 %v1059, %v1054
      %v1061 = vadd.f32 %v1060, 1e-05
      %v1062 = vrsqrt.pop %v1061
      %v1063 = vmul.f32 %v1056, %v1062
      %v1065 = vlaneseq
      %v1066 = vshrl.u32 %v1065, 7
      %v1067 = vsub.s32 0, %v1066
      %v1068 = vrot.slane %v1050, %v1067
      %v1070 = vmul.f32 %v1063, %v1068
      %v1072 = vlaneseq
      %v1073 = vshrl.u32 %v1072, 7
      %v1074 = vsub.s32 0, %v1073
      %v1075 = vrot.slane %v1051, %v1074
      %v1077 = vadd.f32 %v1070, %v1075
      %v1078 = vpack.c.bf16 %v1077, %v1077
      %v1079 = vld [vmem:[%s919] sm:$0xff]
      %v1080 = vld [vmem:[%s919 + $0x8] sm:$0xff]
      %v1081 = vld [vmem:[%s919 + $0x10] sm:$0xff]
      %v1082 = vld [vmem:[%s919 + $0x18] sm:$0xff]
      %v1083 = vld [vmem:[%s919 + $0x20] sm:$0xff]
      %v1084 = vld [vmem:[%s919 + $0x28] sm:$0xff]
      %v1085 = vld [vmem:[%s919 + $0x30] sm:$0xff]
      %v1086 = vld [vmem:[%s919 + $0x38] sm:$0xff]
      %v1087 = vld [vmem:[%s919 + $0x40] sm:$0xff]
      %v1088 = vld [vmem:[%s919 + $0x48] sm:$0xff]
      %v1089 = vld [vmem:[%s919 + $0x50] sm:$0xff]
      %v1090 = vld [vmem:[%s919 + $0x58] sm:$0xff]
      %v1091 = vld [vmem:[%s919 + $0x60] sm:$0xff]
      %v1092 = vld [vmem:[%s919 + $0x68] sm:$0xff]
      %v1093 = vld [vmem:[%s919 + $0x70] sm:$0xff]
      %v1094 = vld [vmem:[%s919 + $0x78] sm:$0xff]
      %v1095 = vpack.c.bf16 %v1080, %v1079
      %v1096 = vpack.c.bf16 %v1082, %v1081
      %v1097 = vpack.c.bf16 %v1084, %v1083
      %v1098 = vpack.c.bf16 %v1086, %v1085
      %v1099 = vpack.c.bf16 %v1088, %v1087
      %v1100 = vpack.c.bf16 %v1090, %v1089
      %v1101 = vpack.c.bf16 %v1092, %v1091
      %v1102 = vpack.c.bf16 %v1094, %v1093
      %v1103 = vld [vmem:[%s923] sm:$0x1]
      %v1105 = vlaneseq
      %v1106 = vshrl.u32 %v1105, 7
      %v1107 = vsub.s32 0, %v1106
      %v1108 = vrot.slane %v1103, %v1107
      %1110 = vmatprep.subr.bf16.mxu0 0
      %1111 = vmatpush1.bf16.msra.mxu0 %v1102
      %1112 = vmatprep.subr.bf16.mxu0 0
      %1113 = vmatpush1.bf16.msra.mxu0 %v1101
      %1114 = vmatprep.subr.bf16.mxu0 0
      %1115 = vmatpush1.bf16.msra.mxu0 %v1100
      %1116 = vmatprep.subr.bf16.mxu0 0
      %1117 = vmatpush1.bf16.msra.mxu0 %v1099
      %1118 = vmatprep.subr.bf16.mxu0 0
      %1119 = vmatpush1.bf16.msra.mxu0 %v1098
      %1120 = vmatprep.subr.bf16.mxu0 0
      %1121 = vmatpush1.bf16.msra.mxu0 %v1097
      %1122 = vmatprep.subr.bf16.mxu0 0
      %1123 = vmatpush1.bf16.msra.mxu0 %v1096
      %1124 = vmatprep.subr.bf16.mxu0 0
      %1125 = vmatpush1.bf16.msra.mxu0 %v1095
      %1126 = vmatprep.subr.bf16.mxu0 0
      %1127 = vmatpush2.bf16.msra.mxu0 0
      %1128 = vmatprep.subr.bf16.mxu0 0
      %1129 = vmatpush2.bf16.msra.mxu0 0
      %1130 = vmatprep.subr.bf16.mxu0 0
      %1131 = vmatpush2.bf16.msra.mxu0 0
      %1132 = vmatprep.subr.bf16.mxu0 0
      %1133 = vmatpush2.bf16.msra.mxu0 0
      %1134 = vmatprep.subr.bf16.mxu0 0
      %1135 = vmatpush2.bf16.msra.mxu0 0
      %1136 = vmatprep.subr.bf16.mxu0 0
      %1137 = vmatpush2.bf16.msra.mxu0 0
      %1138 = vmatprep.subr.bf16.mxu0 0
      %1139 = vmatpush2.bf16.msra.mxu0 0
      %1140 = vmatprep.subr.bf16.mxu0 0
      %1141 = vmatpush2.bf16.msra.mxu0 0
      %1142 = vmatprep.mubr.bf16.mxu0 0
      %1143 = vmatmul.mubr.bf16.gmra.mxu0 %v1078
      %v1144 = vpop.f32.mrf.mxu0
      %v1145 = vadd.f32 %v1108, %v1144
      %v1146 = vpop.f32.mrf.mxu0
      %v1147 = vpop.f32.mrf.mxu0
      %v1148 = vpop.f32.mrf.mxu0
      %1149 = vdwg.mxu0
      %v1150 = vmul.f32 %v1145, 0.17677669
      %v1151 = vld [vmem:[%s928] sm:$0xff]
      %v1152 = vld [vmem:[%s928 + $0x8] sm:$0xff]
      %v1153 = vld [vmem:[%s928 + $0x10] sm:$0xff]
      %v1154 = vld [vmem:[%s928 + $0x18] sm:$0xff]
      %v1155 = vld [vmem:[%s928 + $0x20] sm:$0xff]
      %v1156 = vld [vmem:[%s928 + $0x28] sm:$0xff]
      %v1157 = vld [vmem:[%s928 + $0x30] sm:$0xff]
      %v1158 = vld [vmem:[%s928 + $0x38] sm:$0xff]
      %v1159 = vld [vmem:[%s928 + $0x40] sm:$0xff]
      %v1160 = vld [vmem:[%s928 + $0x48] sm:$0xff]
      %v1161 = vld [vmem:[%s928 + $0x50] sm:$0xff]
      %v1162 = vld [vmem:[%s928 + $0x58] sm:$0xff]
      %v1163 = vld [vmem:[%s928 + $0x60] sm:$0xff]
      %v1164 = vld [vmem:[%s928 + $0x68] sm:$0xff]
      %v1165 = vld [vmem:[%s928 + $0x70] sm:$0xff]
      %v1166 = vld [vmem:[%s928 + $0x78] sm:$0xff]
      %v1167 = vpack.c.bf16 %v1152, %v1151
      %v1168 = vpack.c.bf16 %v1154, %v1153
      %v1169 = vpack.c.bf16 %v1156, %v1155
      %v1170 = vpack.c.bf16 %v1158, %v1157
      %v1171 = vpack.c.bf16 %v1160, %v1159
      %v1172 = vpack.c.bf16 %v1162, %v1161
      %v1173 = vpack.c.bf16 %v1164, %v1163
      %v1174 = vpack.c.bf16 %v1166, %v1165
      %v1175 = vld [vmem:[%s932] sm:$0x1]
      %v1177 = vlaneseq
      %v1178 = vshrl.u32 %v1177, 7
      %v1179 = vsub.s32 0, %v1178
      %v1180 = vrot.slane %v1175, %v1179
      %1182 = vmatprep.subr.bf16.mxu0 0
      %1183 = vmatpush1.bf16.msra.mxu0 %v1174
      %1184 = vmatprep.subr.bf16.mxu0 0
      %1185 = vmatpush1.bf16.msra.mxu0 %v1173
      %1186 = vmatprep.subr.bf16.mxu0 0
      %1187 = vmatpush1.bf16.msra.mxu0 %v1172
      %1188 = vmatprep.subr.bf16.mxu0 0
      %1189 = vmatpush1.bf16.msra.mxu0 %v1171
      %1190 = vmatprep.subr.bf16.mxu0 0
      %1191 = vmatpush1.bf16.msra.mxu0 %v1170
      %1192 = vmatprep.subr.bf16.mxu0 0
      %1193 = vmatpush1.bf16.msra.mxu0 %v1169
      %1194 = vmatprep.subr.bf16.mxu0 0
      %1195 = vmatpush1.bf16.msra.mxu0 %v1168
      %1196 = vmatprep.subr.bf16.mxu0 0
      %1197 = vmatpush1.bf16.msra.mxu0 %v1167
      %1198 = vmatprep.subr.bf16.mxu0 0
      %1199 = vmatpush2.bf16.msra.mxu0 0
      %1200 = vmatprep.subr.bf16.mxu0 0
      %1201 = vmatpush2.bf16.msra.mxu0 0
      %1202 = vmatprep.subr.bf16.mxu0 0
      %1203 = vmatpush2.bf16.msra.mxu0 0
      %1204 = vmatprep.subr.bf16.mxu0 0
      %1205 = vmatpush2.bf16.msra.mxu0 0
      %1206 = vmatprep.subr.bf16.mxu0 0
      %1207 = vmatpush2.bf16.msra.mxu0 0
      %1208 = vmatprep.subr.bf16.mxu0 0
      %1209 = vmatpush2.bf16.msra.mxu0 0
      %1210 = vmatprep.subr.bf16.mxu0 0
      %1211 = vmatpush2.bf16.msra.mxu0 0
      %1212 = vmatprep.subr.bf16.mxu0 0
      %1213 = vmatpush2.bf16.msra.mxu0 0
      %1214 = vmatprep.mubr.bf16.mxu0 0
      %1215 = vmatmul.mubr.bf16.gmra.mxu0 %v1078
      %v1216 = vpop.f32.mrf.mxu0
      %v1217 = vadd.f32 %v1180, %v1216
      %v1218 = vpop.f32.mrf.mxu0
      %v1219 = vpop.f32.mrf.mxu0
      %v1220 = vpop.f32.mrf.mxu0
      %1221 = vdwg.mxu0
      %v1222 = vld [vmem:[%s937] sm:$0xff]
      %v1223 = vld [vmem:[%s937 + $0x8] sm:$0xff]
      %v1224 = vld [vmem:[%s937 + $0x10] sm:$0xff]
      %v1225 = vld [vmem:[%s937 + $0x18] sm:$0xff]
      %v1226 = vld [vmem:[%s937 + $0x20] sm:$0xff]
      %v1227 = vld [vmem:[%s937 + $0x28] sm:$0xff]
      %v1228 = vld [vmem:[%s937 + $0x30] sm:$0xff]
      %v1229 = vld [vmem:[%s937 + $0x38] sm:$0xff]
      %v1230 = vld [vmem:[%s937 + $0x40] sm:$0xff]
      %v1231 = vld [vmem:[%s937 + $0x48] sm:$0xff]
      %v1232 = vld [vmem:[%s937 + $0x50] sm:$0xff]
      %v1233 = vld [vmem:[%s937 + $0x58] sm:$0xff]
      %v1234 = vld [vmem:[%s937 + $0x60] sm:$0xff]
      %v1235 = vld [vmem:[%s937 + $0x68] sm:$0xff]
      %v1236 = vld [vmem:[%s937 + $0x70] sm:$0xff]
      %v1237 = vld [vmem:[%s937 + $0x78] sm:$0xff]
      %v1238 = vpack.c.bf16 %v1223, %v1222
      %v1239 = vpack.c.bf16 %v1225, %v1224
      %v1240 = vpack.c.bf16 %v1227, %v1226
      %v1241 = vpack.c.bf16 %v1229, %v1228
      %v1242 = vpack.c.bf16 %v1231, %v1230
      %v1243 = vpack.c.bf16 %v1233, %v1232
      %v1244 = vpack.c.bf16 %v1235, %v1234
      %v1245 = vpack.c.bf16 %v1237, %v1236
      %v1246 = vld [vmem:[%s941] sm:$0x1]
      %v1248 = vlaneseq
      %v1249 = vshrl.u32 %v1248, 7
      %v1250 = vsub.s32 0, %v1249
      %v1251 = vrot.slane %v1246, %v1250
      %1253 = vmatprep.subr.bf16.mxu0 0
      %1254 = vmatpush1.bf16.msra.mxu0 %v1245
      %1255 = vmatprep.subr.bf16.mxu0 0
      %1256 = vmatpush1.bf16.msra.mxu0 %v1244
      %1257 = vmatprep.subr.bf16.mxu0 0
      %1258 = vmatpush1.bf16.msra.mxu0 %v1243
      %1259 = vmatprep.subr.bf16.mxu0 0
      %1260 = vmatpush1.bf16.msra.mxu0 %v1242
      %1261 = vmatprep.subr.bf16.mxu0 0
      %1262 = vmatpush1.bf16.msra.mxu0 %v1241
      %1263 = vmatprep.subr.bf16.mxu0 0
      %1264 = vmatpush1.bf16.msra.mxu0 %v1240
      %1265 = vmatprep.subr.bf16.mxu0 0
      %1266 = vmatpush1.bf16.msra.mxu0 %v1239
      %1267 = vmatprep.subr.bf16.mxu0 0
      %1268 = vmatpush1.bf16.msra.mxu0 %v1238
      %1269 = vmatprep.subr.bf16.mxu0 0
      %1270 = vmatpush2.bf16.msra.mxu0 0
      %1271 = vmatprep.subr.bf16.mxu0 0
      %1272 = vmatpush2.bf16.msra.mxu0 0
      %1273 = vmatprep.subr.bf16.mxu0 0
      %1274 = vmatpush2.bf16.msra.mxu0 0
      %1275 = vmatprep.subr.bf16.mxu0 0
      %1276 = vmatpush2.bf16.msra.mxu0 0
      %1277 = vmatprep.subr.bf16.mxu0 0
      %1278 = vmatpush2.bf16.msra.mxu0 0
      %1279 = vmatprep.subr.bf16.mxu0 0
      %1280 = vmatpush2.bf16.msra.mxu0 0
      %1281 = vmatprep.subr.bf16.mxu0 0
      %1282 = vmatpush2.bf16.msra.mxu0 0
      %1283 = vmatprep.subr.bf16.mxu0 0
      %1284 = vmatpush2.bf16.msra.mxu0 0
      %1285 = vmatprep.mubr.bf16.mxu0 0
      %1286 = vmatmul.mubr.bf16.gmra.mxu0 %v1078
      %v1287 = vpop.f32.mrf.mxu0
      %v1288 = vadd.f32 %v1251, %v1287
      %v1289 = vpop.f32.mrf.mxu0
      %v1290 = vpop.f32.mrf.mxu0
      %v1291 = vpop.f32.mrf.mxu0
      %1292 = vdwg.mxu0
      %v1293 = vpack.c.bf16 %v1150, %v1150
      %v1294 = vpack.c.bf16 %v1217, %v1217
      %v1296 = vlaneseq
      %v1297 = vshrl.u32 %v1296, 7
      %v1298 = vsub.s32 0, %v1297
      %v1299 = vrot.slane %v1049, %v1298
      %vm1301 = vcmask 261120
      %v1303 = vsel %vm1301, %v1293, 0
      %v1306 = vsel %vm1301, %v1294, 0
      %1308 = vmatprep.subr.bf16.mxu0 0
      %1309 = vmatpush1.bf16.xpose.msra.mxu0 0
      %1310 = vmatprep.subr.bf16.mxu0 0
      %1311 = vmatpush1.bf16.xpose.msra.mxu0 0
      %1312 = vmatprep.subr.bf16.mxu0 0
      %1313 = vmatpush1.bf16.xpose.msra.mxu0 0
      %1314 = vmatprep.subr.bf16.mxu0 0
      %1315 = vmatpush1.bf16.xpose.msra.mxu0 0
      %1316 = vmatprep.subr.bf16.mxu0 0
      %1317 = vmatpush1.bf16.xpose.msra.mxu0 0
      %1318 = vmatprep.subr.bf16.mxu0 0
      %1319 = vmatpush1.bf16.xpose.msra.mxu0 0
      %1320 = vmatprep.subr.bf16.mxu0 0
      %1321 = vmatpush1.bf16.xpose.msra.mxu0 0
      %1322 = vmatprep.subr.bf16.mxu0 0
      %1323 = vmatpush1.bf16.xpose.msra.mxu0 %v1306
      %1324 = vmatprep.subr.bf16.mxu0 0
      %1325 = vmatpush2.bf16.xpose.msra.mxu0 0
      %1326 = vmatprep.subr.bf16.mxu0 0
      %1327 = vmatpush2.bf16.xpose.msra.mxu0 0
      %1328 = vmatprep.subr.bf16.mxu0 0
      %1329 = vmatpush2.bf16.xpose.msra.mxu0 0
      %1330 = vmatprep.subr.bf16.mxu0 0
      %1331 = vmatpush2.bf16.xpose.msra.mxu0 0
      %1332 = vmatprep.subr.bf16.mxu0 0
      %1333 = vmatpush2.bf16.xpose.msra.mxu0 0
      %1334 = vmatprep.subr.bf16.mxu0 0
      %1335 = vmatpush2.bf16.xpose.msra.mxu0 0
      %1336 = vmatprep.subr.bf16.mxu0 0
      %1337 = vmatpush2.bf16.xpose.msra.mxu0 0
      %1338 = vmatprep.subr.bf16.mxu0 0
      %1339 = vmatpush2.bf16.xpose.msra.mxu0 0
      %1340 = vmatprep.mubr.bf16.mxu0 0
      %1341 = vmatmul.mubr.bf16.gmra.mxu0 %v1303
      %v1342 = vpop.f32.mrf.mxu0
      %v1343 = vadd.f32 %v1299, %v1342
      %v1344 = vpop.f32.mrf.mxu0
      %v1345 = vpop.f32.mrf.mxu0
      %v1346 = vpop.f32.mrf.mxu0
      %1347 = vdwg.mxu0
      %vm1348 = vcmask 64512
      %v1349 = vsel %vm1348, %v1343, -inf
      %1350 = vmax.xlane.f32.xlu0 %v1349
      %v1351 = vpop.xlane.xlu0 %1350
      %v1352 = vsub.f32 %v1343, %v1351
      %v1353 = vmul.f32 %v1352, 1.442695
      %v1354 = vpow.pop %v1353
      %v1355 = vsel %vm1348, %v1354, 0.0
      %1356 = vadd.xlane.f32.xlu0 %v1355
      %v1357 = vpop.xlane.xlu0 %1356
      %v1358 = vrcp.pop %v1357
      %v1359 = vmul.f32 %v1354, %v1358
      %v1360 = vpack.c.bf16 %v1359, %v1359
      %v1361 = vpack.c.bf16 %v1288, %v1288
      %v1363 = vsel %vm1348, %v1360, 0
      %vm1365 = vcmask 1043456
      %v1367 = vsel %vm1365, %v1361, 0
      %1369 = vmatprep.subr.bf16.mxu0 0
      %1370 = vmatpush1.bf16.msra.mxu0 0
      %1371 = vmatprep.subr.bf16.mxu0 0
      %1372 = vmatpush1.bf16.msra.mxu0 0
      %1373 = vmatprep.subr.bf16.mxu0 0
      %1374 = vmatpush1.bf16.msra.mxu0 0
      %1375 = vmatprep.subr.bf16.mxu0 0
      %1376 = vmatpush1.bf16.msra.mxu0 0
      %1377 = vmatprep.subr.bf16.mxu0 0
      %1378 = vmatpush1.bf16.msra.mxu0 0
      %1379 = vmatprep.subr.bf16.mxu0 0
      %1380 = vmatpush1.bf16.msra.mxu0 0
      %1381 = vmatprep.subr.bf16.mxu0 0
      %1382 = vmatpush1.bf16.msra.mxu0 0
      %1383 = vmatprep.subr.bf16.mxu0 0
      %1384 = vmatpush1.bf16.msra.mxu0 %v1367
      %1385 = vmatprep.subr.bf16.mxu0 0
      %1386 = vmatpush2.bf16.msra.mxu0 0
      %1387 = vmatprep.subr.bf16.mxu0 0
      %1388 = vmatpush2.bf16.msra.mxu0 0
      %1389 = vmatprep.subr.bf16.mxu0 0
      %1390 = vmatpush2.bf16.msra.mxu0 0
      %1391 = vmatprep.subr.bf16.mxu0 0
      %1392 = vmatpush2.bf16.msra.mxu0 0
      %1393 = vmatprep.subr.bf16.mxu0 0
      %1394 = vmatpush2.bf16.msra.mxu0 0
      %1395 = vmatprep.subr.bf16.mxu0 0
      %1396 = vmatpush2.bf16.msra.mxu0 0
      %1397 = vmatprep.subr.bf16.mxu0 0
      %1398 = vmatpush2.bf16.msra.mxu0 0
      %1399 = vmatprep.subr.bf16.mxu0 0
      %1400 = vmatpush2.bf16.msra.mxu0 0
      %1401 = vmatprep.mubr.bf16.mxu0 0
      %1402 = vmatmul.mubr.bf16.gmra.mxu0 %v1363
      %v1403 = vpop.f32.mrf.mxu0
      %v1404 = vadd.f32 0.0, %v1403
      %v1405 = vpop.f32.mrf.mxu0
      %v1406 = vpop.f32.mrf.mxu0
      %v1407 = vpop.f32.mrf.mxu0
      %1408 = vdwg.mxu0
      %v1409 = vpack.c.bf16 %v1404, %v1404
      %v1410 = vld [vmem:[%s946] sm:$0xff]
      %v1411 = vld [vmem:[%s946 + $0x8] sm:$0xff]
      %v1412 = vld [vmem:[%s946 + $0x10] sm:$0xff]
      %v1413 = vld [vmem:[%s946 + $0x18] sm:$0xff]
      %v1414 = vpack.c.bf16 %v1411, %v1410
      %v1415 = vpack.c.bf16 %v1413, %v1412
      %s1416 = scalar_lea.vmem %s919, 128
      %v1417 = vld [vmem:[%s1416] sm:$0xff]
      %v1418 = vld [vmem:[%s1416 + $0x8] sm:$0xff]
      %v1419 = vld [vmem:[%s1416 + $0x10] sm:$0xff]
      %v1420 = vld [vmem:[%s1416 + $0x18] sm:$0xff]
      %v1421 = vld [vmem:[%s1416 + $0x20] sm:$0xff]
      %v1422 = vld [vmem:[%s1416 + $0x28] sm:$0xff]
      %v1423 = vld [vmem:[%s1416 + $0x30] sm:$0xff]
      %v1424 = vld [vmem:[%s1416 + $0x38] sm:$0xff]
      %v1425 = vld [vmem:[%s1416 + $0x40] sm:$0xff]
      %v1426 = vld [vmem:[%s1416 + $0x48] sm:$0xff]
      %v1427 = vld [vmem:[%s1416 + $0x50] sm:$0xff]
      %v1428 = vld [vmem:[%s1416 + $0x58] sm:$0xff]
      %v1429 = vld [vmem:[%s1416 + $0x60] sm:$0xff]
      %v1430 = vld [vmem:[%s1416 + $0x68] sm:$0xff]
      %v1431 = vld [vmem:[%s1416 + $0x70] sm:$0xff]
      %v1432 = vld [vmem:[%s1416 + $0x78] sm:$0xff]
      %v1433 = vpack.c.bf16 %v1418, %v1417
      %v1434 = vpack.c.bf16 %v1420, %v1419
      %v1435 = vpack.c.bf16 %v1422, %v1421
      %v1436 = vpack.c.bf16 %v1424, %v1423
      %v1437 = vpack.c.bf16 %v1426, %v1425
      %v1438 = vpack.c.bf16 %v1428, %v1427
      %v1439 = vpack.c.bf16 %v1430, %v1429
      %v1440 = vpack.c.bf16 %v1432, %v1431
      %s1441 = scalar_lea.vmem %s923, 1
      %v1442 = vld [vmem:[%s1441] sm:$0x1]
      %v1444 = vlaneseq
      %v1445 = vshrl.u32 %v1444, 7
      %v1446 = vsub.s32 0, %v1445
      %v1447 = vrot.slane %v1442, %v1446
      %1449 = vmatprep.subr.bf16.mxu0 0
      %1450 = vmatpush1.bf16.msra.mxu0 %v1440
      %1451 = vmatprep.subr.bf16.mxu0 0
      %1452 = vmatpush1.bf16.msra.mxu0 %v1439
      %1453 = vmatprep.subr.bf16.mxu0 0
      %1454 = vmatpush1.bf16.msra.mxu0 %v1438
      %1455 = vmatprep.subr.bf16.mxu0 0
      %1456 = vmatpush1.bf16.msra.mxu0 %v1437
      %1457 = vmatprep.subr.bf16.mxu0 0
      %1458 = vmatpush1.bf16.msra.mxu0 %v1436
      %1459 = vmatprep.subr.bf16.mxu0 0
      %1460 = vmatpush1.bf16.msra.mxu0 %v1435
      %1461 = vmatprep.subr.bf16.mxu0 0
      %1462 = vmatpush1.bf16.msra.mxu0 %v1434
      %1463 = vmatprep.subr.bf16.mxu0 0
      %1464 = vmatpush1.bf16.msra.mxu0 %v1433
      %1465 = vmatprep.subr.bf16.mxu0 0
      %1466 = vmatpush2.bf16.msra.mxu0 0
      %1467 = vmatprep.subr.bf16.mxu0 0
      %1468 = vmatpush2.bf16.msra.mxu0 0
      %1469 = vmatprep.subr.bf16.mxu0 0
      %1470 = vmatpush2.bf16.msra.mxu0 0
      %1471 = vmatprep.subr.bf16.mxu0 0
      %1472 = vmatpush2.bf16.msra.mxu0 0
      %1473 = vmatprep.subr.bf16.mxu0 0
      %1474 = vmatpush2.bf16.msra.mxu0 0
      %1475 = vmatprep.subr.bf16.mxu0 0
      %1476 = vmatpush2.bf16.msra.mxu0 0
      %1477 = vmatprep.subr.bf16.mxu0 0
      %1478 = vmatpush2.bf16.msra.mxu0 0
      %1479 = vmatprep.subr.bf16.mxu0 0
      %1480 = vmatpush2.bf16.msra.mxu0 0
      %1481 = vmatprep.mubr.bf16.mxu0 0
      %1482 = vmatmul.mubr.bf16.gmra.mxu0 %v1078
      %v1483 = vpop.f32.mrf.mxu0
      %v1484 = vadd.f32 %v1447, %v1483
      %v1485 = vpop.f32.mrf.mxu0
      %v1486 = vpop.f32.mrf.mxu0
      %v1487 = vpop.f32.mrf.mxu0
      %1488 = vdwg.mxu0
      %v1489 = vmul.f32 %v1484, 0.17677669
      %s1490 = scalar_lea.vmem %s928, 128
      %v1491 = vld [vmem:[%s1490] sm:$0xff]
      %v1492 = vld [vmem:[%s1490 + $0x8] sm:$0xff]
      %v1493 = vld [vmem:[%s1490 + $0x10] sm:$0xff]
      %v1494 = vld [vmem:[%s1490 + $0x18] sm:$0xff]
      %v1495 = vld [vmem:[%s1490 + $0x20] sm:$0xff]
      %v1496 = vld [vmem:[%s1490 + $0x28] sm:$0xff]
      %v1497 = vld [vmem:[%s1490 + $0x30] sm:$0xff]
      %v1498 = vld [vmem:[%s1490 + $0x38] sm:$0xff]
      %v1499 = vld [vmem:[%s1490 + $0x40] sm:$0xff]
      %v1500 = vld [vmem:[%s1490 + $0x48] sm:$0xff]
      %v1501 = vld [vmem:[%s1490 + $0x50] sm:$0xff]
      %v1502 = vld [vmem:[%s1490 + $0x58] sm:$0xff]
      %v1503 = vld [vmem:[%s1490 + $0x60] sm:$0xff]
      %v1504 = vld [vmem:[%s1490 + $0x68] sm:$0xff]
      %v1505 = vld [vmem:[%s1490 + $0x70] sm:$0xff]
      %v1506 = vld [vmem:[%s1490 + $0x78] sm:$0xff]
      %v1507 = vpack.c.bf16 %v1492, %v1491
      %v1508 = vpack.c.bf16 %v1494, %v1493
      %v1509 = vpack.c.bf16 %v1496, %v1495
      %v1510 = vpack.c.bf16 %v1498, %v1497
      %v1511 = vpack.c.bf16 %v1500, %v1499
      %v1512 = vpack.c.bf16 %v1502, %v1501
      %v1513 = vpack.c.bf16 %v1504, %v1503
      %v1514 = vpack.c.bf16 %v1506, %v1505
      %s1515 = scalar_lea.vmem %s932, 1
      %v1516 = vld [vmem:[%s1515] sm:$0x1]
      %v1518 = vlaneseq
      %v1519 = vshrl.u32 %v1518, 7
      %v1520 = vsub.s32 0, %v1519
      %v1521 = vrot.slane %v1516, %v1520
      %1523 = vmatprep.subr.bf16.mxu0 0
      %1524 = vmatpush1.bf16.msra.mxu0 %v1514
      %1525 = vmatprep.subr.bf16.mxu0 0
      %1526 = vmatpush1.bf16.msra.mxu0 %v1513
      %1527 = vmatprep.subr.bf16.mxu0 0
      %1528 = vmatpush1.bf16.msra.mxu0 %v1512
      %1529 = vmatprep.subr.bf16.mxu0 0
      %1530 = vmatpush1.bf16.msra.mxu0 %v1511
      %1531 = vmatprep.subr.bf16.mxu0 0
      %1532 = vmatpush1.bf16.msra.mxu0 %v1510
      %1533 = vmatprep.subr.bf16.mxu0 0
      %1534 = vmatpush1.bf16.msra.mxu0 %v1509
      %1535 = vmatprep.subr.bf16.mxu0 0
      %1536 = vmatpush1.bf16.msra.mxu0 %v1508
      %1537 = vmatprep.subr.bf16.mxu0 0
      %1538 = vmatpush1.bf16.msra.mxu0 %v1507
      %1539 = vmatprep.subr.bf16.mxu0 0
      %1540 = vmatpush2.bf16.msra.mxu0 0
      %1541 = vmatprep.subr.bf16.mxu0 0
      %1542 = vmatpush2.bf16.msra.mxu0 0
      %1543 = vmatprep.subr.bf16.mxu0 0
      %1544 = vmatpush2.bf16.msra.mxu0 0
      %1545 = vmatprep.subr.bf16.mxu0 0
      %1546 = vmatpush2.bf16.msra.mxu0 0
      %1547 = vmatprep.subr.bf16.mxu0 0
      %1548 = vmatpush2.bf16.msra.mxu0 0
      %1549 = vmatprep.subr.bf16.mxu0 0
      %1550 = vmatpush2.bf16.msra.mxu0 0
      %1551 = vmatprep.subr.bf16.mxu0 0
      %1552 = vmatpush2.bf16.msra.mxu0 0
      %1553 = vmatprep.subr.bf16.mxu0 0
      %1554 = vmatpush2.bf16.msra.mxu0 0
      %1555 = vmatprep.mubr.bf16.mxu0 0
      %1556 = vmatmul.mubr.bf16.gmra.mxu0 %v1078
      %v1557 = vpop.f32.mrf.mxu0
      %v1558 = vadd.f32 %v1521, %v1557
      %v1559 = vpop.f32.mrf.mxu0
      %v1560 = vpop.f32.mrf.mxu0
      %v1561 = vpop.f32.mrf.mxu0
      %1562 = vdwg.mxu0
      %s1563 = scalar_lea.vmem %s937, 128
      %v1564 = vld [vmem:[%s1563] sm:$0xff]
      %v1565 = vld [vmem:[%s1563 + $0x8] sm:$0xff]
      %v1566 = vld [vmem:[%s1563 + $0x10] sm:$0xff]
      %v1567 = vld [vmem:[%s1563 + $0x18] sm:$0xff]
      %v1568 = vld [vmem:[%s1563 + $0x20] sm:$0xff]
      %v1569 = vld [vmem:[%s1563 + $0x28] sm:$0xff]
      %v1570 = vld [vmem:[%s1563 + $0x30] sm:$0xff]
      %v1571 = vld [vmem:[%s1563 + $0x38] sm:$0xff]
      %v1572 = vld [vmem:[%s1563 + $0x40] sm:$0xff]
      %v1573 = vld [vmem:[%s1563 + $0x48] sm:$0xff]
      %v1574 = vld [vmem:[%s1563 + $0x50] sm:$0xff]
      %v1575 = vld [vmem:[%s1563 + $0x58] sm:$0xff]
      %v1576 = vld [vmem:[%s1563 + $0x60] sm:$0xff]
      %v1577 = vld [vmem:[%s1563 + $0x68] sm:$0xff]
      %v1578 = vld [vmem:[%s1563 + $0x70] sm:$0xff]
      %v1579 = vld [vmem:[%s1563 + $0x78] sm:$0xff]
      %v1580 = vpack.c.bf16 %v1565, %v1564
      %v1581 = vpack.c.bf16 %v1567, %v1566
      %v1582 = vpack.c.bf16 %v1569, %v1568
      %v1583 = vpack.c.bf16 %v1571, %v1570
      %v1584 = vpack.c.bf16 %v1573, %v1572
      %v1585 = vpack.c.bf16 %v1575, %v1574
      %v1586 = vpack.c.bf16 %v1577, %v1576
      %v1587 = vpack.c.bf16 %v1579, %v1578
      %s1588 = scalar_lea.vmem %s941, 1
      %v1589 = vld [vmem:[%s1588] sm:$0x1]
      %v1591 = vlaneseq
      %v1592 = vshrl.u32 %v1591, 7
      %v1593 = vsub.s32 0, %v1592
      %v1594 = vrot.slane %v1589, %v1593
      %1596 = vmatprep.subr.bf16.mxu0 0
      %1597 = vmatpush1.bf16.msra.mxu0 %v1587
      %1598 = vmatprep.subr.bf16.mxu0 0
      %1599 = vmatpush1.bf16.msra.mxu0 %v1586
      %1600 = vmatprep.subr.bf16.mxu0 0
      %1601 = vmatpush1.bf16.msra.mxu0 %v1585
      %1602 = vmatprep.subr.bf16.mxu0 0
      %1603 = vmatpush1.bf16.msra.mxu0 %v1584
      %1604 = vmatprep.subr.bf16.mxu0 0
      %1605 = vmatpush1.bf16.msra.mxu0 %v1583
      %1606 = vmatprep.subr.bf16.mxu0 0
      %1607 = vmatpush1.bf16.msra.mxu0 %v1582
      %1608 = vmatprep.subr.bf16.mxu0 0
      %1609 = vmatpush1.bf16.msra.mxu0 %v1581
      %1610 = vmatprep.subr.bf16.mxu0 0
      %1611 = vmatpush1.bf16.msra.mxu0 %v1580
      %1612 = vmatprep.subr.bf16.mxu0 0
      %1613 = vmatpush2.bf16.msra.mxu0 0
      %1614 = vmatprep.subr.bf16.mxu0 0
      %1615 = vmatpush2.bf16.msra.mxu0 0
      %1616 = vmatprep.subr.bf16.mxu0 0
      %1617 = vmatpush2.bf16.msra.mxu0 0
      %1618 = vmatprep.subr.bf16.mxu0 0
      %1619 = vmatpush2.bf16.msra.mxu0 0
      %1620 = vmatprep.subr.bf16.mxu0 0
      %1621 = vmatpush2.bf16.msra.mxu0 0
      %1622 = vmatprep.subr.bf16.mxu0 0
      %1623 = vmatpush2.bf16.msra.mxu0 0
      %1624 = vmatprep.subr.bf16.mxu0 0
      %1625 = vmatpush2.bf16.msra.mxu0 0
      %1626 = vmatprep.subr.bf16.mxu0 0
      %1627 = vmatpush2.bf16.msra.mxu0 0
      %1628 = vmatprep.mubr.bf16.mxu0 0
      %1629 = vmatmul.mubr.bf16.gmra.mxu0 %v1078
      %v1630 = vpop.f32.mrf.mxu0
      %v1631 = vadd.f32 %v1594, %v1630
      %v1632 = vpop.f32.mrf.mxu0
      %v1633 = vpop.f32.mrf.mxu0
      %v1634 = vpop.f32.mrf.mxu0
      %1635 = vdwg.mxu0
      %v1636 = vpack.c.bf16 %v1489, %v1489
      %v1637 = vpack.c.bf16 %v1558, %v1558
      %v1639 = vsel %vm1301, %v1636, 0
      %v1642 = vsel %vm1301, %v1637, 0
      %1644 = vmatprep.subr.bf16.mxu0 0
      %1645 = vmatpush1.bf16.xpose.msra.mxu0 0
      %1646 = vmatprep.subr.bf16.mxu0 0
      %1647 = vmatpush1.bf16.xpose.msra.mxu0 0
      %1648 = vmatprep.subr.bf16.mxu0 0
      %1649 = vmatpush1.bf16.xpose.msra.mxu0 0
      %1650 = vmatprep.subr.bf16.mxu0 0
      %1651 = vmatpush1.bf16.xpose.msra.mxu0 0
      %1652 = vmatprep.subr.bf16.mxu0 0
      %1653 = vmatpush1.bf16.xpose.msra.mxu0 0
      %1654 = vmatprep.subr.bf16.mxu0 0
      %1655 = vmatpush1.bf16.xpose.msra.mxu0 0
      %1656 = vmatprep.subr.bf16.mxu0 0
      %1657 = vmatpush1.bf16.xpose.msra.mxu0 0
      %1658 = vmatprep.subr.bf16.mxu0 0
      %1659 = vmatpush1.bf16.xpose.msra.mxu0 %v1642
      %1660 = vmatprep.subr.bf16.mxu0 0
      %1661 = vmatpush2.bf16.xpose.msra.mxu0 0
      %1662 = vmatprep.subr.bf16.mxu0 0
      %1663 = vmatpush2.bf16.xpose.msra.mxu0 0
      %1664 = vmatprep.subr.bf16.mxu0 0
      %1665 = vmatpush2.bf16.xpose.msra.mxu0 0
      %1666 = vmatprep.subr.bf16.mxu0 0
      %1667 = vmatpush2.bf16.xpose.msra.mxu0 0
      %1668 = vmatprep.subr.bf16.mxu0 0
      %1669 = vmatpush2.bf16.xpose.msra.mxu0 0
      %1670 = vmatprep.subr.bf16.mxu0 0
      %1671 = vmatpush2.bf16.xpose.msra.mxu0 0
      %1672 = vmatprep.subr.bf16.mxu0 0
      %1673 = vmatpush2.bf16.xpose.msra.mxu0 0
      %1674 = vmatprep.subr.bf16.mxu0 0
      %1675 = vmatpush2.bf16.xpose.msra.mxu0 0
      %1676 = vmatprep.mubr.bf16.mxu0 0
      %1677 = vmatmul.mubr.bf16.gmra.mxu0 %v1639
      %v1678 = vpop.f32.mrf.mxu0
      %v1679 = vadd.f32 %v1299, %v1678
      %v1680 = vpop.f32.mrf.mxu0
      %v1681 = vpop.f32.mrf.mxu0
      %v1682 = vpop.f32.mrf.mxu0
      %1683 = vdwg.mxu0
      %v1684 = vsel %vm1348, %v1679, -inf
      %1685 = vmax.xlane.f32.xlu0 %v1684
      %v1686 = vpop.xlane.xlu0 %1685
      %v1687 = vsub.f32 %v1679, %v1686
      %v1688 = vmul.f32 %v1687, 1.442695
      %v1689 = vpow.pop %v1688
      %v1690 = vsel %vm1348, %v1689, 0.0
      %1691 = vadd.xlane.f32.xlu0 %v1690
      %v1692 = vpop.xlane.xlu0 %1691
      %v1693 = vrcp.pop %v1692
      %v1694 = vmul.f32 %v1689, %v1693
      %v1695 = vpack.c.bf16 %v1694, %v1694
      %v1696 = vpack.c.bf16 %v1631, %v1631
      %v1698 = vsel %vm1348, %v1695, 0
      %v1701 = vsel %vm1365, %v1696, 0
      %1703 = vmatprep.subr.bf16.mxu0 0
      %1704 = vmatpush1.bf16.msra.mxu0 0
      %1705 = vmatprep.subr.bf16.mxu0 0
      %1706 = vmatpush1.bf16.msra.mxu0 0
      %1707 = vmatprep.subr.bf16.mxu0 0
      %1708 = vmatpush1.bf16.msra.mxu0 0
      %1709 = vmatprep.subr.bf16.mxu0 0
      %1710 = vmatpush1.bf16.msra.mxu0 0
      %1711 = vmatprep.subr.bf16.mxu0 0
      %1712 = vmatpush1.bf16.msra.mxu0 0
      %1713 = vmatprep.subr.bf16.mxu0 0
      %1714 = vmatpush1.bf16.msra.mxu0 0
      %1715 = vmatprep.subr.bf16.mxu0 0
      %1716 = vmatpush1.bf16.msra.mxu0 0
      %1717 = vmatprep.subr.bf16.mxu0 0
      %1718 = vmatpush1.bf16.msra.mxu0 %v1701
      %1719 = vmatprep.subr.bf16.mxu0 0
      %1720 = vmatpush2.bf16.msra.mxu0 0
      %1721 = vmatprep.subr.bf16.mxu0 0
      %1722 = vmatpush2.bf16.msra.mxu0 0
      %1723 = vmatprep.subr.bf16.mxu0 0
      %1724 = vmatpush2.bf16.msra.mxu0 0
      %1725 = vmatprep.subr.bf16.mxu0 0
      %1726 = vmatpush2.bf16.msra.mxu0 0
      %1727 = vmatprep.subr.bf16.mxu0 0
      %1728 = vmatpush2.bf16.msra.mxu0 0
      %1729 = vmatprep.subr.bf16.mxu0 0
      %1730 = vmatpush2.bf16.msra.mxu0 0
      %1731 = vmatprep.subr.bf16.mxu0 0
      %1732 = vmatpush2.bf16.msra.mxu0 0
      %1733 = vmatprep.subr.bf16.mxu0 0
      %1734 = vmatpush2.bf16.msra.mxu0 0
      %1735 = vmatprep.mubr.bf16.mxu0 0
      %1736 = vmatmul.mubr.bf16.gmra.mxu0 %v1698
      %v1737 = vpop.f32.mrf.mxu0
      %v1738 = vadd.f32 0.0, %v1737
      %v1739 = vpop.f32.mrf.mxu0
      %v1740 = vpop.f32.mrf.mxu0
      %v1741 = vpop.f32.mrf.mxu0
      %1742 = vdwg.mxu0
      %v1743 = vpack.c.bf16 %v1738, %v1738
      %s1744 = scalar_lea.vmem %s946, 32
      %v1745 = vld [vmem:[%s1744] sm:$0xff]
      %v1746 = vld [vmem:[%s1744 + $0x8] sm:$0xff]
      %v1747 = vld [vmem:[%s1744 + $0x10] sm:$0xff]
      %v1748 = vld [vmem:[%s1744 + $0x18] sm:$0xff]
      %v1749 = vpack.c.bf16 %v1746, %v1745
      %v1750 = vpack.c.bf16 %v1748, %v1747
      %v1752 = vsel %vm1301, %v1743, 0
      %1754 = vmatprep.subr.bf16.mxu0 0
      %1755 = vmatpush1.bf16.msra.mxu0 0
      %1756 = vmatprep.subr.bf16.mxu0 0
      %1757 = vmatpush1.bf16.msra.mxu0 0
      %1758 = vmatprep.subr.bf16.mxu0 0
      %1759 = vmatpush1.bf16.msra.mxu0 0
      %1760 = vmatprep.subr.bf16.mxu0 0
      %1761 = vmatpush1.bf16.msra.mxu0 0
      %1762 = vmatprep.subr.bf16.mxu0 0
      %1763 = vmatpush1.bf16.msra.mxu0 0
      %1764 = vmatprep.subr.bf16.mxu0 0
      %1765 = vmatpush1.bf16.msra.mxu0 0
      %1766 = vmatprep.subr.bf16.mxu0 0
      %1767 = vmatpush1.bf16.msra.mxu0 %v1750
      %1768 = vmatprep.subr.bf16.mxu0 0
      %1769 = vmatpush1.bf16.msra.mxu0 %v1749
      %1770 = vmatprep.subr.bf16.mxu0 0
      %1771 = vmatpush2.bf16.msra.mxu0 0
      %1772 = vmatprep.subr.bf16.mxu0 0
      %1773 = vmatpush2.bf16.msra.mxu0 0
      %1774 = vmatprep.subr.bf16.mxu0 0
      %1775 = vmatpush2.bf16.msra.mxu0 0
      %1776 = vmatprep.subr.bf16.mxu0 0
      %1777 = vmatpush2.bf16.msra.mxu0 0
      %1778 = vmatprep.subr.bf16.mxu0 0
      %1779 = vmatpush2.bf16.msra.mxu0 0
      %1780 = vmatprep.subr.bf16.mxu0 0
      %1781 = vmatpush2.bf16.msra.mxu0 0
      %1782 = vmatprep.subr.bf16.mxu0 0
      %1783 = vmatpush2.bf16.msra.mxu0 0
      %1784 = vmatprep.subr.bf16.mxu0 0
      %1785 = vmatpush2.bf16.msra.mxu0 0
      %1786 = vmatprep.mubr.bf16.mxu0 0
      %1787 = vmatmul.mubr.bf16.gmra.mxu0 %v1752
      %v1788 = vpop.f32.mrf.mxu0
      %v1789 = vadd.f32 0.0, %v1788
      %v1790 = vpop.f32.mrf.mxu0
      %v1791 = vpop.f32.mrf.mxu0
      %v1792 = vpop.f32.mrf.mxu0
      %1793 = vdwg.mxu0
      %v1795 = vsel %vm1301, %v1409, 0
      %1797 = vmatprep.subr.bf16.mxu0 0
      %1798 = vmatpush1.bf16.msra.mxu0 0
      %1799 = vmatprep.subr.bf16.mxu0 0
      %1800 = vmatpush1.bf16.msra.mxu0 0
      %1801 = vmatprep.subr.bf16.mxu0 0
      %1802 = vmatpush1.bf16.msra.mxu0 0
      %1803 = vmatprep.subr.bf16.mxu0 0
      %1804 = vmatpush1.bf16.msra.mxu0 0
      %1805 = vmatprep.subr.bf16.mxu0 0
      %1806 = vmatpush1.bf16.msra.mxu0 0
      %1807 = vmatprep.subr.bf16.mxu0 0
      %1808 = vmatpush1.bf16.msra.mxu0 0
      %1809 = vmatprep.subr.bf16.mxu0 0
      %1810 = vmatpush1.bf16.msra.mxu0 %v1415
      %1811 = vmatprep.subr.bf16.mxu0 0
      %1812 = vmatpush1.bf16.msra.mxu0 %v1414
      %1813 = vmatprep.subr.bf16.mxu0 0
      %1814 = vmatpush2.bf16.msra.mxu0 0
      %1815 = vmatprep.subr.bf16.mxu0 0
      %1816 = vmatpush2.bf16.msra.mxu0 0
      %1817 = vmatprep.subr.bf16.mxu0 0
      %1818 = vmatpush2.bf16.msra.mxu0 0
      %1819 = vmatprep.subr.bf16.mxu0 0
      %1820 = vmatpush2.bf16.msra.mxu0 0
      %1821 = vmatprep.subr.bf16.mxu0 0
      %1822 = vmatpush2.bf16.msra.mxu0 0
      %1823 = vmatprep.subr.bf16.mxu0 0
      %1824 = vmatpush2.bf16.msra.mxu0 0
      %1825 = vmatprep.subr.bf16.mxu0 0
      %1826 = vmatpush2.bf16.msra.mxu0 0
      %1827 = vmatprep.subr.bf16.mxu0 0
      %1828 = vmatpush2.bf16.msra.mxu0 0
      %1829 = vmatprep.mubr.bf16.mxu0 0
      %1830 = vmatmul.mubr.bf16.gmra.mxu0 %v1795
      %v1831 = vpop.f32.mrf.mxu0
      %v1832 = vadd.f32 %v1789, %v1831
      %v1833 = vpop.f32.mrf.mxu0
      %v1834 = vpop.f32.mrf.mxu0
      %v1835 = vpop.f32.mrf.mxu0
      %1836 = vdwg.mxu0
      %s1837 = scalar_lea.vmem %s919, 256
      %v1838 = vld [vmem:[%s1837] sm:$0xff]
      %v1839 = vld [vmem:[%s1837 + $0x8] sm:$0xff]
      %v1840 = vld [vmem:[%s1837 + $0x10] sm:$0xff]
      %v1841 = vld [vmem:[%s1837 + $0x18] sm:$0xff]
      %v1842 = vld [vmem:[%s1837 + $0x20] sm:$0xff]
      %v1843 = vld [vmem:[%s1837 + $0x28] sm:$0xff]
      %v1844 = vld [vmem:[%s1837 + $0x30] sm:$0xff]
      %v1845 = vld [vmem:[%s1837 + $0x38] sm:$0xff]
      %v1846 = vld [vmem:[%s1837 + $0x40] sm:$0xff]
      %v1847 = vld [vmem:[%s1837 + $0x48] sm:$0xff]
      %v1848 = vld [vmem:[%s1837 + $0x50] sm:$0xff]
      %v1849 = vld [vmem:[%s1837 + $0x58] sm:$0xff]
      %v1850 = vld [vmem:[%s1837 + $0x60] sm:$0xff]
      %v1851 = vld [vmem:[%s1837 + $0x68] sm:$0xff]
      %v1852 = vld [vmem:[%s1837 + $0x70] sm:$0xff]
      %v1853 = vld [vmem:[%s1837 + $0x78] sm:$0xff]
      %v1854 = vpack.c.bf16 %v1839, %v1838
      %v1855 = vpack.c.bf16 %v1841, %v1840
      %v1856 = vpack.c.bf16 %v1843, %v1842
      %v1857 = vpack.c.bf16 %v1845, %v1844
      %v1858 = vpack.c.bf16 %v1847, %v1846
      %v1859 = vpack.c.bf16 %v1849, %v1848
      %v1860 = vpack.c.bf16 %v1851, %v1850
      %v1861 = vpack.c.bf16 %v1853, %v1852
      %s1862 = scalar_lea.vmem %s923, 2
      %v1863 = vld [vmem:[%s1862] sm:$0x1]
      %v1865 = vlaneseq
      %v1866 = vshrl.u32 %v1865, 7
      %v1867 = vsub.s32 0, %v1866
      %v1868 = vrot.slane %v1863, %v1867
      %1870 = vmatprep.subr.bf16.mxu0 0
      %1871 = vmatpush1.bf16.msra.mxu0 %v1861
      %1872 = vmatprep.subr.bf16.mxu0 0
      %1873 = vmatpush1.bf16.msra.mxu0 %v1860
      %1874 = vmatprep.subr.bf16.mxu0 0
      %1875 = vmatpush1.bf16.msra.mxu0 %v1859
      %1876 = vmatprep.subr.bf16.mxu0 0
      %1877 = vmatpush1.bf16.msra.mxu0 %v1858
      %1878 = vmatprep.subr.bf16.mxu0 0
      %1879 = vmatpush1.bf16.msra.mxu0 %v1857
      %1880 = vmatprep.subr.bf16.mxu0 0
      %1881 = vmatpush1.bf16.msra.mxu0 %v1856
      %1882 = vmatprep.subr.bf16.mxu0 0
      %1883 = vmatpush1.bf16.msra.mxu0 %v1855
      %1884 = vmatprep.subr.bf16.mxu0 0
      %1885 = vmatpush1.bf16.msra.mxu0 %v1854
      %1886 = vmatprep.subr.bf16.mxu0 0
      %1887 = vmatpush2.bf16.msra.mxu0 0
      %1888 = vmatprep.subr.bf16.mxu0 0
      %1889 = vmatpush2.bf16.msra.mxu0 0
      %1890 = vmatprep.subr.bf16.mxu0 0
      %1891 = vmatpush2.bf16.msra.mxu0 0
      %1892 = vmatprep.subr.bf16.mxu0 0
      %1893 = vmatpush2.bf16.msra.mxu0 0
      %1894 = vmatprep.subr.bf16.mxu0 0
      %1895 = vmatpush2.bf16.msra.mxu0 0
      %1896 = vmatprep.subr.bf16.mxu0 0
      %1897 = vmatpush2.bf16.msra.mxu0 0
      %1898 = vmatprep.subr.bf16.mxu0 0
      %1899 = vmatpush2.bf16.msra.mxu0 0
      %1900 = vmatprep.subr.bf16.mxu0 0
      %1901 = vmatpush2.bf16.msra.mxu0 0
      %1902 = vmatprep.mubr.bf16.mxu0 0
      %1903 = vmatmul.mubr.bf16.gmra.mxu0 %v1078
      %v1904 = vpop.f32.mrf.mxu0
      %v1905 = vadd.f32 %v1868, %v1904
      %v1906 = vpop.f32.mrf.mxu0
      %v1907 = vpop.f32.mrf.mxu0
      %v1908 = vpop.f32.mrf.mxu0
      %1909 = vdwg.mxu0
      %v1910 = vmul.f32 %v1905, 0.17677669
      %s1911 = scalar_lea.vmem %s928, 256
      %v1912 = vld [vmem:[%s1911] sm:$0xff]
      %v1913 = vld [vmem:[%s1911 + $0x8] sm:$0xff]
      %v1914 = vld [vmem:[%s1911 + $0x10] sm:$0xff]
      %v1915 = vld [vmem:[%s1911 + $0x18] sm:$0xff]
      %v1916 = vld [vmem:[%s1911 + $0x20] sm:$0xff]
      %v1917 = vld [vmem:[%s1911 + $0x28] sm:$0xff]
      %v1918 = vld [vmem:[%s1911 + $0x30] sm:$0xff]
      %v1919 = vld [vmem:[%s1911 + $0x38] sm:$0xff]
      %v1920 = vld [vmem:[%s1911 + $0x40] sm:$0xff]
      %v1921 = vld [vmem:[%s1911 + $0x48] sm:$0xff]
      %v1922 = vld [vmem:[%s1911 + $0x50] sm:$0xff]
      %v1923 = vld [vmem:[%s1911 + $0x58] sm:$0xff]
      %v1924 = vld [vmem:[%s1911 + $0x60] sm:$0xff]
      %v1925 = vld [vmem:[%s1911 + $0x68] sm:$0xff]
      %v1926 = vld [vmem:[%s1911 + $0x70] sm:$0xff]
      %v1927 = vld [vmem:[%s1911 + $0x78] sm:$0xff]
      %v1928 = vpack.c.bf16 %v1913, %v1912
      %v1929 = vpack.c.bf16 %v1915, %v1914
      %v1930 = vpack.c.bf16 %v1917, %v1916
      %v1931 = vpack.c.bf16 %v1919, %v1918
      %v1932 = vpack.c.bf16 %v1921, %v1920
      %v1933 = vpack.c.bf16 %v1923, %v1922
      %v1934 = vpack.c.bf16 %v1925, %v1924
      %v1935 = vpack.c.bf16 %v1927, %v1926
      %s1936 = scalar_lea.vmem %s932, 2
      %v1937 = vld [vmem:[%s1936] sm:$0x1]
      %v1939 = vlaneseq
      %v1940 = vshrl.u32 %v1939, 7
      %v1941 = vsub.s32 0, %v1940
      %v1942 = vrot.slane %v1937, %v1941
      %1944 = vmatprep.subr.bf16.mxu0 0
      %1945 = vmatpush1.bf16.msra.mxu0 %v1935
      %1946 = vmatprep.subr.bf16.mxu0 0
      %1947 = vmatpush1.bf16.msra.mxu0 %v1934
      %1948 = vmatprep.subr.bf16.mxu0 0
      %1949 = vmatpush1.bf16.msra.mxu0 %v1933
      %1950 = vmatprep.subr.bf16.mxu0 0
      %1951 = vmatpush1.bf16.msra.mxu0 %v1932
      %1952 = vmatprep.subr.bf16.mxu0 0
      %1953 = vmatpush1.bf16.msra.mxu0 %v1931
      %1954 = vmatprep.subr.bf16.mxu0 0
      %1955 = vmatpush1.bf16.msra.mxu0 %v1930
      %1956 = vmatprep.subr.bf16.mxu0 0
      %1957 = vmatpush1.bf16.msra.mxu0 %v1929
      %1958 = vmatprep.subr.bf16.mxu0 0
      %1959 = vmatpush1.bf16.msra.mxu0 %v1928
      %1960 = vmatprep.subr.bf16.mxu0 0
      %1961 = vmatpush2.bf16.msra.mxu0 0
      %1962 = vmatprep.subr.bf16.mxu0 0
      %1963 = vmatpush2.bf16.msra.mxu0 0
      %1964 = vmatprep.subr.bf16.mxu0 0
      %1965 = vmatpush2.bf16.msra.mxu0 0
      %1966 = vmatprep.subr.bf16.mxu0 0
      %1967 = vmatpush2.bf16.msra.mxu0 0
      %1968 = vmatprep.subr.bf16.mxu0 0
      %1969 = vmatpush2.bf16.msra.mxu0 0
      %1970 = vmatprep.subr.bf16.mxu0 0
      %1971 = vmatpush2.bf16.msra.mxu0 0
      %1972 = vmatprep.subr.bf16.mxu0 0
      %1973 = vmatpush2.bf16.msra.mxu0 0
      %1974 = vmatprep.subr.bf16.mxu0 0
      %1975 = vmatpush2.bf16.msra.mxu0 0
      %1976 = vmatprep.mubr.bf16.mxu0 0
      %1977 = vmatmul.mubr.bf16.gmra.mxu0 %v1078
      %v1978 = vpop.f32.mrf.mxu0
      %v1979 = vadd.f32 %v1942, %v1978
      %v1980 = vpop.f32.mrf.mxu0
      %v1981 = vpop.f32.mrf.mxu0
      %v1982 = vpop.f32.mrf.mxu0
      %1983 = vdwg.mxu0
      %s1984 = scalar_lea.vmem %s937, 256
      %v1985 = vld [vmem:[%s1984] sm:$0xff]
      %v1986 = vld [vmem:[%s1984 + $0x8] sm:$0xff]
      %v1987 = vld [vmem:[%s1984 + $0x10] sm:$0xff]
      %v1988 = vld [vmem:[%s1984 + $0x18] sm:$0xff]
      %v1989 = vld [vmem:[%s1984 + $0x20] sm:$0xff]
      %v1990 = vld [vmem:[%s1984 + $0x28] sm:$0xff]
      %v1991 = vld [vmem:[%s1984 + $0x30] sm:$0xff]
      %v1992 = vld [vmem:[%s1984 + $0x38] sm:$0xff]
      %v1993 = vld [vmem:[%s1984 + $0x40] sm:$0xff]
      %v1994 = vld [vmem:[%s1984 + $0x48] sm:$0xff]
      %v1995 = vld [vmem:[%s1984 + $0x50] sm:$0xff]
      %v1996 = vld [vmem:[%s1984 + $0x58] sm:$0xff]
      %v1997 = vld [vmem:[%s1984 + $0x60] sm:$0xff]
      %v1998 = vld [vmem:[%s1984 + $0x68] sm:$0xff]
      %v1999 = vld [vmem:[%s1984 + $0x70] sm:$0xff]
      %v2000 = vld [vmem:[%s1984 + $0x78] sm:$0xff]
      %v2001 = vpack.c.bf16 %v1986, %v1985
      %v2002 = vpack.c.bf16 %v1988, %v1987
      %v2003 = vpack.c.bf16 %v1990, %v1989
      %v2004 = vpack.c.bf16 %v1992, %v1991
      %v2005 = vpack.c.bf16 %v1994, %v1993
      %v2006 = vpack.c.bf16 %v1996, %v1995
      %v2007 = vpack.c.bf16 %v1998, %v1997
      %v2008 = vpack.c.bf16 %v2000, %v1999
      %s2009 = scalar_lea.vmem %s941, 2
      %v2010 = vld [vmem:[%s2009] sm:$0x1]
      %v2012 = vlaneseq
      %v2013 = vshrl.u32 %v2012, 7
      %v2014 = vsub.s32 0, %v2013
      %v2015 = vrot.slane %v2010, %v2014
      %2017 = vmatprep.subr.bf16.mxu0 0
      %2018 = vmatpush1.bf16.msra.mxu0 %v2008
      %2019 = vmatprep.subr.bf16.mxu0 0
      %2020 = vmatpush1.bf16.msra.mxu0 %v2007
      %2021 = vmatprep.subr.bf16.mxu0 0
      %2022 = vmatpush1.bf16.msra.mxu0 %v2006
      %2023 = vmatprep.subr.bf16.mxu0 0
      %2024 = vmatpush1.bf16.msra.mxu0 %v2005
      %2025 = vmatprep.subr.bf16.mxu0 0
      %2026 = vmatpush1.bf16.msra.mxu0 %v2004
      %2027 = vmatprep.subr.bf16.mxu0 0
      %2028 = vmatpush1.bf16.msra.mxu0 %v2003
      %2029 = vmatprep.subr.bf16.mxu0 0
      %2030 = vmatpush1.bf16.msra.mxu0 %v2002
      %2031 = vmatprep.subr.bf16.mxu0 0
      %2032 = vmatpush1.bf16.msra.mxu0 %v2001
      %2033 = vmatprep.subr.bf16.mxu0 0
      %2034 = vmatpush2.bf16.msra.mxu0 0
      %2035 = vmatprep.subr.bf16.mxu0 0
      %2036 = vmatpush2.bf16.msra.mxu0 0
      %2037 = vmatprep.subr.bf16.mxu0 0
      %2038 = vmatpush2.bf16.msra.mxu0 0
      %2039 = vmatprep.subr.bf16.mxu0 0
      %2040 = vmatpush2.bf16.msra.mxu0 0
      %2041 = vmatprep.subr.bf16.mxu0 0
      %2042 = vmatpush2.bf16.msra.mxu0 0
      %2043 = vmatprep.subr.bf16.mxu0 0
      %2044 = vmatpush2.bf16.msra.mxu0 0
      %2045 = vmatprep.subr.bf16.mxu0 0
      %2046 = vmatpush2.bf16.msra.mxu0 0
      %2047 = vmatprep.subr.bf16.mxu0 0
      %2048 = vmatpush2.bf16.msra.mxu0 0
      %2049 = vmatprep.mubr.bf16.mxu0 0
      %2050 = vmatmul.mubr.bf16.gmra.mxu0 %v1078
      %v2051 = vpop.f32.mrf.mxu0
      %v2052 = vadd.f32 %v2015, %v2051
      %v2053 = vpop.f32.mrf.mxu0
      %v2054 = vpop.f32.mrf.mxu0
      %v2055 = vpop.f32.mrf.mxu0
      %2056 = vdwg.mxu0
      %v2057 = vpack.c.bf16 %v1910, %v1910
      %v2058 = vpack.c.bf16 %v1979, %v1979
      %v2060 = vsel %vm1301, %v2057, 0
      %v2063 = vsel %vm1301, %v2058, 0
      %2065 = vmatprep.subr.bf16.mxu0 0
      %2066 = vmatpush1.bf16.xpose.msra.mxu0 0
      %2067 = vmatprep.subr.bf16.mxu0 0
      %2068 = vmatpush1.bf16.xpose.msra.mxu0 0
      %2069 = vmatprep.subr.bf16.mxu0 0
      %2070 = vmatpush1.bf16.xpose.msra.mxu0 0
      %2071 = vmatprep.subr.bf16.mxu0 0
      %2072 = vmatpush1.bf16.xpose.msra.mxu0 0
      %2073 = vmatprep.subr.bf16.mxu0 0
      %2074 = vmatpush1.bf16.xpose.msra.mxu0 0
      %2075 = vmatprep.subr.bf16.mxu0 0
      %2076 = vmatpush1.bf16.xpose.msra.mxu0 0
      %2077 = vmatprep.subr.bf16.mxu0 0
      %2078 = vmatpush1.bf16.xpose.msra.mxu0 0
      %2079 = vmatprep.subr.bf16.mxu0 0
      %2080 = vmatpush1.bf16.xpose.msra.mxu0 %v2063
      %2081 = vmatprep.subr.bf16.mxu0 0
      %2082 = vmatpush2.bf16.xpose.msra.mxu0 0
      %2083 = vmatprep.subr.bf16.mxu0 0
      %2084 = vmatpush2.bf16.xpose.msra.mxu0 0
      %2085 = vmatprep.subr.bf16.mxu0 0
      %2086 = vmatpush2.bf16.xpose.msra.mxu0 0
      %2087 = vmatprep.subr.bf16.mxu0 0
      %2088 = vmatpush2.bf16.xpose.msra.mxu0 0
      %2089 = vmatprep.subr.bf16.mxu0 0
      %2090 = vmatpush2.bf16.xpose.msra.mxu0 0
      %2091 = vmatprep.subr.bf16.mxu0 0
      %2092 = vmatpush2.bf16.xpose.msra.mxu0 0
      %2093 = vmatprep.subr.bf16.mxu0 0
      %2094 = vmatpush2.bf16.xpose.msra.mxu0 0
      %2095 = vmatprep.subr.bf16.mxu0 0
      %2096 = vmatpush2.bf16.xpose.msra.mxu0 0
      %2097 = vmatprep.mubr.bf16.mxu0 0
      %2098 = vmatmul.mubr.bf16.gmra.mxu0 %v2060
      %v2099 = vpop.f32.mrf.mxu0
      %v2100 = vadd.f32 %v1299, %v2099
      %v2101 = vpop.f32.mrf.mxu0
      %v2102 = vpop.f32.mrf.mxu0
      %v2103 = vpop.f32.mrf.mxu0
      %2104 = vdwg.mxu0
      %v2105 = vsel %vm1348, %v2100, -inf
      %2106 = vmax.xlane.f32.xlu0 %v2105
      %v2107 = vpop.xlane.xlu0 %2106
      %v2108 = vsub.f32 %v2100, %v2107
      %v2109 = vmul.f32 %v2108, 1.442695
      %v2110 = vpow.pop %v2109
      %v2111 = vsel %vm1348, %v2110, 0.0
      %2112 = vadd.xlane.f32.xlu0 %v2111
      %v2113 = vpop.xlane.xlu0 %2112
      %v2114 = vrcp.pop %v2113
      %v2115 = vmul.f32 %v2110, %v2114
      %v2116 = vpack.c.bf16 %v2115, %v2115
      %v2117 = vpack.c.bf16 %v2052, %v2052
      %v2119 = vsel %vm1348, %v2116, 0
      %v2122 = vsel %vm1365, %v2117, 0
      %2124 = vmatprep.subr.bf16.mxu0 0
      %2125 = vmatpush1.bf16.msra.mxu0 0
      %2126 = vmatprep.subr.bf16.mxu0 0
      %2127 = vmatpush1.bf16.msra.mxu0 0
      %2128 = vmatprep.subr.bf16.mxu0 0
      %2129 = vmatpush1.bf16.msra.mxu0 0
      %2130 = vmatprep.subr.bf16.mxu0 0
      %2131 = vmatpush1.bf16.msra.mxu0 0
      %2132 = vmatprep.subr.bf16.mxu0 0
      %2133 = vmatpush1.bf16.msra.mxu0 0
      %2134 = vmatprep.subr.bf16.mxu0 0
      %2135 = vmatpush1.bf16.msra.mxu0 0
      %2136 = vmatprep.subr.bf16.mxu0 0
      %2137 = vmatpush1.bf16.msra.mxu0 0
      %2138 = vmatprep.subr.bf16.mxu0 0
      %2139 = vmatpush1.bf16.msra.mxu0 %v2122
      %2140 = vmatprep.subr.bf16.mxu0 0
      %2141 = vmatpush2.bf16.msra.mxu0 0
      %2142 = vmatprep.subr.bf16.mxu0 0
      %2143 = vmatpush2.bf16.msra.mxu0 0
      %2144 = vmatprep.subr.bf16.mxu0 0
      %2145 = vmatpush2.bf16.msra.mxu0 0
      %2146 = vmatprep.subr.bf16.mxu0 0
      %2147 = vmatpush2.bf16.msra.mxu0 0
      %2148 = vmatprep.subr.bf16.mxu0 0
      %2149 = vmatpush2.bf16.msra.mxu0 0
      %2150 = vmatprep.subr.bf16.mxu0 0
      %2151 = vmatpush2.bf16.msra.mxu0 0
      %2152 = vmatprep.subr.bf16.mxu0 0
      %2153 = vmatpush2.bf16.msra.mxu0 0
      %2154 = vmatprep.subr.bf16.mxu0 0
      %2155 = vmatpush2.bf16.msra.mxu0 0
      %2156 = vmatprep.mubr.bf16.mxu0 0
      %2157 = vmatmul.mubr.bf16.gmra.mxu0 %v2119
      %v2158 = vpop.f32.mrf.mxu0
      %v2159 = vadd.f32 0.0, %v2158
      %v2160 = vpop.f32.mrf.mxu0
      %v2161 = vpop.f32.mrf.mxu0
      %v2162 = vpop.f32.mrf.mxu0
      %2163 = vdwg.mxu0
      %v2164 = vpack.c.bf16 %v2159, %v2159
      %s2165 = scalar_lea.vmem %s946, 64
      %v2166 = vld [vmem:[%s2165] sm:$0xff]
      %v2167 = vld [vmem:[%s2165 + $0x8] sm:$0xff]
      %v2168 = vld [vmem:[%s2165 + $0x10] sm:$0xff]
      %v2169 = vld [vmem:[%s2165 + $0x18] sm:$0xff]
      %v2170 = vpack.c.bf16 %v2167, %v2166
      %v2171 = vpack.c.bf16 %v2169, %v2168
      %v2173 = vsel %vm1301, %v2164, 0
      %2175 = vmatprep.subr.bf16.mxu0 0
      %2176 = vmatpush1.bf16.msra.mxu0 0
      %2177 = vmatprep.subr.bf16.mxu0 0
      %2178 = vmatpush1.bf16.msra.mxu0 0
      %2179 = vmatprep.subr.bf16.mxu0 0
      %2180 = vmatpush1.bf16.msra.mxu0 0
      %2181 = vmatprep.subr.bf16.mxu0 0
      %2182 = vmatpush1.bf16.msra.mxu0 0
      %2183 = vmatprep.subr.bf16.mxu0 0
      %2184 = vmatpush1.bf16.msra.mxu0 0
      %2185 = vmatprep.subr.bf16.mxu0 0
      %2186 = vmatpush1.bf16.msra.mxu0 0
      %2187 = vmatprep.subr.bf16.mxu0 0
      %2188 = vmatpush1.bf16.msra.mxu0 %v2171
      %2189 = vmatprep.subr.bf16.mxu0 0
      %2190 = vmatpush1.bf16.msra.mxu0 %v2170
      %2191 = vmatprep.subr.bf16.mxu0 0
      %2192 = vmatpush2.bf16.msra.mxu0 0
      %2193 = vmatprep.subr.bf16.mxu0 0
      %2194 = vmatpush2.bf16.msra.mxu0 0
      %2195 = vmatprep.subr.bf16.mxu0 0
      %2196 = vmatpush2.bf16.msra.mxu0 0
      %2197 = vmatprep.subr.bf16.mxu0 0
      %2198 = vmatpush2.bf16.msra.mxu0 0
      %2199 = vmatprep.subr.bf16.mxu0 0
      %2200 = vmatpush2.bf16.msra.mxu0 0
      %2201 = vmatprep.subr.bf16.mxu0 0
      %2202 = vmatpush2.bf16.msra.mxu0 0
      %2203 = vmatprep.subr.bf16.mxu0 0
      %2204 = vmatpush2.bf16.msra.mxu0 0
      %2205 = vmatprep.subr.bf16.mxu0 0
      %2206 = vmatpush2.bf16.msra.mxu0 0
      %2207 = vmatprep.mubr.bf16.mxu0 0
      %2208 = vmatmul.mubr.bf16.gmra.mxu0 %v2173
      %v2209 = vpop.f32.mrf.mxu0
      %v2210 = vadd.f32 0.0, %v2209
      %v2211 = vpop.f32.mrf.mxu0
      %v2212 = vpop.f32.mrf.mxu0
      %v2213 = vpop.f32.mrf.mxu0
      %2214 = vdwg.mxu0
      %v2215 = vadd.f32 %v1832, %v2210
      %s2216 = scalar_lea.vmem %s919, 384
      %v2217 = vld [vmem:[%s2216] sm:$0xff]
      %v2218 = vld [vmem:[%s2216 + $0x8] sm:$0xff]
      %v2219 = vld [vmem:[%s2216 + $0x10] sm:$0xff]
      %v2220 = vld [vmem:[%s2216 + $0x18] sm:$0xff]
      %v2221 = vld [vmem:[%s2216 + $0x20] sm:$0xff]
      %v2222 = vld [vmem:[%s2216 + $0x28] sm:$0xff]
      %v2223 = vld [vmem:[%s2216 + $0x30] sm:$0xff]
      %v2224 = vld [vmem:[%s2216 + $0x38] sm:$0xff]
      %v2225 = vld [vmem:[%s2216 + $0x40] sm:$0xff]
      %v2226 = vld [vmem:[%s2216 + $0x48] sm:$0xff]
      %v2227 = vld [vmem:[%s2216 + $0x50] sm:$0xff]
      %v2228 = vld [vmem:[%s2216 + $0x58] sm:$0xff]
      %v2229 = vld [vmem:[%s2216 + $0x60] sm:$0xff]
      %v2230 = vld [vmem:[%s2216 + $0x68] sm:$0xff]
      %v2231 = vld [vmem:[%s2216 + $0x70] sm:$0xff]
      %v2232 = vld [vmem:[%s2216 + $0x78] sm:$0xff]
      %v2233 = vpack.c.bf16 %v2218, %v2217
      %v2234 = vpack.c.bf16 %v2220, %v2219
      %v2235 = vpack.c.bf16 %v2222, %v2221
      %v2236 = vpack.c.bf16 %v2224, %v2223
      %v2237 = vpack.c.bf16 %v2226, %v2225
      %v2238 = vpack.c.bf16 %v2228, %v2227
      %v2239 = vpack.c.bf16 %v2230, %v2229
      %v2240 = vpack.c.bf16 %v2232, %v2231
      %s2241 = scalar_lea.vmem %s923, 3
      %v2242 = vld [vmem:[%s2241] sm:$0x1]
      %v2244 = vlaneseq
      %v2245 = vshrl.u32 %v2244, 7
      %v2246 = vsub.s32 0, %v2245
      %v2247 = vrot.slane %v2242, %v2246
      %2249 = vmatprep.subr.bf16.mxu0 0
      %2250 = vmatpush1.bf16.msra.mxu0 %v2240
      %2251 = vmatprep.subr.bf16.mxu0 0
      %2252 = vmatpush1.bf16.msra.mxu0 %v2239
      %2253 = vmatprep.subr.bf16.mxu0 0
      %2254 = vmatpush1.bf16.msra.mxu0 %v2238
      %2255 = vmatprep.subr.bf16.mxu0 0
      %2256 = vmatpush1.bf16.msra.mxu0 %v2237
      %2257 = vmatprep.subr.bf16.mxu0 0
      %2258 = vmatpush1.bf16.msra.mxu0 %v2236
      %2259 = vmatprep.subr.bf16.mxu0 0
      %2260 = vmatpush1.bf16.msra.mxu0 %v2235
      %2261 = vmatprep.subr.bf16.mxu0 0
      %2262 = vmatpush1.bf16.msra.mxu0 %v2234
      %2263 = vmatprep.subr.bf16.mxu0 0
      %2264 = vmatpush1.bf16.msra.mxu0 %v2233
      %2265 = vmatprep.subr.bf16.mxu0 0
      %2266 = vmatpush2.bf16.msra.mxu0 0
      %2267 = vmatprep.subr.bf16.mxu0 0
      %2268 = vmatpush2.bf16.msra.mxu0 0
      %2269 = vmatprep.subr.bf16.mxu0 0
      %2270 = vmatpush2.bf16.msra.mxu0 0
      %2271 = vmatprep.subr.bf16.mxu0 0
      %2272 = vmatpush2.bf16.msra.mxu0 0
      %2273 = vmatprep.subr.bf16.mxu0 0
      %2274 = vmatpush2.bf16.msra.mxu0 0
      %2275 = vmatprep.subr.bf16.mxu0 0
      %2276 = vmatpush2.bf16.msra.mxu0 0
      %2277 = vmatprep.subr.bf16.mxu0 0
      %2278 = vmatpush2.bf16.msra.mxu0 0
      %2279 = vmatprep.subr.bf16.mxu0 0
      %2280 = vmatpush2.bf16.msra.mxu0 0
      %2281 = vmatprep.mubr.bf16.mxu0 0
      %2282 = vmatmul.mubr.bf16.gmra.mxu0 %v1078
      %v2283 = vpop.f32.mrf.mxu0
      %v2284 = vadd.f32 %v2247, %v2283
      %v2285 = vpop.f32.mrf.mxu0
      %v2286 = vpop.f32.mrf.mxu0
      %v2287 = vpop.f32.mrf.mxu0
      %2288 = vdwg.mxu0
      %v2289 = vmul.f32 %v2284, 0.17677669
      %s2290 = scalar_lea.vmem %s928, 384
      %v2291 = vld [vmem:[%s2290] sm:$0xff]
      %v2292 = vld [vmem:[%s2290 + $0x8] sm:$0xff]
      %v2293 = vld [vmem:[%s2290 + $0x10] sm:$0xff]
      %v2294 = vld [vmem:[%s2290 + $0x18] sm:$0xff]
      %v2295 = vld [vmem:[%s2290 + $0x20] sm:$0xff]
      %v2296 = vld [vmem:[%s2290 + $0x28] sm:$0xff]
      %v2297 = vld [vmem:[%s2290 + $0x30] sm:$0xff]
      %v2298 = vld [vmem:[%s2290 + $0x38] sm:$0xff]
      %v2299 = vld [vmem:[%s2290 + $0x40] sm:$0xff]
      %v2300 = vld [vmem:[%s2290 + $0x48] sm:$0xff]
      %v2301 = vld [vmem:[%s2290 + $0x50] sm:$0xff]
      %v2302 = vld [vmem:[%s2290 + $0x58] sm:$0xff]
      %v2303 = vld [vmem:[%s2290 + $0x60] sm:$0xff]
      %v2304 = vld [vmem:[%s2290 + $0x68] sm:$0xff]
      %v2305 = vld [vmem:[%s2290 + $0x70] sm:$0xff]
      %v2306 = vld [vmem:[%s2290 + $0x78] sm:$0xff]
      %v2307 = vpack.c.bf16 %v2292, %v2291
      %v2308 = vpack.c.bf16 %v2294, %v2293
      %v2309 = vpack.c.bf16 %v2296, %v2295
      %v2310 = vpack.c.bf16 %v2298, %v2297
      %v2311 = vpack.c.bf16 %v2300, %v2299
      %v2312 = vpack.c.bf16 %v2302, %v2301
      %v2313 = vpack.c.bf16 %v2304, %v2303
      %v2314 = vpack.c.bf16 %v2306, %v2305
      %s2315 = scalar_lea.vmem %s932, 3
      %v2316 = vld [vmem:[%s2315] sm:$0x1]
      %v2318 = vlaneseq
      %v2319 = vshrl.u32 %v2318, 7
      %v2320 = vsub.s32 0, %v2319
      %v2321 = vrot.slane %v2316, %v2320
      %2323 = vmatprep.subr.bf16.mxu0 0
      %2324 = vmatpush1.bf16.msra.mxu0 %v2314
      %2325 = vmatprep.subr.bf16.mxu0 0
      %2326 = vmatpush1.bf16.msra.mxu0 %v2313
      %2327 = vmatprep.subr.bf16.mxu0 0
      %2328 = vmatpush1.bf16.msra.mxu0 %v2312
      %2329 = vmatprep.subr.bf16.mxu0 0
      %2330 = vmatpush1.bf16.msra.mxu0 %v2311
      %2331 = vmatprep.subr.bf16.mxu0 0
      %2332 = vmatpush1.bf16.msra.mxu0 %v2310
      %2333 = vmatprep.subr.bf16.mxu0 0
      %2334 = vmatpush1.bf16.msra.mxu0 %v2309
      %2335 = vmatprep.subr.bf16.mxu0 0
      %2336 = vmatpush1.bf16.msra.mxu0 %v2308
      %2337 = vmatprep.subr.bf16.mxu0 0
      %2338 = vmatpush1.bf16.msra.mxu0 %v2307
      %2339 = vmatprep.subr.bf16.mxu0 0
      %2340 = vmatpush2.bf16.msra.mxu0 0
      %2341 = vmatprep.subr.bf16.mxu0 0
      %2342 = vmatpush2.bf16.msra.mxu0 0
      %2343 = vmatprep.subr.bf16.mxu0 0
      %2344 = vmatpush2.bf16.msra.mxu0 0
      %2345 = vmatprep.subr.bf16.mxu0 0
      %2346 = vmatpush2.bf16.msra.mxu0 0
      %2347 = vmatprep.subr.bf16.mxu0 0
      %2348 = vmatpush2.bf16.msra.mxu0 0
      %2349 = vmatprep.subr.bf16.mxu0 0
      %2350 = vmatpush2.bf16.msra.mxu0 0
      %2351 = vmatprep.subr.bf16.mxu0 0
      %2352 = vmatpush2.bf16.msra.mxu0 0
      %2353 = vmatprep.subr.bf16.mxu0 0
      %2354 = vmatpush2.bf16.msra.mxu0 0
      %2355 = vmatprep.mubr.bf16.mxu0 0
      %2356 = vmatmul.mubr.bf16.gmra.mxu0 %v1078
      %v2357 = vpop.f32.mrf.mxu0
      %v2358 = vadd.f32 %v2321, %v2357
      %v2359 = vpop.f32.mrf.mxu0
      %v2360 = vpop.f32.mrf.mxu0
      %v2361 = vpop.f32.mrf.mxu0
      %2362 = vdwg.mxu0
      %s2363 = scalar_lea.vmem %s937, 384
      %v2364 = vld [vmem:[%s2363] sm:$0xff]
      %v2365 = vld [vmem:[%s2363 + $0x8] sm:$0xff]
      %v2366 = vld [vmem:[%s2363 + $0x10] sm:$0xff]
      %v2367 = vld [vmem:[%s2363 + $0x18] sm:$0xff]
      %v2368 = vld [vmem:[%s2363 + $0x20] sm:$0xff]
      %v2369 = vld [vmem:[%s2363 + $0x28] sm:$0xff]
      %v2370 = vld [vmem:[%s2363 + $0x30] sm:$0xff]
      %v2371 = vld [vmem:[%s2363 + $0x38] sm:$0xff]
      %v2372 = vld [vmem:[%s2363 + $0x40] sm:$0xff]
      %v2373 = vld [vmem:[%s2363 + $0x48] sm:$0xff]
      %v2374 = vld [vmem:[%s2363 + $0x50] sm:$0xff]
      %v2375 = vld [vmem:[%s2363 + $0x58] sm:$0xff]
      %v2376 = vld [vmem:[%s2363 + $0x60] sm:$0xff]
      %v2377 = vld [vmem:[%s2363 + $0x68] sm:$0xff]
      %v2378 = vld [vmem:[%s2363 + $0x70] sm:$0xff]
      %v2379 = vld [vmem:[%s2363 + $0x78] sm:$0xff]
      %v2380 = vpack.c.bf16 %v2365, %v2364
      %v2381 = vpack.c.bf16 %v2367, %v2366
      %v2382 = vpack.c.bf16 %v2369, %v2368
      %v2383 = vpack.c.bf16 %v2371, %v2370
      %v2384 = vpack.c.bf16 %v2373, %v2372
      %v2385 = vpack.c.bf16 %v2375, %v2374
      %v2386 = vpack.c.bf16 %v2377, %v2376
      %v2387 = vpack.c.bf16 %v2379, %v2378
      %s2388 = scalar_lea.vmem %s941, 3
      %v2389 = vld [vmem:[%s2388] sm:$0x1]
      %v2391 = vlaneseq
      %v2392 = vshrl.u32 %v2391, 7
      %v2393 = vsub.s32 0, %v2392
      %v2394 = vrot.slane %v2389, %v2393
      %2396 = vmatprep.subr.bf16.mxu0 0
      %2397 = vmatpush1.bf16.msra.mxu0 %v2387
      %2398 = vmatprep.subr.bf16.mxu0 0
      %2399 = vmatpush1.bf16.msra.mxu0 %v2386
      %2400 = vmatprep.subr.bf16.mxu0 0
      %2401 = vmatpush1.bf16.msra.mxu0 %v2385
      %2402 = vmatprep.subr.bf16.mxu0 0
      %2403 = vmatpush1.bf16.msra.mxu0 %v2384
      %2404 = vmatprep.subr.bf16.mxu0 0
      %2405 = vmatpush1.bf16.msra.mxu0 %v2383
      %2406 = vmatprep.subr.bf16.mxu0 0
      %2407 = vmatpush1.bf16.msra.mxu0 %v2382
      %2408 = vmatprep.subr.bf16.mxu0 0
      %2409 = vmatpush1.bf16.msra.mxu0 %v2381
      %2410 = vmatprep.subr.bf16.mxu0 0
      %2411 = vmatpush1.bf16.msra.mxu0 %v2380
      %2412 = vmatprep.subr.bf16.mxu0 0
      %2413 = vmatpush2.bf16.msra.mxu0 0
      %2414 = vmatprep.subr.bf16.mxu0 0
      %2415 = vmatpush2.bf16.msra.mxu0 0
      %2416 = vmatprep.subr.bf16.mxu0 0
      %2417 = vmatpush2.bf16.msra.mxu0 0
      %2418 = vmatprep.subr.bf16.mxu0 0
      %2419 = vmatpush2.bf16.msra.mxu0 0
      %2420 = vmatprep.subr.bf16.mxu0 0
      %2421 = vmatpush2.bf16.msra.mxu0 0
      %2422 = vmatprep.subr.bf16.mxu0 0
      %2423 = vmatpush2.bf16.msra.mxu0 0
      %2424 = vmatprep.subr.bf16.mxu0 0
      %2425 = vmatpush2.bf16.msra.mxu0 0
      %2426 = vmatprep.subr.bf16.mxu0 0
      %2427 = vmatpush2.bf16.msra.mxu0 0
      %2428 = vmatprep.mubr.bf16.mxu0 0
      %2429 = vmatmul.mubr.bf16.gmra.mxu0 %v1078
      %v2430 = vpop.f32.mrf.mxu0
      %v2431 = vadd.f32 %v2394, %v2430
      %v2432 = vpop.f32.mrf.mxu0
      %v2433 = vpop.f32.mrf.mxu0
      %v2434 = vpop.f32.mrf.mxu0
      %2435 = vdwg.mxu0
      %v2436 = vpack.c.bf16 %v2289, %v2289
      %v2437 = vpack.c.bf16 %v2358, %v2358
      %v2439 = vsel %vm1301, %v2436, 0
      %v2442 = vsel %vm1301, %v2437, 0
      %2444 = vmatprep.subr.bf16.mxu0 0
      %2445 = vmatpush1.bf16.xpose.msra.mxu0 0
      %2446 = vmatprep.subr.bf16.mxu0 0
      %2447 = vmatpush1.bf16.xpose.msra.mxu0 0
      %2448 = vmatprep.subr.bf16.mxu0 0
      %2449 = vmatpush1.bf16.xpose.msra.mxu0 0
      %2450 = vmatprep.subr.bf16.mxu0 0
      %2451 = vmatpush1.bf16.xpose.msra.mxu0 0
      %2452 = vmatprep.subr.bf16.mxu0 0
      %2453 = vmatpush1.bf16.xpose.msra.mxu0 0
      %2454 = vmatprep.subr.bf16.mxu0 0
      %2455 = vmatpush1.bf16.xpose.msra.mxu0 0
      %2456 = vmatprep.subr.bf16.mxu0 0
      %2457 = vmatpush1.bf16.xpose.msra.mxu0 0
      %2458 = vmatprep.subr.bf16.mxu0 0
      %2459 = vmatpush1.bf16.xpose.msra.mxu0 %v2442
      %2460 = vmatprep.subr.bf16.mxu0 0
      %2461 = vmatpush2.bf16.xpose.msra.mxu0 0
      %2462 = vmatprep.subr.bf16.mxu0 0
      %2463 = vmatpush2.bf16.xpose.msra.mxu0 0
      %2464 = vmatprep.subr.bf16.mxu0 0
      %2465 = vmatpush2.bf16.xpose.msra.mxu0 0
      %2466 = vmatprep.subr.bf16.mxu0 0
      %2467 = vmatpush2.bf16.xpose.msra.mxu0 0
      %2468 = vmatprep.subr.bf16.mxu0 0
      %2469 = vmatpush2.bf16.xpose.msra.mxu0 0
      %2470 = vmatprep.subr.bf16.mxu0 0
      %2471 = vmatpush2.bf16.xpose.msra.mxu0 0
      %2472 = vmatprep.subr.bf16.mxu0 0
      %2473 = vmatpush2.bf16.xpose.msra.mxu0 0
      %2474 = vmatprep.subr.bf16.mxu0 0
      %2475 = vmatpush2.bf16.xpose.msra.mxu0 0
      %2476 = vmatprep.mubr.bf16.mxu0 0
      %2477 = vmatmul.mubr.bf16.gmra.mxu0 %v2439
      %v2478 = vpop.f32.mrf.mxu0
      %v2479 = vadd.f32 %v1299, %v2478
      %v2480 = vpop.f32.mrf.mxu0
      %v2481 = vpop.f32.mrf.mxu0
      %v2482 = vpop.f32.mrf.mxu0
      %2483 = vdwg.mxu0
      %v2484 = vsel %vm1348, %v2479, -inf
      %2485 = vmax.xlane.f32.xlu0 %v2484
      %v2486 = vpop.xlane.xlu0 %2485
      %v2487 = vsub.f32 %v2479, %v2486
      %v2488 = vmul.f32 %v2487, 1.442695
      %v2489 = vpow.pop %v2488
      %v2490 = vsel %vm1348, %v2489, 0.0
      %2491 = vadd.xlane.f32.xlu0 %v2490
      %v2492 = vpop.xlane.xlu0 %2491
      %v2493 = vrcp.pop %v2492
      %v2494 = vmul.f32 %v2489, %v2493
      %v2495 = vpack.c.bf16 %v2494, %v2494
      %v2496 = vpack.c.bf16 %v2431, %v2431
      %v2498 = vsel %vm1348, %v2495, 0
      %v2501 = vsel %vm1365, %v2496, 0
      %2503 = vmatprep.subr.bf16.mxu0 0
      %2504 = vmatpush1.bf16.msra.mxu0 0
      %2505 = vmatprep.subr.bf16.mxu0 0
      %2506 = vmatpush1.bf16.msra.mxu0 0
      %2507 = vmatprep.subr.bf16.mxu0 0
      %2508 = vmatpush1.bf16.msra.mxu0 0
      %2509 = vmatprep.subr.bf16.mxu0 0
      %2510 = vmatpush1.bf16.msra.mxu0 0
      %2511 = vmatprep.subr.bf16.mxu0 0
      %2512 = vmatpush1.bf16.msra.mxu0 0
      %2513 = vmatprep.subr.bf16.mxu0 0
      %2514 = vmatpush1.bf16.msra.mxu0 0
      %2515 = vmatprep.subr.bf16.mxu0 0
      %2516 = vmatpush1.bf16.msra.mxu0 0
      %2517 = vmatprep.subr.bf16.mxu0 0
      %2518 = vmatpush1.bf16.msra.mxu0 %v2501
      %2519 = vmatprep.subr.bf16.mxu0 0
      %2520 = vmatpush2.bf16.msra.mxu0 0
      %2521 = vmatprep.subr.bf16.mxu0 0
      %2522 = vmatpush2.bf16.msra.mxu0 0
      %2523 = vmatprep.subr.bf16.mxu0 0
      %2524 = vmatpush2.bf16.msra.mxu0 0
      %2525 = vmatprep.subr.bf16.mxu0 0
      %2526 = vmatpush2.bf16.msra.mxu0 0
      %2527 = vmatprep.subr.bf16.mxu0 0
      %2528 = vmatpush2.bf16.msra.mxu0 0
      %2529 = vmatprep.subr.bf16.mxu0 0
      %2530 = vmatpush2.bf16.msra.mxu0 0
      %2531 = vmatprep.subr.bf16.mxu0 0
      %2532 = vmatpush2.bf16.msra.mxu0 0
      %2533 = vmatprep.subr.bf16.mxu0 0
      %2534 = vmatpush2.bf16.msra.mxu0 0
      %2535 = vmatprep.mubr.bf16.mxu0 0
      %2536 = vmatmul.mubr.bf16.gmra.mxu0 %v2498
      %v2537 = vpop.f32.mrf.mxu0
      %v2538 = vadd.f32 0.0, %v2537
      %v2539 = vpop.f32.mrf.mxu0
      %v2540 = vpop.f32.mrf.mxu0
      %v2541 = vpop.f32.mrf.mxu0
      %2542 = vdwg.mxu0
      %v2543 = vpack.c.bf16 %v2538, %v2538
      %s2544 = scalar_lea.vmem %s946, 96
      %v2545 = vld [vmem:[%s2544] sm:$0xff]
      %v2546 = vld [vmem:[%s2544 + $0x8] sm:$0xff]
      %v2547 = vld [vmem:[%s2544 + $0x10] sm:$0xff]
      %v2548 = vld [vmem:[%s2544 + $0x18] sm:$0xff]
      %v2549 = vpack.c.bf16 %v2546, %v2545
      %v2550 = vpack.c.bf16 %v2548, %v2547
      %v2552 = vsel %vm1301, %v2543, 0
      %2554 = vmatprep.subr.bf16.mxu0 0
      %2555 = vmatpush1.bf16.msra.mxu0 0
      %2556 = vmatprep.subr.bf16.mxu0 0
      %2557 = vmatpush1.bf16.msra.mxu0 0
      %2558 = vmatprep.subr.bf16.mxu0 0
      %2559 = vmatpush1.bf16.msra.mxu0 0
      %2560 = vmatprep.subr.bf16.mxu0 0
      %2561 = vmatpush1.bf16.msra.mxu0 0
      %2562 = vmatprep.subr.bf16.mxu0 0
      %2563 = vmatpush1.bf16.msra.mxu0 0
      %2564 = vmatprep.subr.bf16.mxu0 0
      %2565 = vmatpush1.bf16.msra.mxu0 0
      %2566 = vmatprep.subr.bf16.mxu0 0
      %2567 = vmatpush1.bf16.msra.mxu0 %v2550
      %2568 = vmatprep.subr.bf16.mxu0 0
      %2569 = vmatpush1.bf16.msra.mxu0 %v2549
      %2570 = vmatprep.subr.bf16.mxu0 0
      %2571 = vmatpush2.bf16.msra.mxu0 0
      %2572 = vmatprep.subr.bf16.mxu0 0
      %2573 = vmatpush2.bf16.msra.mxu0 0
      %2574 = vmatprep.subr.bf16.mxu0 0
      %2575 = vmatpush2.bf16.msra.mxu0 0
      %2576 = vmatprep.subr.bf16.mxu0 0
      %2577 = vmatpush2.bf16.msra.mxu0 0
      %2578 = vmatprep.subr.bf16.mxu0 0
      %2579 = vmatpush2.bf16.msra.mxu0 0
      %2580 = vmatprep.subr.bf16.mxu0 0
      %2581 = vmatpush2.bf16.msra.mxu0 0
      %2582 = vmatprep.subr.bf16.mxu0 0
      %2583 = vmatpush2.bf16.msra.mxu0 0
      %2584 = vmatprep.subr.bf16.mxu0 0
      %2585 = vmatpush2.bf16.msra.mxu0 0
      %2586 = vmatprep.mubr.bf16.mxu0 0
      %2587 = vmatmul.mubr.bf16.gmra.mxu0 %v2552
      %v2588 = vpop.f32.mrf.mxu0
      %v2589 = vadd.f32 0.0, %v2588
      %v2590 = vpop.f32.mrf.mxu0
      %v2591 = vpop.f32.mrf.mxu0
      %v2592 = vpop.f32.mrf.mxu0
      %2593 = vdwg.mxu0
      %v2594 = vadd.f32 %v2215, %v2589
      %v2595 = vadd.f32 %v1048, %v2594
      %v2596 = vld [vmem:[%s949] sm:$0x1]
      %v2598 = vlaneseq
      %v2599 = vshrl.u32 %v2598, 7
      %v2600 = vsub.s32 0, %v2599
      %v2601 = vrot.slane %v2596, %v2600
      %v2603 = vadd.f32 %v2595, %v2601
      %v2604 = vld [vmem:[%s952] sm:$0x1]
      %v2605 = vld [vmem:[%s955] sm:$0x1]
      %2606 = vadd.xlane.f32.xlu0 %v2603
      %v2607 = vpop.xlane.xlu0 %2606
      %v2608 = vmul.f32 %v2607, %v1054
      %v2609 = vsub.f32 %v2603, %v2608
      %v2610 = vmul.f32 %v2609, %v2609
      %2611 = vadd.xlane.f32.xlu0 %v2610
      %v2612 = vpop.xlane.xlu0 %2611
      %v2613 = vmul.f32 %v2612, %v1054
      %v2614 = vadd.f32 %v2613, 1e-05
      %v2615 = vrsqrt.pop %v2614
      %v2616 = vmul.f32 %v2609, %v2615
      %v2618 = vlaneseq
      %v2619 = vshrl.u32 %v2618, 7
      %v2620 = vsub.s32 0, %v2619
      %v2621 = vrot.slane %v2604, %v2620
      %v2623 = vmul.f32 %v2616, %v2621
      %v2625 = vlaneseq
      %v2626 = vshrl.u32 %v2625, 7
      %v2627 = vsub.s32 0, %v2626
      %v2628 = vrot.slane %v2605, %v2627
      %v2630 = vadd.f32 %v2623, %v2628
      %v2631 = vpack.c.bf16 %v2630, %v2630
      %v2632 = vld [vmem:[%s960] sm:$0xff]
      %v2633 = vld [vmem:[%s960 + $0x8] sm:$0xff]
      %v2634 = vld [vmem:[%s960 + $0x10] sm:$0xff]
      %v2635 = vld [vmem:[%s960 + $0x18] sm:$0xff]
      %v2636 = vld [vmem:[%s960 + $0x20] sm:$0xff]
      %v2637 = vld [vmem:[%s960 + $0x28] sm:$0xff]
      %v2638 = vld [vmem:[%s960 + $0x30] sm:$0xff]
      %v2639 = vld [vmem:[%s960 + $0x38] sm:$0xff]
      %v2640 = vld [vmem:[%s960 + $0x40] sm:$0xff]
      %v2641 = vld [vmem:[%s960 + $0x48] sm:$0xff]
      %v2642 = vld [vmem:[%s960 + $0x50] sm:$0xff]
      %v2643 = vld [vmem:[%s960 + $0x58] sm:$0xff]
      %v2644 = vld [vmem:[%s960 + $0x60] sm:$0xff]
      %v2645 = vld [vmem:[%s960 + $0x68] sm:$0xff]
      %v2646 = vld [vmem:[%s960 + $0x70] sm:$0xff]
      %v2647 = vld [vmem:[%s960 + $0x78] sm:$0xff]
      %v2648 = vld [vmem:[%s960 + $0x80] sm:$0xff]
      %v2649 = vld [vmem:[%s960 + $0x88] sm:$0xff]
      %v2650 = vld [vmem:[%s960 + $0x90] sm:$0xff]
      %v2651 = vld [vmem:[%s960 + $0x98] sm:$0xff]
      %v2652 = vld [vmem:[%s960 + $0xa0] sm:$0xff]
      %v2653 = vld [vmem:[%s960 + $0xa8] sm:$0xff]
      %v2654 = vld [vmem:[%s960 + $0xb0] sm:$0xff]
      %v2655 = vld [vmem:[%s960 + $0xb8] sm:$0xff]
      %v2656 = vld [vmem:[%s960 + $0xc0] sm:$0xff]
      %v2657 = vld [vmem:[%s960 + $0xc8] sm:$0xff]
      %v2658 = vld [vmem:[%s960 + $0xd0] sm:$0xff]
      %v2659 = vld [vmem:[%s960 + $0xd8] sm:$0xff]
      %v2660 = vld [vmem:[%s960 + $0xe0] sm:$0xff]
      %v2661 = vld [vmem:[%s960 + $0xe8] sm:$0xff]
      %v2662 = vld [vmem:[%s960 + $0xf0] sm:$0xff]
      %v2663 = vld [vmem:[%s960 + $0xf8] sm:$0xff]
      %v2664 = vpack.c.bf16 %v2634, %v2632
      %v2665 = vpack.c.bf16 %v2635, %v2633
      %v2666 = vpack.c.bf16 %v2638, %v2636
      %v2667 = vpack.c.bf16 %v2639, %v2637
      %v2668 = vpack.c.bf16 %v2642, %v2640
      %v2669 = vpack.c.bf16 %v2643, %v2641
      %v2670 = vpack.c.bf16 %v2646, %v2644
      %v2671 = vpack.c.bf16 %v2647, %v2645
      %v2672 = vpack.c.bf16 %v2650, %v2648
      %v2673 = vpack.c.bf16 %v2651, %v2649
      %v2674 = vpack.c.bf16 %v2654, %v2652
      %v2675 = vpack.c.bf16 %v2655, %v2653
      %v2676 = vpack.c.bf16 %v2658, %v2656
      %v2677 = vpack.c.bf16 %v2659, %v2657
      %v2678 = vpack.c.bf16 %v2662, %v2660
      %v2679 = vpack.c.bf16 %v2663, %v2661
      %v2680 = vld [vmem:[%s964] sm:$0x3]
      %v2682 = vlaneseq
      %v2683 = vshrl.u32 %v2682, 7
      %v2684 = vsub.s32 0, %v2683
      %v2685 = vrot.slane %v2680, %v2684
      %v2686 = vlaneseq
      %v2687 = vshrl.u32 %v2686, 7
      %v2688 = vsub.s32 1, %v2687
      %v2689 = vrot.slane %v2680, %v2688
      %2692 = vmatprep.subr.bf16.mxu0 %v2679
      %2693 = vmatpush1.bf16.msra.mxu0 %v2678
      %2694 = vmatprep.subr.bf16.mxu0 %v2677
      %2695 = vmatpush1.bf16.msra.mxu0 %v2676
      %2696 = vmatprep.subr.bf16.mxu0 %v2675
      %2697 = vmatpush1.bf16.msra.mxu0 %v2674
      %2698 = vmatprep.subr.bf16.mxu0 %v2673
      %2699 = vmatpush1.bf16.msra.mxu0 %v2672
      %2700 = vmatprep.subr.bf16.mxu0 %v2671
      %2701 = vmatpush1.bf16.msra.mxu0 %v2670
      %2702 = vmatprep.subr.bf16.mxu0 %v2669
      %2703 = vmatpush1.bf16.msra.mxu0 %v2668
      %2704 = vmatprep.subr.bf16.mxu0 %v2667
      %2705 = vmatpush1.bf16.msra.mxu0 %v2666
      %2706 = vmatprep.subr.bf16.mxu0 %v2665
      %2707 = vmatpush1.bf16.msra.mxu0 %v2664
      %2708 = vmatprep.subr.bf16.mxu0 0
      %2709 = vmatpush2.bf16.msra.mxu0 0
      %2710 = vmatprep.subr.bf16.mxu0 0
      %2711 = vmatpush2.bf16.msra.mxu0 0
      %2712 = vmatprep.subr.bf16.mxu0 0
      %2713 = vmatpush2.bf16.msra.mxu0 0
      %2714 = vmatprep.subr.bf16.mxu0 0
      %2715 = vmatpush2.bf16.msra.mxu0 0
      %2716 = vmatprep.subr.bf16.mxu0 0
      %2717 = vmatpush2.bf16.msra.mxu0 0
      %2718 = vmatprep.subr.bf16.mxu0 0
      %2719 = vmatpush2.bf16.msra.mxu0 0
      %2720 = vmatprep.subr.bf16.mxu0 0
      %2721 = vmatpush2.bf16.msra.mxu0 0
      %2722 = vmatprep.subr.bf16.mxu0 0
      %2723 = vmatpush2.bf16.msra.mxu0 0
      %2724 = vmatprep.mubr.bf16.mxu0 0
      %2725 = vmatmul.mubr.bf16.gmra.mxu0 %v2631
      %v2726 = vpop.f32.mrf.mxu0
      %v2727 = vadd.f32 %v2685, %v2726
      %v2728 = vpop.f32.mrf.mxu0
      %v2729 = vadd.f32 %v2689, %v2728
      %v2730 = vpop.f32.mrf.mxu0
      %v2731 = vpop.f32.mrf.mxu0
      %2732 = vdwg.mxu0
      %v2733 = vmax.f32 %v2727, 0.0
      %v2734 = vmax.f32 %v2729, 0.0
      %v2735 = vpack.c.bf16 %v2733, %v2733
      %v2736 = vpack.c.bf16 %v2734, %v2734
      %v2737 = vld [vmem:[%s969] sm:$0xff]
      %v2738 = vld [vmem:[%s969 + $0x8] sm:$0xff]
      %v2739 = vld [vmem:[%s969 + $0x10] sm:$0xff]
      %v2740 = vld [vmem:[%s969 + $0x18] sm:$0xff]
      %v2741 = vld [vmem:[%s969 + $0x20] sm:$0xff]
      %v2742 = vld [vmem:[%s969 + $0x28] sm:$0xff]
      %v2743 = vld [vmem:[%s969 + $0x30] sm:$0xff]
      %v2744 = vld [vmem:[%s969 + $0x38] sm:$0xff]
      %v2745 = vld [vmem:[%s969 + $0x40] sm:$0xff]
      %v2746 = vld [vmem:[%s969 + $0x48] sm:$0xff]
      %v2747 = vld [vmem:[%s969 + $0x50] sm:$0xff]
      %v2748 = vld [vmem:[%s969 + $0x58] sm:$0xff]
      %v2749 = vld [vmem:[%s969 + $0x60] sm:$0xff]
      %v2750 = vld [vmem:[%s969 + $0x68] sm:$0xff]
      %v2751 = vld [vmem:[%s969 + $0x70] sm:$0xff]
      %v2752 = vld [vmem:[%s969 + $0x78] sm:$0xff]
      %v2753 = vld [vmem:[%s969 + $0x80] sm:$0xff]
      %v2754 = vld [vmem:[%s969 + $0x88] sm:$0xff]
      %v2755 = vld [vmem:[%s969 + $0x90] sm:$0xff]
      %v2756 = vld [vmem:[%s969 + $0x98] sm:$0xff]
      %v2757 = vld [vmem:[%s969 + $0xa0] sm:$0xff]
      %v2758 = vld [vmem:[%s969 + $0xa8] sm:$0xff]
      %v2759 = vld [vmem:[%s969 + $0xb0] sm:$0xff]
      %v2760 = vld [vmem:[%s969 + $0xb8] sm:$0xff]
      %v2761 = vld [vmem:[%s969 + $0xc0] sm:$0xff]
      %v2762 = vld [vmem:[%s969 + $0xc8] sm:$0xff]
      %v2763 = vld [vmem:[%s969 + $0xd0] sm:$0xff]
      %v2764 = vld [vmem:[%s969 + $0xd8] sm:$0xff]
      %v2765 = vld [vmem:[%s969 + $0xe0] sm:$0xff]
      %v2766 = vld [vmem:[%s969 + $0xe8] sm:$0xff]
      %v2767 = vld [vmem:[%s969 + $0xf0] sm:$0xff]
      %v2768 = vld [vmem:[%s969 + $0xf8] sm:$0xff]
      %v2769 = vpack.c.bf16 %v2738, %v2737
      %v2770 = vpack.c.bf16 %v2740, %v2739
      %v2771 = vpack.c.bf16 %v2742, %v2741
      %v2772 = vpack.c.bf16 %v2744, %v2743
      %v2773 = vpack.c.bf16 %v2746, %v2745
      %v2774 = vpack.c.bf16 %v2748, %v2747
      %v2775 = vpack.c.bf16 %v2750, %v2749
      %v2776 = vpack.c.bf16 %v2752, %v2751
      %v2777 = vpack.c.bf16 %v2754, %v2753
      %v2778 = vpack.c.bf16 %v2756, %v2755
      %v2779 = vpack.c.bf16 %v2758, %v2757
      %v2780 = vpack.c.bf16 %v2760, %v2759
      %v2781 = vpack.c.bf16 %v2762, %v2761
      %v2782 = vpack.c.bf16 %v2764, %v2763
      %v2783 = vpack.c.bf16 %v2766, %v2765
      %v2784 = vpack.c.bf16 %v2768, %v2767
      %2785 = vmatprep.subr.bf16.mxu0 0
      %2786 = vmatpush1.bf16.msra.mxu0 %v2776
      %2787 = vmatprep.subr.bf16.mxu0 0
      %2788 = vmatpush1.bf16.msra.mxu0 %v2775
      %2789 = vmatprep.subr.bf16.mxu0 0
      %2790 = vmatpush1.bf16.msra.mxu0 %v2774
      %2791 = vmatprep.subr.bf16.mxu0 0
      %2792 = vmatpush1.bf16.msra.mxu0 %v2773
      %2793 = vmatprep.subr.bf16.mxu0 0
      %2794 = vmatpush1.bf16.msra.mxu0 %v2772
      %2795 = vmatprep.subr.bf16.mxu0 0
      %2796 = vmatpush1.bf16.msra.mxu0 %v2771
      %2797 = vmatprep.subr.bf16.mxu0 0
      %2798 = vmatpush1.bf16.msra.mxu0 %v2770
      %2799 = vmatprep.subr.bf16.mxu0 0
      %2800 = vmatpush1.bf16.msra.mxu0 %v2769
      %2801 = vmatprep.subr.bf16.mxu0 0
      %2802 = vmatpush2.bf16.msra.mxu0 %v2784
      %2803 = vmatprep.subr.bf16.mxu0 0
      %2804 = vmatpush2.bf16.msra.mxu0 %v2783
      %2805 = vmatprep.subr.bf16.mxu0 0
      %2806 = vmatpush2.bf16.msra.mxu0 %v2782
      %2807 = vmatprep.subr.bf16.mxu0 0
      %2808 = vmatpush2.bf16.msra.mxu0 %v2781
      %2809 = vmatprep.subr.bf16.mxu0 0
      %2810 = vmatpush2.bf16.msra.mxu0 %v2780
      %2811 = vmatprep.subr.bf16.mxu0 0
      %2812 = vmatpush2.bf16.msra.mxu0 %v2779
      %2813 = vmatprep.subr.bf16.mxu0 0
      %2814 = vmatpush2.bf16.msra.mxu0 %v2778
      %2815 = vmatprep.subr.bf16.mxu0 0
      %2816 = vmatpush2.bf16.msra.mxu0 %v2777
      %2817 = vmatprep.mubr.bf16.mxu0 %v2736
      %2818 = vmatmul.mubr.bf16.gmra.mxu0 %v2735
      %v2819 = vpop.f32.mrf.mxu0
      %v2820 = vadd.f32 0.0, %v2819
      %v2821 = vpop.f32.mrf.mxu0
      %v2822 = vpop.f32.mrf.mxu0
      %v2823 = vpop.f32.mrf.mxu0
      %2824 = vdwg.mxu0
      %v2825 = vadd.f32 %v2603, %v2820
      %v2826 = vld [vmem:[%s972] sm:$0x1]
      %v2828 = vlaneseq
      %v2829 = vshrl.u32 %v2828, 7
      %v2830 = vsub.s32 0, %v2829
      %v2831 = vrot.slane %v2826, %v2830
      %v2833 = vadd.f32 %v2825, %v2831
      %2834 = vst [vmem:[#allocation2] sm:$0xff] %v2833
      %p2835 = scmp.eq.s32.totalorder %s38, 1
      // Predicated region
      $region113: #{transformer_encoder_forward.1} parent=107 // pred_check
        %p2836 = pneg %p2835
      $region114: #{transformer_encoder_forward.1} parent=107 // pred_check_branch
        %2838 = sbr.rel (%p2836) target = $region116
      $region115: #{transformer_encoder_forward.1} parent=107 // pred_region
        %v2839 = vld [vmem:[%s20] sm:$0x1]
        %v2840 = vld [vmem:[%s21] sm:$0x1]
        %2841 = vadd.xlane.f32.xlu0 %v2833
        %v2842 = vpop.xlane.xlu0 %2841
        %v2843 = vmul.f32 %v2842, %v1054
        %v2844 = vsub.f32 %v2833, %v2843
        %v2845 = vmul.f32 %v2844, %v2844
        %2846 = vadd.xlane.f32.xlu0 %v2845
        %v2847 = vpop.xlane.xlu0 %2846
        %v2848 = vmul.f32 %v2847, %v1054
        %v2849 = vadd.f32 %v2848, 1e-05
        %v2850 = vrsqrt.pop %v2849
        %v2851 = vmul.f32 %v2844, %v2850
        %v2853 = vlaneseq
        %v2854 = vshrl.u32 %v2853, 7
        %v2855 = vsub.s32 0, %v2854
        %v2856 = vrot.slane %v2839, %v2855
        %v2858 = vmul.f32 %v2851, %v2856
        %v2860 = vlaneseq
        %v2861 = vshrl.u32 %v2860, 7
        %v2862 = vsub.s32 0, %v2861
        %v2863 = vrot.slane %v2840, %v2862
        %v2865 = vadd.f32 %v2858, %v2863
        %2866 = vst [vmem:[%s976] sm:$0xff] %v2865
      $region116: #{transformer_encoder_forward.1} parent=107 // pred_fallthru
        _
      %p2867 = scmp.lt.s32.totalorder %s38, 1
      // Predicated region
      $region117: #{transformer_encoder_forward.1} parent=107 // pred_check
        %p2868 = pneg %p2867
      $region118: #{transformer_encoder_forward.1} parent=107 // pred_check_branch
        %2870 = sbr.rel (%p2868) target = $region120
      $region119: #{transformer_encoder_forward.1} parent=107 // pred_region
        %2871 = vst [vmem:[%s976] sm:$0xff] %v2833
      $region120: #{transformer_encoder_forward.1} parent=107 // pred_fallthru
        _
      %p2872 = scmp.lt.s32.totalorder %s37, 1
      %s2873 = scalar_select %p2872, %s37, 1
      %s2874 = smul.addr %s2873, 8
      %s2875 = scalar_lea.vmem %s22, %s2874
      // Predicated region
      $region121: #{transformer_encoder_forward.1} parent=107 // pred_check
        %p2876 = pneg %p615
      $region122: #{transformer_encoder_forward.1} parent=107 // pred_check_branch
        %2878 = sbr.rel (%p2876) target = $region124
      $region123: #{transformer_encoder_forward.1} parent=107 // pred_region
        _
      $region124: #{transformer_encoder_forward.1} parent=107 // pred_fallthru
        _
    $region108: #{transformer_encoder_forward.1} parent=5 // pred_fallthru
      _
    %p2879 = scmp.le.s32.totalorder 2, %s28
    // Predicated region
    $region125: #{transformer_encoder_forward.1} parent=5 // pred_check
      %p2880 = pneg %p2879
    $region126: #{transformer_encoder_forward.1} parent=5 // pred_check_branch
      %2882 = sbr.rel (%p2880) target = $region128
    $region127: #{transformer_encoder_forward.1} parent=5 // pred_region
      %s2883 = ssub.s32 %s28, 2
      // Predicated region
      $region129: #{transformer_encoder_forward.1} parent=127 // pred_check
        %p2884 = pneg %p621
      $region130: #{transformer_encoder_forward.1} parent=127 // pred_check_branch
        %2886 = sbr.rel (%p2884) target = $region132
      $region131: #{transformer_encoder_forward.1} parent=127 // pred_region
        %p2887 = scmp.lt.s32.totalorder %s39, 1
        %s2888 = scalar_select %p2887, %s39, 1
        %s2889 = smul.addr %s2888, 8
        %s2890 = scalar_lea.vmem %s22, %s2889
      $region132: #{transformer_encoder_forward.1} parent=127 // pred_fallthru
        _
    $region128: #{transformer_encoder_forward.1} parent=5 // pred_fallthru
      _
  $region6: #{transformer_encoder_forward.1} parent=0 // loop_footer
    %s32 = sadd.s32 1, %s28
  $region7: #{transformer_encoder_forward.1} parent=0 // loop_footer_branch
    %27 = sbr.rel target = $region3
  $region8: #{transformer_encoder_forward.1} parent=0 // loop_exit
    _

</llo_original>
